<compile_context>
chip_gen: v7x
topology: tpu7x:2x2x1
jax: 0.10.0
libtpu: 0.0.40
codegen_flags: <defaults>
</compile_context>

<pallas_src>
import functools

import numpy as np
import jax
import jax.numpy as jnp
from jax.experimental import pallas as pl
from jax.experimental.pallas import tpu as pltpu


# -----------------------------------------------------------------------------
# Positional encoding (faithful port of the reference numpy code)
# -----------------------------------------------------------------------------
def get_angles(pos, i, d_model):
    angle_rates = 1 / np.power(10000, 2 * (i // 2) / np.float32(d_model))
    return pos * angle_rates


def positional_encoding(position, d_model):
    angle_rads = get_angles(
        np.arange(position)[:, np.newaxis],
        np.arange(d_model)[np.newaxis, :],
        d_model,
    )
    angle_rads[:, 0::2] = np.sin(angle_rads[:, 0::2])
    angle_rads[:, 1::2] = np.cos(angle_rads[:, 1::2])
    return jnp.asarray(angle_rads[np.newaxis, ...], dtype=jnp.float32)


# -----------------------------------------------------------------------------
# Constant selector matrices (built host-side with numpy; tiny)
# -----------------------------------------------------------------------------
def make_head_selector(d_model, num_heads):
    """(D, D) block matrix: sel[d, j] = 1/sqrt(depth) if d and j belong to the same head.
    (q_row * k_row) @ sel  ==  scaled per-head logits, broadcast over that head's depth."""
    depth = d_model // num_heads
    d = np.arange(d_model)
    blk = (d[:, None] // depth == d[None, :] // depth).astype(np.float32)
    return jnp.asarray(blk / np.sqrt(np.float32(depth)), dtype=jnp.float32)


def make_pair_selectors(seq):
    """rep: (S*S, S) picks q = i // S ;  til: (S*S, S) picks k = i % S  (0/1 matrices)."""
    i = np.arange(seq * seq)
    j = np.arange(seq)
    rep = (i[:, None] // seq == j[None, :]).astype(np.float32)
    til = (i[:, None] % seq == j[None, :]).astype(np.float32)
    return jnp.asarray(rep), jnp.asarray(til)


# -----------------------------------------------------------------------------
# Fused multi-layer encoder kernel
# -----------------------------------------------------------------------------
def fused_encoder_kernel(
    x_ref, mask_ref, sel_ref, rep_ref, til_ref,
    wq_ref, bq_ref, wk_ref, bk_ref, wv_ref, bv_ref, wo_ref, bo_ref,
    g1_ref, be1_ref, w1_ref, bf1_ref, w2_ref, bf2_ref, g2_ref, be2_ref,
    o_ref,
    x_sc,
    *, batch, seq,
):
    layer = pl.program_id(0)
    d_model = wq_ref.shape[0]

    # ---- load activations once; keep them resident in VMEM across all layers ----
    @pl.when(layer == 0)
    def _load():
        x_sc[...] = x_ref[...]

    x = x_sc[...]                                   # (B*S, D) float32

    def linear(inp, w_ref, b_ref):
        # bf16 MXU operands, f32 accumulation; bias add in f32.
        return jnp.dot(inp.astype(jnp.bfloat16), w_ref[...],
                       preferred_element_type=jnp.float32) + b_ref[...]

    def layer_norm(inp, g_ref, b_ref):
        mu = jnp.mean(inp, axis=-1, keepdims=True)
        var = jnp.mean(jnp.square(inp - mu), axis=-1, keepdims=True)
        return (inp - mu) * jax.lax.rsqrt(var + 1e-6) * g_ref[...] + b_ref[...]

    # ---- multi-head self-attention: heads + batch folded into full-width matmuls ----
    q = linear(x, wq_ref, bq_ref)                   # (B*S, D)
    k = linear(x, wk_ref, bk_ref)
    v = linear(x, wv_ref, bv_ref)

    neg = mask_ref[...] * (-1000000000.0)           # (B, S, 1) additive key mask (once/layer)
    sel = sel_ref[...]                              # (D, D)  same-head selector / sqrt(depth)
    rep = rep_ref[...]                              # (S*S, S)
    til = til_ref[...]                              # (S*S, S)

    ctx_parts = []
    for b in range(batch):                          # small static loop: attention is
        r0 = b * seq                                # block-diagonal over the batch
        qb = q[r0:r0 + seq, :]                      # (S, D) sublane-aligned slices only
        kb = k[r0:r0 + seq, :]
        vb = v[r0:r0 + seq, :]

        # pair rows: row (q*S + k) holds qb[q] and kb[k] respectively (dense 2-D matmuls)
        q_pair = jnp.dot(rep, qb, preferred_element_type=jnp.float32)   # (S*S, D)
        k_pair = jnp.dot(til, kb, preferred_element_type=jnp.float32)   # (S*S, D)

        # logit[q, k, j] = sum_{d in head(j)} qb[q,d] * kb[k,d] / sqrt(depth)
        logit = jnp.dot(q_pair * k_pair, sel,
                        preferred_element_type=jnp.float32)             # (S*S, D)
        logit = logit.reshape(seq, seq, d_model) + neg[b]               # mask over keys
        logit = logit - jnp.max(logit, axis=1, keepdims=True)           # softmax over keys
        e = jnp.exp(logit)
        p = e * pl.reciprocal(jnp.sum(e, axis=1, keepdims=True), approx=True)
        ctx_parts.append(jnp.sum(p * vb[None, :, :], axis=1))           # (S, D)
    ctx = jnp.concatenate(ctx_parts, axis=0)                            # (B*S, D)

    attn_out = linear(ctx, wo_ref, bo_ref)
    # dropout1: identity (eval mode)
    out1 = layer_norm(x + attn_out, g1_ref, be1_ref)

    # ---- point-wise feed-forward ----
    hidden = jnp.maximum(linear(out1, w1_ref, bf1_ref), 0.0)
    ffn_out = linear(hidden, w2_ref, bf2_ref)
    # dropout2: identity (eval mode)
    out2 = layer_norm(out1 + ffn_out, g2_ref, be2_ref)

    x_sc[...] = out2                                # carry activations to the next layer

    @pl.when(layer == pl.num_programs(0) - 1)
    def _store():
        o_ref[...] = out2


def run_fused_encoder(x_flat, mask_k, head_sel, rep, til, sp,
                      batch, seq, d_model, dff):
    num_layers = sp["wq"].shape[0]

    def fixed(*shape):
        return pl.BlockSpec(shape, lambda l: (0,) * len(shape))

    def per_layer(*shape):
        return pl.BlockSpec((None,) + shape, lambda l: (l,) + (0,) * len(shape))

    in_specs = [
        fixed(batch * seq, d_model),                       # x (batch folded into M)
        fixed(batch, seq, 1),                              # additive key mask (B, S, 1)
        fixed(d_model, d_model),                           # head selector
        fixed(seq * seq, seq),                             # rep
        fixed(seq * seq, seq),                             # til
        per_layer(d_model, d_model), per_layer(1, d_model),  # wq, bq
        per_layer(d_model, d_model), per_layer(1, d_model),  # wk, bk
        per_layer(d_model, d_model), per_layer(1, d_model),  # wv, bv
        per_layer(d_model, d_model), per_layer(1, d_model),  # wo, bo
        per_layer(1, d_model), per_layer(1, d_model),         # ln1 gamma, beta
        per_layer(d_model, dff), per_layer(1, dff),           # ffn w1, b1
        per_layer(dff, d_model), per_layer(1, d_model),       # ffn w2, b2
        per_layer(1, d_model), per_layer(1, d_model),         # ln2 gamma, beta
    ]

    flat = (
        sp["wq"], sp["bq"], sp["wk"], sp["bk"], sp["wv"], sp["bv"],
        sp["wo"], sp["bo"], sp["g1"], sp["be1"],
        sp["w1"], sp["bf1"], sp["w2"], sp["bf2"], sp["g2"], sp["be2"],
    )

    return pl.pallas_call(
        functools.partial(fused_encoder_kernel, batch=batch, seq=seq),
        out_shape=jax.ShapeDtypeStruct((batch * seq, d_model), jnp.float32),
        grid_spec=pltpu.PrefetchScalarGridSpec(
            num_scalar_prefetch=0,
            grid=(num_layers,),                    # layer axis: sequential carry
            in_specs=in_specs,
            out_specs=fixed(batch * seq, d_model),
            scratch_shapes=[pltpu.VMEM((batch * seq, d_model), jnp.float32)],
        ),
        compiler_params=pltpu.CompilerParams(
            dimension_semantics=("arbitrary",),
            vmem_limit_bytes=32 * 1024 * 1024,
        ),
    )(x_flat, mask_k, head_sel, rep, til, *flat)


# -----------------------------------------------------------------------------
# Parameters (stacked over layers, MXU weights in bf16) and Encoder forward
# -----------------------------------------------------------------------------
def init_encoder_params(key, num_layers, d_model, num_heads, dff, input_vocab_size):
    n_per_layer = 6
    keys = jax.random.split(key, 1 + num_layers * n_per_layer)
    emb = 0.02 * jax.random.normal(keys[0], (input_vocab_size, d_model), jnp.float32)

    def stack_w(idx, shape):
        ws = [0.02 * jax.random.normal(keys[1 + l * n_per_layer + idx], shape, jnp.float32)
              for l in range(num_layers)]
        return jnp.stack(ws).astype(jnp.bfloat16)   # MXU operands stored in bf16

    def zeros(shape):
        return jnp.zeros((num_layers,) + shape, jnp.float32)

    def ones(shape):
        return jnp.ones((num_layers,) + shape, jnp.float32)

    stacked = {
        "wq": stack_w(0, (d_model, d_model)), "bq": zeros((1, d_model)),
        "wk": stack_w(1, (d_model, d_model)), "bk": zeros((1, d_model)),
        "wv": stack_w(2, (d_model, d_model)), "bv": zeros((1, d_model)),
        "wo": stack_w(3, (d_model, d_model)), "bo": zeros((1, d_model)),
        "g1": ones((1, d_model)), "be1": zeros((1, d_model)),
        "w1": stack_w(4, (d_model, dff)), "bf1": zeros((1, dff)),
        "w2": stack_w(5, (dff, d_model)), "bf2": zeros((1, d_model)),
        "g2": ones((1, d_model)), "be2": zeros((1, d_model)),
    }
    return {
        "embedding": emb,
        "stacked": stacked,
        "head_sel": make_head_selector(d_model, num_heads),
    }


def encoder_forward(params, token_ids, mask, pos_encoding, d_model, num_heads, dff):
    """token_ids: (B, S) int32; mask: (B, 1, S) f32 (1 = padded key). Returns (B, S, D)."""
    del num_heads  # head structure is encoded in params["head_sel"]
    B, S = token_ids.shape
    # TODO(synk): embedding gather stays in XLA; a Pallas DMA-gather kernel is possible
    # but not worthwhile at this size.
    x = jnp.take(params["embedding"], token_ids, axis=0)          # (B, S, D)
    x = x * jnp.sqrt(jnp.float32(d_model))
    x = x + pos_encoding[:, :S, :]
    # encoder-level dropout: identity (eval mode)

    x_flat = x.reshape(B * S, d_model)                            # batch folded into M
    mask_k = jnp.swapaxes(mask, 1, 2)                             # (B, 1, S) -> (B, S, 1)
    rep, til = make_pair_selectors(S)

    out = run_fused_encoder(x_flat, mask_k, params["head_sel"], rep, til,
                            params["stacked"], B, S, d_model, dff)
    return out.reshape(B, S, d_model)


if __name__ == "__main__":
    NUM_LAYERS = 2
    D_MODEL = 32
    NUM_HEADS = 4
    DFF = 64
    VOCAB = 50
    MAX_POS = 16
    BATCH = 2
    SEQ = 8

    key = jax.random.PRNGKey(0)
    k_param, k_tok = jax.random.split(key)

    params = init_encoder_params(k_param, NUM_LAYERS, D_MODEL, NUM_HEADS, DFF, VOCAB)
    pos_enc = positional_encoding(MAX_POS, D_MODEL)

    token_ids = jax.random.randint(k_tok, (BATCH, SEQ), 0, VOCAB, dtype=jnp.int32)
    # Padding mask: mark the last two positions of the second sequence as padding.
    mask_np = np.zeros((BATCH, 1, SEQ), dtype=np.float32)
    mask_np[1, 0, -2:] = 1.0
    mask = jnp.asarray(mask_np)

    out = encoder_forward(params, token_ids, mask, pos_enc, D_MODEL, NUM_HEADS, DFF)
    out = jax.block_until_ready(out)
    assert out.shape == (BATCH, SEQ, D_MODEL)
    assert bool(jnp.all(jnp.isfinite(out)))
    print("KERNEL_OK")
</pallas_src>

<mosaic_0001>
module attributes {stable_mosaic.version = 11 : i64} {
  func.func @fused_encoder_kernel(%arg0: i32, %arg1: memref<16x32xf32, #tpu.memory_space<vmem>>, %arg2: memref<2x8x1xf32, #tpu.memory_space<vmem>>, %arg3: memref<32x32xf32, #tpu.memory_space<vmem>>, %arg4: memref<64x8xf32, #tpu.memory_space<vmem>>, %arg5: memref<64x8xf32, #tpu.memory_space<vmem>>, %arg6: memref<1x32x32xbf16, #tpu.memory_space<vmem>>, %arg7: memref<1x1x32xf32, #tpu.memory_space<vmem>>, %arg8: memref<1x32x32xbf16, #tpu.memory_space<vmem>>, %arg9: memref<1x1x32xf32, #tpu.memory_space<vmem>>, %arg10: memref<1x32x32xbf16, #tpu.memory_space<vmem>>, %arg11: memref<1x1x32xf32, #tpu.memory_space<vmem>>, %arg12: memref<1x32x32xbf16, #tpu.memory_space<vmem>>, %arg13: memref<1x1x32xf32, #tpu.memory_space<vmem>>, %arg14: memref<1x1x32xf32, #tpu.memory_space<vmem>>, %arg15: memref<1x1x32xf32, #tpu.memory_space<vmem>>, %arg16: memref<1x32x64xbf16, #tpu.memory_space<vmem>>, %arg17: memref<1x1x64xf32, #tpu.memory_space<vmem>>, %arg18: memref<1x64x32xbf16, #tpu.memory_space<vmem>>, %arg19: memref<1x1x32xf32, #tpu.memory_space<vmem>>, %arg20: memref<1x1x32xf32, #tpu.memory_space<vmem>>, %arg21: memref<1x1x32xf32, #tpu.memory_space<vmem>>, %arg22: memref<16x32xf32, #tpu.memory_space<vmem>>, %arg23: memref<16x32xf32, #tpu.memory_space<vmem>>) attributes {dimension_semantics = [#tpu.dimension_semantics<arbitrary>], iteration_bounds = array<i64: 2>, scalar_prefetch = 0 : i64, scratch_operands = 1 : i64, tpu.core_type = #tpu.core_type<tc>, window_params = [{pipeline_mode = #tpu.pipeline_mode<synchronous>, transform_indices = @transform_0, window_bounds = array<i64: 16, 32>}, {pipeline_mode = #tpu.pipeline_mode<synchronous>, transform_indices = @transform_1, window_bounds = array<i64: 2, 8, 1>}, {pipeline_mode = #tpu.pipeline_mode<synchronous>, transform_indices = @transform_2, window_bounds = array<i64: 32, 32>}, {pipeline_mode = #tpu.pipeline_mode<synchronous>, transform_indices = @transform_3, window_bounds = array<i64: 64, 8>}, {pipeline_mode = #tpu.pipeline_mode<synchronous>, transform_indices = @transform_4, window_bounds = array<i64: 64, 8>}, {transform_indices = @transform_5, window_bounds = array<i64: 1, 32, 32>}, {transform_indices = @transform_6, window_bounds = array<i64: 1, 1, 32>}, {transform_indices = @transform_7, window_bounds = array<i64: 1, 32, 32>}, {transform_indices = @transform_8, window_bounds = array<i64: 1, 1, 32>}, {transform_indices = @transform_9, window_bounds = array<i64: 1, 32, 32>}, {transform_indices = @transform_10, window_bounds = array<i64: 1, 1, 32>}, {transform_indices = @transform_11, window_bounds = array<i64: 1, 32, 32>}, {transform_indices = @transform_12, window_bounds = array<i64: 1, 1, 32>}, {transform_indices = @transform_13, window_bounds = array<i64: 1, 1, 32>}, {transform_indices = @transform_14, window_bounds = array<i64: 1, 1, 32>}, {transform_indices = @transform_15, window_bounds = array<i64: 1, 32, 64>}, {transform_indices = @transform_16, window_bounds = array<i64: 1, 1, 64>}, {transform_indices = @transform_17, window_bounds = array<i64: 1, 64, 32>}, {transform_indices = @transform_18, window_bounds = array<i64: 1, 1, 32>}, {transform_indices = @transform_19, window_bounds = array<i64: 1, 1, 32>}, {transform_indices = @transform_20, window_bounds = array<i64: 1, 1, 32>}, {pipeline_mode = #tpu.pipeline_mode<synchronous>, transform_indices = @transform_21, window_bounds = array<i64: 16, 32>}]} {
    %c0_i32 = arith.constant 0 : i32
    %0 = arith.cmpi eq, %arg0, %c0_i32 : i32
    %1 = arith.extui %0 : i1 to i32
    %c0_i32_0 = arith.constant 0 : i32
    %2 = arith.cmpi ne, %1, %c0_i32_0 : i32
    scf.if %2 {
      %c0_91 = arith.constant 0 : index
      %c0_92 = arith.constant 0 : index
      %173 = vector.load %arg1[%c0_91, %c0_92] : memref<16x32xf32, #tpu.memory_space<vmem>>, vector<16x32xf32>
      %c0_93 = arith.constant 0 : index
      %c0_94 = arith.constant 0 : index
      %174 = vector.load %arg23[%c0_93, %c0_94] : memref<16x32xf32, #tpu.memory_space<vmem>>, vector<16x32xf32>
      tpu.vector_store %arg23[%c0_93, %c0_94], %173 {strides = array<i32>} : memref<16x32xf32, #tpu.memory_space<vmem>>, vector<16x32xf32>,
    } else {
    }
    %c0 = arith.constant 0 : index
    %c0_1 = arith.constant 0 : index
    %3 = vector.load %arg23[%c0, %c0_1] : memref<16x32xf32, #tpu.memory_space<vmem>>, vector<16x32xf32>
    %4 = arith.truncf %3 : vector<16x32xf32> to vector<16x32xbf16>
    %c0_2 = arith.constant 0 : index
    %c0_3 = arith.constant 0 : index
    %c0_4 = arith.constant 0 : index
    %5 = vector.load %arg6[%c0_2, %c0_3, %c0_4] : memref<1x32x32xbf16, #tpu.memory_space<vmem>>, vector<1x32x32xbf16>
    %6 = vector.shape_cast %5 : vector<1x32x32xbf16> to vector<32x32xbf16>
    %cst = arith.constant dense<0.000000e+00> : vector<16x32xf32>
    %7 = tpu.matmul %4, %6, %cst {dimension_numbers = #tpu.dot_dimension_numbers<[1], [0], [0], [1], [0, 0, 1, 1], [], []>} : vector<16x32xbf16>, vector<32x32xbf16>, vector<16x32xf32> -> vector<16x32xf32>
    %c0_5 = arith.constant 0 : index
    %c0_6 = arith.constant 0 : index
    %c0_7 = arith.constant 0 : index
    %8 = vector.load %arg7[%c0_5, %c0_6, %c0_7] : memref<1x1x32xf32, #tpu.memory_space<vmem>>, vector<1x1x32xf32>
    %9 = vector.shape_cast %8 : vector<1x1x32xf32> to vector<1x32xf32>
    %10 = vector.broadcast %9 : vector<1x32xf32> to vector<16x32xf32>
    %11 = arith.addf %7, %10 : vector<16x32xf32>
    %12 = arith.truncf %3 : vector<16x32xf32> to vector<16x32xbf16>
    %c0_8 = arith.constant 0 : index
    %c0_9 = arith.constant 0 : index
    %c0_10 = arith.constant 0 : index
    %13 = vector.load %arg8[%c0_8, %c0_9, %c0_10] : memref<1x32x32xbf16, #tpu.memory_space<vmem>>, vector<1x32x32xbf16>
    %14 = vector.shape_cast %13 : vector<1x32x32xbf16> to vector<32x32xbf16>
    %cst_11 = arith.constant dense<0.000000e+00> : vector<16x32xf32>
    %15 = tpu.matmul %12, %14, %cst_11 {dimension_numbers = #tpu.dot_dimension_numbers<[1], [0], [0], [1], [0, 0, 1, 1], [], []>} : vector<16x32xbf16>, vector<32x32xbf16>, vector<16x32xf32> -> vector<16x32xf32>
    %c0_12 = arith.constant 0 : index
    %c0_13 = arith.constant 0 : index
    %c0_14 = arith.constant 0 : index
    %16 = vector.load %arg9[%c0_12, %c0_13, %c0_14] : memref<1x1x32xf32, #tpu.memory_space<vmem>>, vector<1x1x32xf32>
    %17 = vector.shape_cast %16 : vector<1x1x32xf32> to vector<1x32xf32>
    %18 = vector.broadcast %17 : vector<1x32xf32> to vector<16x32xf32>
    %19 = arith.addf %15, %18 : vector<16x32xf32>
    %20 = arith.truncf %3 : vector<16x32xf32> to vector<16x32xbf16>
    %c0_15 = arith.constant 0 : index
    %c0_16 = arith.constant 0 : index
    %c0_17 = arith.constant 0 : index
    %21 = vector.load %arg10[%c0_15, %c0_16, %c0_17] : memref<1x32x32xbf16, #tpu.memory_space<vmem>>, vector<1x32x32xbf16>
    %22 = vector.shape_cast %21 : vector<1x32x32xbf16> to vector<32x32xbf16>
    %cst_18 = arith.constant dense<0.000000e+00> : vector<16x32xf32>
    %23 = tpu.matmul %20, %22, %cst_18 {dimension_numbers = #tpu.dot_dimension_numbers<[1], [0], [0], [1], [0, 0, 1, 1], [], []>} : vector<16x32xbf16>, vector<32x32xbf16>, vector<16x32xf32> -> vector<16x32xf32>
    %c0_19 = arith.constant 0 : index
    %c0_20 = arith.constant 0 : index
    %c0_21 = arith.constant 0 : index
    %24 = vector.load %arg11[%c0_19, %c0_20, %c0_21] : memref<1x1x32xf32, #tpu.memory_space<vmem>>, vector<1x1x32xf32>
    %25 = vector.shape_cast %24 : vector<1x1x32xf32> to vector<1x32xf32>
    %26 = vector.broadcast %25 : vector<1x32xf32> to vector<16x32xf32>
    %27 = arith.addf %23, %26 : vector<16x32xf32>
    %c0_22 = arith.constant 0 : index
    %c0_23 = arith.constant 0 : index
    %c0_24 = arith.constant 0 : index
    %28 = vector.load %arg2[%c0_22, %c0_23, %c0_24] : memref<2x8x1xf32, #tpu.memory_space<vmem>>, vector<2x8x1xf32>
    %cst_25 = arith.constant -1.000000e+09 : f32
    %29 = vector.broadcast %cst_25 : f32 to vector<2x8x1xf32>
    %30 = arith.mulf %28, %29 : vector<2x8x1xf32>
    %c0_26 = arith.constant 0 : index
    %c0_27 = arith.constant 0 : index
    %31 = vector.load %arg3[%c0_26, %c0_27] : memref<32x32xf32, #tpu.memory_space<vmem>>, vector<32x32xf32>
    %c0_28 = arith.constant 0 : index
    %c0_29 = arith.constant 0 : index
    %32 = vector.load %arg4[%c0_28, %c0_29] : memref<64x8xf32, #tpu.memory_space<vmem>>, vector<64x8xf32>
    %c0_30 = arith.constant 0 : index
    %c0_31 = arith.constant 0 : index
    %33 = vector.load %arg5[%c0_30, %c0_31] : memref<64x8xf32, #tpu.memory_space<vmem>>, vector<64x8xf32>
    %34 = vector.extract_strided_slice %11 {offsets = [0, 0], sizes = [8, 32], strides = [1, 1]} : vector<16x32xf32> to vector<8x32xf32>
    %35 = vector.extract_strided_slice %19 {offsets = [0, 0], sizes = [8, 32], strides = [1, 1]} : vector<16x32xf32> to vector<8x32xf32>
    %36 = vector.extract_strided_slice %27 {offsets = [0, 0], sizes = [8, 32], strides = [1, 1]} : vector<16x32xf32> to vector<8x32xf32>
    %cst_32 = arith.constant dense<0.000000e+00> : vector<64x32xf32>
    %37 = tpu.matmul %32, %34, %cst_32 {dimension_numbers = #tpu.dot_dimension_numbers<[1], [0], [0], [1], [0, 0, 1, 1], [], []>} : vector<64x8xf32>, vector<8x32xf32>, vector<64x32xf32> -> vector<64x32xf32>
    %cst_33 = arith.constant dense<0.000000e+00> : vector<64x32xf32>
    %38 = tpu.matmul %33, %35, %cst_33 {dimension_numbers = #tpu.dot_dimension_numbers<[1], [0], [0], [1], [0, 0, 1, 1], [], []>} : vector<64x8xf32>, vector<8x32xf32>, vector<64x32xf32> -> vector<64x32xf32>
    %39 = arith.mulf %37, %38 : vector<64x32xf32>
    %cst_34 = arith.constant dense<0.000000e+00> : vector<64x32xf32>
    %40 = tpu.matmul %39, %31, %cst_34 {dimension_numbers = #tpu.dot_dimension_numbers<[1], [0], [0], [1], [0, 0, 1, 1], [], []>} : vector<64x32xf32>, vector<32x32xf32>, vector<64x32xf32> -> vector<64x32xf32>
    %41 = vector.shape_cast %40 : vector<64x32xf32> to vector<8x8x32xf32>
    %42 = vector.extract_strided_slice %30 {offsets = [0, 0, 0], sizes = [1, 8, 1], strides = [1, 1, 1]} : vector<2x8x1xf32> to vector<1x8x1xf32>
    %43 = vector.shape_cast %42 : vector<1x8x1xf32> to vector<8x1xf32>
    %44 = vector.shape_cast %43 : vector<8x1xf32> to vector<1x8x1xf32>
    %45 = vector.broadcast %44 : vector<1x8x1xf32> to vector<8x8x32xf32>
    %46 = arith.addf %41, %45 : vector<8x8x32xf32>
    %cst_35 = arith.constant dense<0xFF800000> : vector<8x32xf32>
    %47 = vector.multi_reduction <maximumf>, %46, %cst_35 [1] : vector<8x8x32xf32> to vector<8x32xf32>
    %48 = vector.shape_cast %47 : vector<8x32xf32> to vector<8x1x32xf32>
    %49 = vector.broadcast %48 : vector<8x1x32xf32> to vector<8x8x32xf32>
    %50 = arith.subf %46, %49 : vector<8x8x32xf32>
    %51 = math.exp %50 : vector<8x8x32xf32>
    %cst_36 = arith.constant dense<0.000000e+00> : vector<8x32xf32>
    %52 = vector.multi_reduction <add>, %51, %cst_36 [1] : vector<8x8x32xf32> to vector<8x32xf32>
    %53 = vector.shape_cast %52 : vector<8x32xf32> to vector<8x1x32xf32>
    %54 = tpu.reciprocal %53 {approx = true} : vector<8x1x32xf32> -> vector<8x1x32xf32>
    %55 = vector.broadcast %54 : vector<8x1x32xf32> to vector<8x8x32xf32>
    %56 = arith.mulf %51, %55 : vector<8x8x32xf32>
    %57 = vector.shape_cast %36 : vector<8x32xf32> to vector<1x8x32xf32>
    %58 = vector.broadcast %57 : vector<1x8x32xf32> to vector<8x8x32xf32>
    %59 = arith.mulf %56, %58 : vector<8x8x32xf32>
    %cst_37 = arith.constant dense<0.000000e+00> : vector<8x32xf32>
    %60 = vector.multi_reduction <add>, %59, %cst_37 [1] : vector<8x8x32xf32> to vector<8x32xf32>
    %61 = vector.extract_strided_slice %11 {offsets = [8, 0], sizes = [8, 32], strides = [1, 1]} : vector<16x32xf32> to vector<8x32xf32>
    %62 = vector.extract_strided_slice %19 {offsets = [8, 0], sizes = [8, 32], strides = [1, 1]} : vector<16x32xf32> to vector<8x32xf32>
    %63 = vector.extract_strided_slice %27 {offsets = [8, 0], sizes = [8, 32], strides = [1, 1]} : vector<16x32xf32> to vector<8x32xf32>
    %cst_38 = arith.constant dense<0.000000e+00> : vector<64x32xf32>
    %64 = tpu.matmul %32, %61, %cst_38 {dimension_numbers = #tpu.dot_dimension_numbers<[1], [0], [0], [1], [0, 0, 1, 1], [], []>} : vector<64x8xf32>, vector<8x32xf32>, vector<64x32xf32> -> vector<64x32xf32>
    %cst_39 = arith.constant dense<0.000000e+00> : vector<64x32xf32>
    %65 = tpu.matmul %33, %62, %cst_39 {dimension_numbers = #tpu.dot_dimension_numbers<[1], [0], [0], [1], [0, 0, 1, 1], [], []>} : vector<64x8xf32>, vector<8x32xf32>, vector<64x32xf32> -> vector<64x32xf32>
    %66 = arith.mulf %64, %65 : vector<64x32xf32>
    %cst_40 = arith.constant dense<0.000000e+00> : vector<64x32xf32>
    %67 = tpu.matmul %66, %31, %cst_40 {dimension_numbers = #tpu.dot_dimension_numbers<[1], [0], [0], [1], [0, 0, 1, 1], [], []>} : vector<64x32xf32>, vector<32x32xf32>, vector<64x32xf32> -> vector<64x32xf32>
    %68 = vector.shape_cast %67 : vector<64x32xf32> to vector<8x8x32xf32>
    %69 = vector.extract_strided_slice %30 {offsets = [1, 0, 0], sizes = [1, 8, 1], strides = [1, 1, 1]} : vector<2x8x1xf32> to vector<1x8x1xf32>
    %70 = vector.shape_cast %69 : vector<1x8x1xf32> to vector<8x1xf32>
    %71 = vector.shape_cast %70 : vector<8x1xf32> to vector<1x8x1xf32>
    %72 = vector.broadcast %71 : vector<1x8x1xf32> to vector<8x8x32xf32>
    %73 = arith.addf %68, %72 : vector<8x8x32xf32>
    %cst_41 = arith.constant dense<0xFF800000> : vector<8x32xf32>
    %74 = vector.multi_reduction <maximumf>, %73, %cst_41 [1] : vector<8x8x32xf32> to vector<8x32xf32>
    %75 = vector.shape_cast %74 : vector<8x32xf32> to vector<8x1x32xf32>
    %76 = vector.broadcast %75 : vector<8x1x32xf32> to vector<8x8x32xf32>
    %77 = arith.subf %73, %76 : vector<8x8x32xf32>
    %78 = math.exp %77 : vector<8x8x32xf32>
    %cst_42 = arith.constant dense<0.000000e+00> : vector<8x32xf32>
    %79 = vector.multi_reduction <add>, %78, %cst_42 [1] : vector<8x8x32xf32> to vector<8x32xf32>
    %80 = vector.shape_cast %79 : vector<8x32xf32> to vector<8x1x32xf32>
    %81 = tpu.reciprocal %80 {approx = true} : vector<8x1x32xf32> -> vector<8x1x32xf32>
    %82 = vector.broadcast %81 : vector<8x1x32xf32> to vector<8x8x32xf32>
    %83 = arith.mulf %78, %82 : vector<8x8x32xf32>
    %84 = vector.shape_cast %63 : vector<8x32xf32> to vector<1x8x32xf32>
    %85 = vector.broadcast %84 : vector<1x8x32xf32> to vector<8x8x32xf32>
    %86 = arith.mulf %83, %85 : vector<8x8x32xf32>
    %cst_43 = arith.constant dense<0.000000e+00> : vector<8x32xf32>
    %87 = vector.multi_reduction <add>, %86, %cst_43 [1] : vector<8x8x32xf32> to vector<8x32xf32>
    %88 = tpu.concatenate %60, %87 in 0 : vector<8x32xf32>, vector<8x32xf32> -> vector<16x32xf32>
    %89 = arith.truncf %88 : vector<16x32xf32> to vector<16x32xbf16>
    %c0_44 = arith.constant 0 : index
    %c0_45 = arith.constant 0 : index
    %c0_46 = arith.constant 0 : index
    %90 = vector.load %arg12[%c0_44, %c0_45, %c0_46] : memref<1x32x32xbf16, #tpu.memory_space<vmem>>, vector<1x32x32xbf16>
    %91 = vector.shape_cast %90 : vector<1x32x32xbf16> to vector<32x32xbf16>
    %cst_47 = arith.constant dense<0.000000e+00> : vector<16x32xf32>
    %92 = tpu.matmul %89, %91, %cst_47 {dimension_numbers = #tpu.dot_dimension_numbers<[1], [0], [0], [1], [0, 0, 1, 1], [], []>} : vector<16x32xbf16>, vector<32x32xbf16>, vector<16x32xf32> -> vector<16x32xf32>
    %c0_48 = arith.constant 0 : index
    %c0_49 = arith.constant 0 : index
    %c0_50 = arith.constant 0 : index
    %93 = vector.load %arg13[%c0_48, %c0_49, %c0_50] : memref<1x1x32xf32, #tpu.memory_space<vmem>>, vector<1x1x32xf32>
    %94 = vector.shape_cast %93 : vector<1x1x32xf32> to vector<1x32xf32>
    %95 = vector.broadcast %94 : vector<1x32xf32> to vector<16x32xf32>
    %96 = arith.addf %92, %95 : vector<16x32xf32>
    %97 = arith.addf %3, %96 : vector<16x32xf32>
    %cst_51 = arith.constant dense<0.000000e+00> : vector<16xf32>
    %98 = vector.multi_reduction <add>, %97, %cst_51 [1] : vector<16x32xf32> to vector<16xf32>
    %99 = vector.shape_cast %98 : vector<16xf32> to vector<16x1xf32>
    %cst_52 = arith.constant 3.200000e+01 : f32
    %100 = vector.broadcast %cst_52 : f32 to vector<16x1xf32>
    %101 = arith.divf %99, %100 : vector<16x1xf32>
    %102 = vector.broadcast %101 : vector<16x1xf32> to vector<16x32xf32>
    %103 = arith.subf %97, %102 : vector<16x32xf32>
    %104 = arith.mulf %103, %103 : vector<16x32xf32>
    %cst_53 = arith.constant dense<0.000000e+00> : vector<16xf32>
    %105 = vector.multi_reduction <add>, %104, %cst_53 [1] : vector<16x32xf32> to vector<16xf32>
    %106 = vector.shape_cast %105 : vector<16xf32> to vector<16x1xf32>
    %cst_54 = arith.constant 3.200000e+01 : f32
    %107 = vector.broadcast %cst_54 : f32 to vector<16x1xf32>
    %108 = arith.divf %106, %107 : vector<16x1xf32>
    %109 = vector.broadcast %101 : vector<16x1xf32> to vector<16x32xf32>
    %110 = arith.subf %97, %109 : vector<16x32xf32>
    %cst_55 = arith.constant 9.99999997E-7 : f32
    %111 = vector.broadcast %cst_55 : f32 to vector<16x1xf32>
    %112 = arith.addf %108, %111 : vector<16x1xf32>
    %113 = math.rsqrt %112 : vector<16x1xf32>
    %114 = vector.broadcast %113 : vector<16x1xf32> to vector<16x32xf32>
    %115 = arith.mulf %110, %114 : vector<16x32xf32>
    %c0_56 = arith.constant 0 : index
    %c0_57 = arith.constant 0 : index
    %c0_58 = arith.constant 0 : index
    %116 = vector.load %arg14[%c0_56, %c0_57, %c0_58] : memref<1x1x32xf32, #tpu.memory_space<vmem>>, vector<1x1x32xf32>
    %117 = vector.shape_cast %116 : vector<1x1x32xf32> to vector<1x32xf32>
    %118 = vector.broadcast %117 : vector<1x32xf32> to vector<16x32xf32>
    %119 = arith.mulf %115, %118 : vector<16x32xf32>
    %c0_59 = arith.constant 0 : index
    %c0_60 = arith.constant 0 : index
    %c0_61 = arith.constant 0 : index
    %120 = vector.load %arg15[%c0_59, %c0_60, %c0_61] : memref<1x1x32xf32, #tpu.memory_space<vmem>>, vector<1x1x32xf32>
    %121 = vector.shape_cast %120 : vector<1x1x32xf32> to vector<1x32xf32>
    %122 = vector.broadcast %121 : vector<1x32xf32> to vector<16x32xf32>
    %123 = arith.addf %119, %122 : vector<16x32xf32>
    %124 = arith.truncf %123 : vector<16x32xf32> to vector<16x32xbf16>
    %c0_62 = arith.constant 0 : index
    %c0_63 = arith.constant 0 : index
    %c0_64 = arith.constant 0 : index
    %125 = vector.load %arg16[%c0_62, %c0_63, %c0_64] : memref<1x32x64xbf16, #tpu.memory_space<vmem>>, vector<1x32x64xbf16>
    %126 = vector.shape_cast %125 : vector<1x32x64xbf16> to vector<32x64xbf16>
    %cst_65 = arith.constant dense<0.000000e+00> : vector<16x64xf32>
    %127 = tpu.matmul %124, %126, %cst_65 {dimension_numbers = #tpu.dot_dimension_numbers<[1], [0], [0], [1], [0, 0, 1, 1], [], []>} : vector<16x32xbf16>, vector<32x64xbf16>, vector<16x64xf32> -> vector<16x64xf32>
    %c0_66 = arith.constant 0 : index
    %c0_67 = arith.constant 0 : index
    %c0_68 = arith.constant 0 : index
    %128 = vector.load %arg17[%c0_66, %c0_67, %c0_68] : memref<1x1x64xf32, #tpu.memory_space<vmem>>, vector<1x1x64xf32>
    %129 = vector.shape_cast %128 : vector<1x1x64xf32> to vector<1x64xf32>
    %130 = vector.broadcast %129 : vector<1x64xf32> to vector<16x64xf32>
    %131 = arith.addf %127, %130 : vector<16x64xf32>
    %cst_69 = arith.constant 0.000000e+00 : f32
    %132 = vector.broadcast %cst_69 : f32 to vector<16x64xf32>
    %133 = arith.maximumf %131, %132 : vector<16x64xf32>
    %134 = arith.truncf %133 : vector<16x64xf32> to vector<16x64xbf16>
    %c0_70 = arith.constant 0 : index
    %c0_71 = arith.constant 0 : index
    %c0_72 = arith.constant 0 : index
    %135 = vector.load %arg18[%c0_70, %c0_71, %c0_72] : memref<1x64x32xbf16, #tpu.memory_space<vmem>>, vector<1x64x32xbf16>
    %136 = vector.shape_cast %135 : vector<1x64x32xbf16> to vector<64x32xbf16>
    %cst_73 = arith.constant dense<0.000000e+00> : vector<16x32xf32>
    %137 = tpu.matmul %134, %136, %cst_73 {dimension_numbers = #tpu.dot_dimension_numbers<[1], [0], [0], [1], [0, 0, 1, 1], [], []>} : vector<16x64xbf16>, vector<64x32xbf16>, vector<16x32xf32> -> vector<16x32xf32>
    %c0_74 = arith.constant 0 : index
    %c0_75 = arith.constant 0 : index
    %c0_76 = arith.constant 0 : index
    %138 = vector.load %arg19[%c0_74, %c0_75, %c0_76] : memref<1x1x32xf32, #tpu.memory_space<vmem>>, vector<1x1x32xf32>
    %139 = vector.shape_cast %138 : vector<1x1x32xf32> to vector<1x32xf32>
    %140 = vector.broadcast %139 : vector<1x32xf32> to vector<16x32xf32>
    %141 = arith.addf %137, %140 : vector<16x32xf32>
    %142 = arith.addf %123, %141 : vector<16x32xf32>
    %cst_77 = arith.constant dense<0.000000e+00> : vector<16xf32>
    %143 = vector.multi_reduction <add>, %142, %cst_77 [1] : vector<16x32xf32> to vector<16xf32>
    %144 = vector.shape_cast %143 : vector<16xf32> to vector<16x1xf32>
    %cst_78 = arith.constant 3.200000e+01 : f32
    %145 = vector.broadcast %cst_78 : f32 to vector<16x1xf32>
    %146 = arith.divf %144, %145 : vector<16x1xf32>
    %147 = vector.broadcast %146 : vector<16x1xf32> to vector<16x32xf32>
    %148 = arith.subf %142, %147 : vector<16x32xf32>
    %149 = arith.mulf %148, %148 : vector<16x32xf32>
    %cst_79 = arith.constant dense<0.000000e+00> : vector<16xf32>
    %150 = vector.multi_reduction <add>, %149, %cst_79 [1] : vector<16x32xf32> to vector<16xf32>
    %151 = vector.shape_cast %150 : vector<16xf32> to vector<16x1xf32>
    %cst_80 = arith.constant 3.200000e+01 : f32
    %152 = vector.broadcast %cst_80 : f32 to vector<16x1xf32>
    %153 = arith.divf %151, %152 : vector<16x1xf32>
    %154 = vector.broadcast %146 : vector<16x1xf32> to vector<16x32xf32>
    %155 = arith.subf %142, %154 : vector<16x32xf32>
    %cst_81 = arith.constant 9.99999997E-7 : f32
    %156 = vector.broadcast %cst_81 : f32 to vector<16x1xf32>
    %157 = arith.addf %153, %156 : vector<16x1xf32>
    %158 = math.rsqrt %157 : vector<16x1xf32>
    %159 = vector.broadcast %158 : vector<16x1xf32> to vector<16x32xf32>
    %160 = arith.mulf %155, %159 : vector<16x32xf32>
    %c0_82 = arith.constant 0 : index
    %c0_83 = arith.constant 0 : index
    %c0_84 = arith.constant 0 : index
    %161 = vector.load %arg20[%c0_82, %c0_83, %c0_84] : memref<1x1x32xf32, #tpu.memory_space<vmem>>, vector<1x1x32xf32>
    %162 = vector.shape_cast %161 : vector<1x1x32xf32> to vector<1x32xf32>
    %163 = vector.broadcast %162 : vector<1x32xf32> to vector<16x32xf32>
    %164 = arith.mulf %160, %163 : vector<16x32xf32>
    %c0_85 = arith.constant 0 : index
    %c0_86 = arith.constant 0 : index
    %c0_87 = arith.constant 0 : index
    %165 = vector.load %arg21[%c0_85, %c0_86, %c0_87] : memref<1x1x32xf32, #tpu.memory_space<vmem>>, vector<1x1x32xf32>
    %166 = vector.shape_cast %165 : vector<1x1x32xf32> to vector<1x32xf32>
    %167 = vector.broadcast %166 : vector<1x32xf32> to vector<16x32xf32>
    %168 = arith.addf %164, %167 : vector<16x32xf32>
    %c0_88 = arith.constant 0 : index
    %c0_89 = arith.constant 0 : index
    %169 = vector.load %arg23[%c0_88, %c0_89] : memref<16x32xf32, #tpu.memory_space<vmem>>, vector<16x32xf32>
    tpu.vector_store %arg23[%c0_88, %c0_89], %168 {strides = array<i32>} : memref<16x32xf32, #tpu.memory_space<vmem>>, vector<16x32xf32>,
    %c1_i32 = arith.constant 1 : i32
    %170 = arith.cmpi eq, %arg0, %c1_i32 : i32
    %171 = arith.extui %170 : i1 to i32
    %c0_i32_90 = arith.constant 0 : i32
    %172 = arith.cmpi ne, %171, %c0_i32_90 : i32
    scf.if %172 {
      %c0_91 = arith.constant 0 : index
      %c0_92 = arith.constant 0 : index
      %173 = vector.load %arg22[%c0_91, %c0_92] : memref<16x32xf32, #tpu.memory_space<vmem>>, vector<16x32xf32>
      tpu.vector_store %arg22[%c0_91, %c0_92], %168 {strides = array<i32>} : memref<16x32xf32, #tpu.memory_space<vmem>>, vector<16x32xf32>,
    } else {
    }
    return
  }
  func.func @transform_0(%arg0: i32) -> (i32, i32) {
    %c0_i32 = arith.constant 0 : i32
    %c0_i32_0 = arith.constant 0 : i32
    %c0_i32_1 = arith.constant 0 : i32
    return %c0_i32, %c0_i32_0 : i32, i32
  }
  func.func @transform_1(%arg0: i32) -> (i32, i32, i32) {
    %c0_i32 = arith.constant 0 : i32
    %c0_i32_0 = arith.constant 0 : i32
    %c0_i32_1 = arith.constant 0 : i32
    %c0_i32_2 = arith.constant 0 : i32
    return %c0_i32, %c0_i32_0, %c0_i32_1 : i32, i32, i32
  }
  func.func @transform_2(%arg0: i32) -> (i32, i32) {
    %c0_i32 = arith.constant 0 : i32
    %c0_i32_0 = arith.constant 0 : i32
    %c0_i32_1 = arith.constant 0 : i32
    return %c0_i32, %c0_i32_0 : i32, i32
  }
  func.func @transform_3(%arg0: i32) -> (i32, i32) {
    %c0_i32 = arith.constant 0 : i32
    %c0_i32_0 = arith.constant 0 : i32
    %c0_i32_1 = arith.constant 0 : i32
    return %c0_i32, %c0_i32_0 : i32, i32
  }
  func.func @transform_4(%arg0: i32) -> (i32, i32) {
    %c0_i32 = arith.constant 0 : i32
    %c0_i32_0 = arith.constant 0 : i32
    %c0_i32_1 = arith.constant 0 : i32
    return %c0_i32, %c0_i32_0 : i32, i32
  }
  func.func @transform_5(%arg0: i32) -> (i32, i32, i32) {
    %c0_i32 = arith.constant 0 : i32
    %c0_i32_0 = arith.constant 0 : i32
    %c0_i32_1 = arith.constant 0 : i32
    return %arg0, %c0_i32, %c0_i32_0 : i32, i32, i32
  }
  func.func @transform_6(%arg0: i32) -> (i32, i32, i32) {
    %c0_i32 = arith.constant 0 : i32
    %c0_i32_0 = arith.constant 0 : i32
    %c0_i32_1 = arith.constant 0 : i32
    return %arg0, %c0_i32, %c0_i32_0 : i32, i32, i32
  }
  func.func @transform_7(%arg0: i32) -> (i32, i32, i32) {
    %c0_i32 = arith.constant 0 : i32
    %c0_i32_0 = arith.constant 0 : i32
    %c0_i32_1 = arith.constant 0 : i32
    return %arg0, %c0_i32, %c0_i32_0 : i32, i32, i32
  }
  func.func @transform_8(%arg0: i32) -> (i32, i32, i32) {
    %c0_i32 = arith.constant 0 : i32
    %c0_i32_0 = arith.constant 0 : i32
    %c0_i32_1 = arith.constant 0 : i32
    return %arg0, %c0_i32, %c0_i32_0 : i32, i32, i32
  }
  func.func @transform_9(%arg0: i32) -> (i32, i32, i32) {
    %c0_i32 = arith.constant 0 : i32
    %c0_i32_0 = arith.constant 0 : i32
    %c0_i32_1 = arith.constant 0 : i32
    return %arg0, %c0_i32, %c0_i32_0 : i32, i32, i32
  }
  func.func @transform_10(%arg0: i32) -> (i32, i32, i32) {
    %c0_i32 = arith.constant 0 : i32
    %c0_i32_0 = arith.constant 0 : i32
    %c0_i32_1 = arith.constant 0 : i32
    return %arg0, %c0_i32, %c0_i32_0 : i32, i32, i32
  }
  func.func @transform_11(%arg0: i32) -> (i32, i32, i32) {
    %c0_i32 = arith.constant 0 : i32
    %c0_i32_0 = arith.constant 0 : i32
    %c0_i32_1 = arith.constant 0 : i32
    return %arg0, %c0_i32, %c0_i32_0 : i32, i32, i32
  }
  func.func @transform_12(%arg0: i32) -> (i32, i32, i32) {
    %c0_i32 = arith.constant 0 : i32
    %c0_i32_0 = arith.constant 0 : i32
    %c0_i32_1 = arith.constant 0 : i32
    return %arg0, %c0_i32, %c0_i32_0 : i32, i32, i32
  }
  func.func @transform_13(%arg0: i32) -> (i32, i32, i32) {
    %c0_i32 = arith.constant 0 : i32
    %c0_i32_0 = arith.constant 0 : i32
    %c0_i32_1 = arith.constant 0 : i32
    return %arg0, %c0_i32, %c0_i32_0 : i32, i32, i32
  }
  func.func @transform_14(%arg0: i32) -> (i32, i32, i32) {
    %c0_i32 = arith.constant 0 : i32
    %c0_i32_0 = arith.constant 0 : i32
    %c0_i32_1 = arith.constant 0 : i32
    return %arg0, %c0_i32, %c0_i32_0 : i32, i32, i32
  }
  func.func @transform_15(%arg0: i32) -> (i32, i32, i32) {
    %c0_i32 = arith.constant 0 : i32
    %c0_i32_0 = arith.constant 0 : i32
    %c0_i32_1 = arith.constant 0 : i32
    return %arg0, %c0_i32, %c0_i32_0 : i32, i32, i32
  }
  func.func @transform_16(%arg0: i32) -> (i32, i32, i32) {
    %c0_i32 = arith.constant 0 : i32
    %c0_i32_0 = arith.constant 0 : i32
    %c0_i32_1 = arith.constant 0 : i32
    return %arg0, %c0_i32, %c0_i32_0 : i32, i32, i32
  }
  func.func @transform_17(%arg0: i32) -> (i32, i32, i32) {
    %c0_i32 = arith.constant 0 : i32
    %c0_i32_0 = arith.constant 0 : i32
    %c0_i32_1 = arith.constant 0 : i32
    return %arg0, %c0_i32, %c0_i32_0 : i32, i32, i32
  }
  func.func @transform_18(%arg0: i32) -> (i32, i32, i32) {
    %c0_i32 = arith.constant 0 : i32
    %c0_i32_0 = arith.constant 0 : i32
    %c0_i32_1 = arith.constant 0 : i32
    return %arg0, %c0_i32, %c0_i32_0 : i32, i32, i32
  }
  func.func @transform_19(%arg0: i32) -> (i32, i32, i32) {
    %c0_i32 = arith.constant 0 : i32
    %c0_i32_0 = arith.constant 0 : i32
    %c0_i32_1 = arith.constant 0 : i32
    return %arg0, %c0_i32, %c0_i32_0 : i32, i32, i32
  }
  func.func @transform_20(%arg0: i32) -> (i32, i32, i32) {
    %c0_i32 = arith.constant 0 : i32
    %c0_i32_0 = arith.constant 0 : i32
    %c0_i32_1 = arith.constant 0 : i32
    return %arg0, %c0_i32, %c0_i32_0 : i32, i32, i32
  }
  func.func @transform_21(%arg0: i32) -> (i32, i32) {
    %c0_i32 = arith.constant 0 : i32
    %c0_i32_0 = arith.constant 0 : i32
    %c0_i32_1 = arith.constant 0 : i32
    return %c0_i32, %c0_i32_0 : i32, i32
  }
}

</mosaic_0001>

<llo_original>
// kernel: tpu_custom_call.1
$region0: #{tpu_custom_call.1}
  #allocation0 [shape = 'u32[]', space=smem, size = 0x4, offset = 0x4, fixed_abs, tag = 'smem constant byte address 0x4 - core index']
  #allocation1 [shape = 'u32[144,128]{1,0:T(1,128)}', space=vmem, size = 0x12000, scoped, tag = 'internal scratch']
  #allocation2 [shape = 'f32[16,32]{1,0:T(8,128)}', space=vmem, size = 0x2000, scoped, tag = 'scratch operand']
  %s0 = inlined_call_operand.vmem [shape: f32[16,32], index: 0, kind: input, shape index: {}]
  %s1 = inlined_call_operand.vmem [shape: f32[2,8,1], index: 1, kind: input, shape index: {}]
  %s2 = inlined_call_operand.vmem [shape: f32[32,32], index: 2, kind: input, shape index: {}]
  %s3 = inlined_call_operand.vmem [shape: f32[64,8], index: 3, kind: input, shape index: {}]
  %s4 = inlined_call_operand.vmem [shape: f32[64,8], index: 4, kind: input, shape index: {}]
  %s5 = inlined_call_operand.vmem [shape: bf16[2,32,32], index: 5, kind: input, shape index: {}]
  %s6 = inlined_call_operand.vmem [shape: f32[2,1,32], index: 6, kind: input, shape index: {}]
  %s7 = inlined_call_operand.vmem [shape: bf16[2,32,32], index: 7, kind: input, shape index: {}]
  %s8 = inlined_call_operand.vmem [shape: f32[2,1,32], index: 8, kind: input, shape index: {}]
  %s9 = inlined_call_operand.vmem [shape: bf16[2,32,32], index: 9, kind: input, shape index: {}]
  %s10 = inlined_call_operand.vmem [shape: f32[2,1,32], index: 10, kind: input, shape index: {}]
  %s11 = inlined_call_operand.vmem [shape: bf16[2,32,32], index: 11, kind: input, shape index: {}]
  %s12 = inlined_call_operand.vmem [shape: f32[2,1,32], index: 12, kind: input, shape index: {}]
  %s13 = inlined_call_operand.vmem [shape: f32[2,1,32], index: 13, kind: input, shape index: {}]
  %s14 = inlined_call_operand.vmem [shape: f32[2,1,32], index: 14, kind: input, shape index: {}]
  %s15 = inlined_call_operand.vmem [shape: bf16[2,32,64], index: 15, kind: input, shape index: {}]
  %s16 = inlined_call_operand.vmem [shape: f32[2,1,64], index: 16, kind: input, shape index: {}]
  %s17 = inlined_call_operand.vmem [shape: bf16[2,64,32], index: 17, kind: input, shape index: {}]
  %s18 = inlined_call_operand.vmem [shape: f32[2,1,32], index: 18, kind: input, shape index: {}]
  %s19 = inlined_call_operand.vmem [shape: f32[2,1,32], index: 19, kind: input, shape index: {}]
  %s20 = inlined_call_operand.vmem [shape: f32[2,1,32], index: 20, kind: input, shape index: {}]
  %s21 = inlined_call_operand.hbm [shape: f32[16,32], index: 21, kind: output, shape index: {}]
  %s22 = sld [smem:[#allocation0]]
  $region125: #{tpu_custom_call.1} parent=0
    _
  %s24 = ssub.s32 1, %s22
  %s25 = scalar_select 0, %s24, %s22
  $region1: #{tpu_custom_call.1} parent=0
    #allocation3 [shape = 'u8[8192]{0}', space=vmem, size = 0x2000, scoped, tag = 'output window, operand 0, single buffered']
    #allocation4 [shape = 's32[2]{0}', space=sflag, size = 0x8, scoped, tag = 'scoped memory for tpu_custom_call.1']
    %26 = vsyncpa [#allocation4], 0
    loop: start=0, step=1, limit=4
    $region2: #{tpu_custom_call.1} parent=1 // loop_pre_header
      _
    $region3: #{tpu_custom_call.1} parent=1 // loop_header
      %s28 = sphi 0, %s32
      %p29 = scmp.ge.s32.totalorder %s28, 4
      %s36 = sphi 0, %s36
      %s38 = sphi 0, %s36
      %s39 = sphi 0, %s38
      %s53 = sphi 0, %s39
      %s57 = sphi 0, %s57
      %s59 = sphi 0, %s57
      %s60 = sphi 0, %s59
      %s74 = sphi 0, %s60
      %s78 = sphi 0, %s78
      %s80 = sphi 0, %s78
      %s81 = sphi 0, %s80
      %s95 = sphi 0, %s81
      %s99 = sphi 0, %s99
      %s101 = sphi 0, %s99
      %s102 = sphi 0, %s101
      %s116 = sphi 0, %s102
      %s120 = sphi 0, %s120
      %s122 = sphi 0, %s120
      %s123 = sphi 0, %s122
      %s137 = sphi 0, %s123
      %s143 = sphi 0, %s145
      %s146 = sphi 0, %s143
      %s147 = sphi 0, %s146
      %s163 = sphi 0, %s147
      %s169 = sphi 0, %s171
      %s172 = sphi 0, %s169
      %s173 = sphi 0, %s172
      %s189 = sphi 0, %s173
      %s195 = sphi 0, %s197
      %s198 = sphi 0, %s195
      %s199 = sphi 0, %s198
      %s215 = sphi 0, %s199
      %s221 = sphi 0, %s223
      %s224 = sphi 0, %s221
      %s225 = sphi 0, %s224
      %s241 = sphi 0, %s225
      %s247 = sphi 0, %s249
      %s250 = sphi 0, %s247
      %s251 = sphi 0, %s250
      %s267 = sphi 0, %s251
      %s273 = sphi 0, %s275
      %s276 = sphi 0, %s273
      %s277 = sphi 0, %s276
      %s293 = sphi 0, %s277
      %s299 = sphi 0, %s301
      %s302 = sphi 0, %s299
      %s303 = sphi 0, %s302
      %s319 = sphi 0, %s303
      %s325 = sphi 0, %s327
      %s328 = sphi 0, %s325
      %s329 = sphi 0, %s328
      %s345 = sphi 0, %s329
      %s351 = sphi 0, %s353
      %s354 = sphi 0, %s351
      %s355 = sphi 0, %s354
      %s371 = sphi 0, %s355
      %s377 = sphi 0, %s379
      %s380 = sphi 0, %s377
      %s381 = sphi 0, %s380
      %s397 = sphi 0, %s381
      %s403 = sphi 0, %s405
      %s406 = sphi 0, %s403
      %s407 = sphi 0, %s406
      %s423 = sphi 0, %s407
      %s429 = sphi 0, %s431
      %s432 = sphi 0, %s429
      %s433 = sphi 0, %s432
      %s449 = sphi 0, %s433
      %s455 = sphi 0, %s457
      %s458 = sphi 0, %s455
      %s459 = sphi 0, %s458
      %s475 = sphi 0, %s459
      %s481 = sphi 0, %s483
      %s484 = sphi 0, %s481
      %s485 = sphi 0, %s484
      %s501 = sphi 0, %s485
      %s507 = sphi 0, %s509
      %s510 = sphi 0, %s507
      %s511 = sphi 0, %s510
      %s527 = sphi 0, %s511
      %s533 = sphi 0, %s535
      %s536 = sphi 0, %s533
      %s537 = sphi 0, %s536
      %s553 = sphi 0, %s537
      %s557 = sphi 0, %s557
      %s559 = sphi 0, %s557
      %s560 = sphi 0, %s559
      %s574 = sphi 0, %s560
    $region4: #{tpu_custom_call.1} parent=1 // loop_header_branch
      %31 = sbr.rel (%p29) target = $region8
    $region5: #{tpu_custom_call.1} parent=1 // loop_body
      %s33 = ssub.s32 %s28, 1
      %s34 = ssub.s32 %s28, 2
      %s35 = sadd.s32 %s28, 1
      %s37 = sadd.s32 %s36, 1
      %p40 = scmp.eq.s32.totalorder %s28, 1
      %p41 = scmp.ne.s32.totalorder %s36, %s38
      %p42 = scmp.eq.s32.totalorder %s28, 0
      %p43 = por %p41, %p42
      %p44 = scmp.ne.s32.totalorder %s36, %s38
      %p45 = scmp.eq.s32.totalorder %s33, 1
      %p46 = por %p44, %p45
      %p47 = scmp.ne.s32.totalorder %s38, %s39
      %p48 = scmp.eq.s32.totalorder %s33, 0
      %p49 = por %p47, %p48
      %p50 = scmp.ne.s32.totalorder %s38, %s39
      %p51 = scmp.eq.s32.totalorder %s34, 1
      %p52 = por %p50, %p51
      %p54 = scmp.ne.s32.totalorder %s39, %s53
      %p55 = scmp.eq.s32.totalorder %s34, 0
      %p56 = por %p54, %p55
      %s58 = sadd.s32 %s57, 1
      %p61 = scmp.eq.s32.totalorder %s28, 1
      %p62 = scmp.ne.s32.totalorder %s57, %s59
      %p63 = scmp.eq.s32.totalorder %s28, 0
      %p64 = por %p62, %p63
      %p65 = scmp.ne.s32.totalorder %s57, %s59
      %p66 = scmp.eq.s32.totalorder %s33, 1
      %p67 = por %p65, %p66
      %p68 = scmp.ne.s32.totalorder %s59, %s60
      %p69 = scmp.eq.s32.totalorder %s33, 0
      %p70 = por %p68, %p69
      %p71 = scmp.ne.s32.totalorder %s59, %s60
      %p72 = scmp.eq.s32.totalorder %s34, 1
      %p73 = por %p71, %p72
      %p75 = scmp.ne.s32.totalorder %s60, %s74
      %p76 = scmp.eq.s32.totalorder %s34, 0
      %p77 = por %p75, %p76
      %s79 = sadd.s32 %s78, 1
      %p82 = scmp.eq.s32.totalorder %s28, 1
      %p83 = scmp.ne.s32.totalorder %s78, %s80
      %p84 = scmp.eq.s32.totalorder %s28, 0
      %p85 = por %p83, %p84
      %p86 = scmp.ne.s32.totalorder %s78, %s80
      %p87 = scmp.eq.s32.totalorder %s33, 1
      %p88 = por %p86, %p87
      %p89 = scmp.ne.s32.totalorder %s80, %s81
      %p90 = scmp.eq.s32.totalorder %s33, 0
      %p91 = por %p89, %p90
      %p92 = scmp.ne.s32.totalorder %s80, %s81
      %p93 = scmp.eq.s32.totalorder %s34, 1
      %p94 = por %p92, %p93
      %p96 = scmp.ne.s32.totalorder %s81, %s95
      %p97 = scmp.eq.s32.totalorder %s34, 0
      %p98 = por %p96, %p97
      %s100 = sadd.s32 %s99, 1
      %p103 = scmp.eq.s32.totalorder %s28, 1
      %p104 = scmp.ne.s32.totalorder %s99, %s101
      %p105 = scmp.eq.s32.totalorder %s28, 0
      %p106 = por %p104, %p105
      %p107 = scmp.ne.s32.totalorder %s99, %s101
      %p108 = scmp.eq.s32.totalorder %s33, 1
      %p109 = por %p107, %p108
      %p110 = scmp.ne.s32.totalorder %s101, %s102
      %p111 = scmp.eq.s32.totalorder %s33, 0
      %p112 = por %p110, %p111
      %p113 = scmp.ne.s32.totalorder %s101, %s102
      %p114 = scmp.eq.s32.totalorder %s34, 1
      %p115 = por %p113, %p114
      %p117 = scmp.ne.s32.totalorder %s102, %s116
      %p118 = scmp.eq.s32.totalorder %s34, 0
      %p119 = por %p117, %p118
      %s121 = sadd.s32 %s120, 1
      %p124 = scmp.eq.s32.totalorder %s28, 1
      %p125 = scmp.ne.s32.totalorder %s120, %s122
      %p126 = scmp.eq.s32.totalorder %s28, 0
      %p127 = por %p125, %p126
      %p128 = scmp.ne.s32.totalorder %s120, %s122
      %p129 = scmp.eq.s32.totalorder %s33, 1
      %p130 = por %p128, %p129
      %p131 = scmp.ne.s32.totalorder %s122, %s123
      %p132 = scmp.eq.s32.totalorder %s33, 0
      %p133 = por %p131, %p132
      %p134 = scmp.ne.s32.totalorder %s122, %s123
      %p135 = scmp.eq.s32.totalorder %s34, 1
      %p136 = por %p134, %p135
      %p138 = scmp.ne.s32.totalorder %s123, %s137
      %p139 = scmp.eq.s32.totalorder %s34, 0
      %p140 = por %p138, %p139
      %s141 = ssub.s32 %s28, %s35
      %p142 = scmp.eq.s32.totalorder %s141, 0
      %s144 = sadd.s32 %s143, 1
      %s145 = scalar_select %p142, %s143, %s144
      %p148 = pneg %p142
      %p149 = scmp.eq.s32.totalorder %s28, 1
      %p150 = por %p148, %p149
      %p151 = scmp.ne.s32.totalorder %s143, %s146
      %p152 = scmp.eq.s32.totalorder %s28, 0
      %p153 = por %p151, %p152
      %p154 = scmp.ne.s32.totalorder %s143, %s146
      %p155 = scmp.eq.s32.totalorder %s33, 1
      %p156 = por %p154, %p155
      %p157 = scmp.ne.s32.totalorder %s146, %s147
      %p158 = scmp.eq.s32.totalorder %s33, 0
      %p159 = por %p157, %p158
      %p160 = scmp.ne.s32.totalorder %s146, %s147
      %p161 = scmp.eq.s32.totalorder %s34, 1
      %p162 = por %p160, %p161
      %p164 = scmp.ne.s32.totalorder %s147, %s163
      %p165 = scmp.eq.s32.totalorder %s34, 0
      %p166 = por %p164, %p165
      %s167 = ssub.s32 %s28, %s35
      %p168 = scmp.eq.s32.totalorder %s167, 0
      %s170 = sadd.s32 %s169, 1
      %s171 = scalar_select %p168, %s169, %s170
      %p174 = pneg %p168
      %p175 = scmp.eq.s32.totalorder %s28, 1
      %p176 = por %p174, %p175
      %p177 = scmp.ne.s32.totalorder %s169, %s172
      %p178 = scmp.eq.s32.totalorder %s28, 0
      %p179 = por %p177, %p178
      %p180 = scmp.ne.s32.totalorder %s169, %s172
      %p181 = scmp.eq.s32.totalorder %s33, 1
      %p182 = por %p180, %p181
      %p183 = scmp.ne.s32.totalorder %s172, %s173
      %p184 = scmp.eq.s32.totalorder %s33, 0
      %p185 = por %p183, %p184
      %p186 = scmp.ne.s32.totalorder %s172, %s173
      %p187 = scmp.eq.s32.totalorder %s34, 1
      %p188 = por %p186, %p187
      %p190 = scmp.ne.s32.totalorder %s173, %s189
      %p191 = scmp.eq.s32.totalorder %s34, 0
      %p192 = por %p190, %p191
      %s193 = ssub.s32 %s28, %s35
      %p194 = scmp.eq.s32.totalorder %s193, 0
      %s196 = sadd.s32 %s195, 1
      %s197 = scalar_select %p194, %s195, %s196
      %p200 = pneg %p194
      %p201 = scmp.eq.s32.totalorder %s28, 1
      %p202 = por %p200, %p201
      %p203 = scmp.ne.s32.totalorder %s195, %s198
      %p204 = scmp.eq.s32.totalorder %s28, 0
      %p205 = por %p203, %p204
      %p206 = scmp.ne.s32.totalorder %s195, %s198
      %p207 = scmp.eq.s32.totalorder %s33, 1
      %p208 = por %p206, %p207
      %p209 = scmp.ne.s32.totalorder %s198, %s199
      %p210 = scmp.eq.s32.totalorder %s33, 0
      %p211 = por %p209, %p210
      %p212 = scmp.ne.s32.totalorder %s198, %s199
      %p213 = scmp.eq.s32.totalorder %s34, 1
      %p214 = por %p212, %p213
      %p216 = scmp.ne.s32.totalorder %s199, %s215
      %p217 = scmp.eq.s32.totalorder %s34, 0
      %p218 = por %p216, %p217
      %s219 = ssub.s32 %s28, %s35
      %p220 = scmp.eq.s32.totalorder %s219, 0
      %s222 = sadd.s32 %s221, 1
      %s223 = scalar_select %p220, %s221, %s222
      %p226 = pneg %p220
      %p227 = scmp.eq.s32.totalorder %s28, 1
      %p228 = por %p226, %p227
      %p229 = scmp.ne.s32.totalorder %s221, %s224
      %p230 = scmp.eq.s32.totalorder %s28, 0
      %p231 = por %p229, %p230
      %p232 = scmp.ne.s32.totalorder %s221, %s224
      %p233 = scmp.eq.s32.totalorder %s33, 1
      %p234 = por %p232, %p233
      %p235 = scmp.ne.s32.totalorder %s224, %s225
      %p236 = scmp.eq.s32.totalorder %s33, 0
      %p237 = por %p235, %p236
      %p238 = scmp.ne.s32.totalorder %s224, %s225
      %p239 = scmp.eq.s32.totalorder %s34, 1
      %p240 = por %p238, %p239
      %p242 = scmp.ne.s32.totalorder %s225, %s241
      %p243 = scmp.eq.s32.totalorder %s34, 0
      %p244 = por %p242, %p243
      %s245 = ssub.s32 %s28, %s35
      %p246 = scmp.eq.s32.totalorder %s245, 0
      %s248 = sadd.s32 %s247, 1
      %s249 = scalar_select %p246, %s247, %s248
      %p252 = pneg %p246
      %p253 = scmp.eq.s32.totalorder %s28, 1
      %p254 = por %p252, %p253
      %p255 = scmp.ne.s32.totalorder %s247, %s250
      %p256 = scmp.eq.s32.totalorder %s28, 0
      %p257 = por %p255, %p256
      %p258 = scmp.ne.s32.totalorder %s247, %s250
      %p259 = scmp.eq.s32.totalorder %s33, 1
      %p260 = por %p258, %p259
      %p261 = scmp.ne.s32.totalorder %s250, %s251
      %p262 = scmp.eq.s32.totalorder %s33, 0
      %p263 = por %p261, %p262
      %p264 = scmp.ne.s32.totalorder %s250, %s251
      %p265 = scmp.eq.s32.totalorder %s34, 1
      %p266 = por %p264, %p265
      %p268 = scmp.ne.s32.totalorder %s251, %s267
      %p269 = scmp.eq.s32.totalorder %s34, 0
      %p270 = por %p268, %p269
      %s271 = ssub.s32 %s28, %s35
      %p272 = scmp.eq.s32.totalorder %s271, 0
      %s274 = sadd.s32 %s273, 1
      %s275 = scalar_select %p272, %s273, %s274
      %p278 = pneg %p272
      %p279 = scmp.eq.s32.totalorder %s28, 1
      %p280 = por %p278, %p279
      %p281 = scmp.ne.s32.totalorder %s273, %s276
      %p282 = scmp.eq.s32.totalorder %s28, 0
      %p283 = por %p281, %p282
      %p284 = scmp.ne.s32.totalorder %s273, %s276
      %p285 = scmp.eq.s32.totalorder %s33, 1
      %p286 = por %p284, %p285
      %p287 = scmp.ne.s32.totalorder %s276, %s277
      %p288 = scmp.eq.s32.totalorder %s33, 0
      %p289 = por %p287, %p288
      %p290 = scmp.ne.s32.totalorder %s276, %s277
      %p291 = scmp.eq.s32.totalorder %s34, 1
      %p292 = por %p290, %p291
      %p294 = scmp.ne.s32.totalorder %s277, %s293
      %p295 = scmp.eq.s32.totalorder %s34, 0
      %p296 = por %p294, %p295
      %s297 = ssub.s32 %s28, %s35
      %p298 = scmp.eq.s32.totalorder %s297, 0
      %s300 = sadd.s32 %s299, 1
      %s301 = scalar_select %p298, %s299, %s300
      %p304 = pneg %p298
      %p305 = scmp.eq.s32.totalorder %s28, 1
      %p306 = por %p304, %p305
      %p307 = scmp.ne.s32.totalorder %s299, %s302
      %p308 = scmp.eq.s32.totalorder %s28, 0
      %p309 = por %p307, %p308
      %p310 = scmp.ne.s32.totalorder %s299, %s302
      %p311 = scmp.eq.s32.totalorder %s33, 1
      %p312 = por %p310, %p311
      %p313 = scmp.ne.s32.totalorder %s302, %s303
      %p314 = scmp.eq.s32.totalorder %s33, 0
      %p315 = por %p313, %p314
      %p316 = scmp.ne.s32.totalorder %s302, %s303
      %p317 = scmp.eq.s32.totalorder %s34, 1
      %p318 = por %p316, %p317
      %p320 = scmp.ne.s32.totalorder %s303, %s319
      %p321 = scmp.eq.s32.totalorder %s34, 0
      %p322 = por %p320, %p321
      %s323 = ssub.s32 %s28, %s35
      %p324 = scmp.eq.s32.totalorder %s323, 0
      %s326 = sadd.s32 %s325, 1
      %s327 = scalar_select %p324, %s325, %s326
      %p330 = pneg %p324
      %p331 = scmp.eq.s32.totalorder %s28, 1
      %p332 = por %p330, %p331
      %p333 = scmp.ne.s32.totalorder %s325, %s328
      %p334 = scmp.eq.s32.totalorder %s28, 0
      %p335 = por %p333, %p334
      %p336 = scmp.ne.s32.totalorder %s325, %s328
      %p337 = scmp.eq.s32.totalorder %s33, 1
      %p338 = por %p336, %p337
      %p339 = scmp.ne.s32.totalorder %s328, %s329
      %p340 = scmp.eq.s32.totalorder %s33, 0
      %p341 = por %p339, %p340
      %p342 = scmp.ne.s32.totalorder %s328, %s329
      %p343 = scmp.eq.s32.totalorder %s34, 1
      %p344 = por %p342, %p343
      %p346 = scmp.ne.s32.totalorder %s329, %s345
      %p347 = scmp.eq.s32.totalorder %s34, 0
      %p348 = por %p346, %p347
      %s349 = ssub.s32 %s28, %s35
      %p350 = scmp.eq.s32.totalorder %s349, 0
      %s352 = sadd.s32 %s351, 1
      %s353 = scalar_select %p350, %s351, %s352
      %p356 = pneg %p350
      %p357 = scmp.eq.s32.totalorder %s28, 1
      %p358 = por %p356, %p357
      %p359 = scmp.ne.s32.totalorder %s351, %s354
      %p360 = scmp.eq.s32.totalorder %s28, 0
      %p361 = por %p359, %p360
      %p362 = scmp.ne.s32.totalorder %s351, %s354
      %p363 = scmp.eq.s32.totalorder %s33, 1
      %p364 = por %p362, %p363
      %p365 = scmp.ne.s32.totalorder %s354, %s355
      %p366 = scmp.eq.s32.totalorder %s33, 0
      %p367 = por %p365, %p366
      %p368 = scmp.ne.s32.totalorder %s354, %s355
      %p369 = scmp.eq.s32.totalorder %s34, 1
      %p370 = por %p368, %p369
      %p372 = scmp.ne.s32.totalorder %s355, %s371
      %p373 = scmp.eq.s32.totalorder %s34, 0
      %p374 = por %p372, %p373
      %s375 = ssub.s32 %s28, %s35
      %p376 = scmp.eq.s32.totalorder %s375, 0
      %s378 = sadd.s32 %s377, 1
      %s379 = scalar_select %p376, %s377, %s378
      %p382 = pneg %p376
      %p383 = scmp.eq.s32.totalorder %s28, 1
      %p384 = por %p382, %p383
      %p385 = scmp.ne.s32.totalorder %s377, %s380
      %p386 = scmp.eq.s32.totalorder %s28, 0
      %p387 = por %p385, %p386
      %p388 = scmp.ne.s32.totalorder %s377, %s380
      %p389 = scmp.eq.s32.totalorder %s33, 1
      %p390 = por %p388, %p389
      %p391 = scmp.ne.s32.totalorder %s380, %s381
      %p392 = scmp.eq.s32.totalorder %s33, 0
      %p393 = por %p391, %p392
      %p394 = scmp.ne.s32.totalorder %s380, %s381
      %p395 = scmp.eq.s32.totalorder %s34, 1
      %p396 = por %p394, %p395
      %p398 = scmp.ne.s32.totalorder %s381, %s397
      %p399 = scmp.eq.s32.totalorder %s34, 0
      %p400 = por %p398, %p399
      %s401 = ssub.s32 %s28, %s35
      %p402 = scmp.eq.s32.totalorder %s401, 0
      %s404 = sadd.s32 %s403, 1
      %s405 = scalar_select %p402, %s403, %s404
      %p408 = pneg %p402
      %p409 = scmp.eq.s32.totalorder %s28, 1
      %p410 = por %p408, %p409
      %p411 = scmp.ne.s32.totalorder %s403, %s406
      %p412 = scmp.eq.s32.totalorder %s28, 0
      %p413 = por %p411, %p412
      %p414 = scmp.ne.s32.totalorder %s403, %s406
      %p415 = scmp.eq.s32.totalorder %s33, 1
      %p416 = por %p414, %p415
      %p417 = scmp.ne.s32.totalorder %s406, %s407
      %p418 = scmp.eq.s32.totalorder %s33, 0
      %p419 = por %p417, %p418
      %p420 = scmp.ne.s32.totalorder %s406, %s407
      %p421 = scmp.eq.s32.totalorder %s34, 1
      %p422 = por %p420, %p421
      %p424 = scmp.ne.s32.totalorder %s407, %s423
      %p425 = scmp.eq.s32.totalorder %s34, 0
      %p426 = por %p424, %p425
      %s427 = ssub.s32 %s28, %s35
      %p428 = scmp.eq.s32.totalorder %s427, 0
      %s430 = sadd.s32 %s429, 1
      %s431 = scalar_select %p428, %s429, %s430
      %p434 = pneg %p428
      %p435 = scmp.eq.s32.totalorder %s28, 1
      %p436 = por %p434, %p435
      %p437 = scmp.ne.s32.totalorder %s429, %s432
      %p438 = scmp.eq.s32.totalorder %s28, 0
      %p439 = por %p437, %p438
      %p440 = scmp.ne.s32.totalorder %s429, %s432
      %p441 = scmp.eq.s32.totalorder %s33, 1
      %p442 = por %p440, %p441
      %p443 = scmp.ne.s32.totalorder %s432, %s433
      %p444 = scmp.eq.s32.totalorder %s33, 0
      %p445 = por %p443, %p444
      %p446 = scmp.ne.s32.totalorder %s432, %s433
      %p447 = scmp.eq.s32.totalorder %s34, 1
      %p448 = por %p446, %p447
      %p450 = scmp.ne.s32.totalorder %s433, %s449
      %p451 = scmp.eq.s32.totalorder %s34, 0
      %p452 = por %p450, %p451
      %s453 = ssub.s32 %s28, %s35
      %p454 = scmp.eq.s32.totalorder %s453, 0
      %s456 = sadd.s32 %s455, 1
      %s457 = scalar_select %p454, %s455, %s456
      %p460 = pneg %p454
      %p461 = scmp.eq.s32.totalorder %s28, 1
      %p462 = por %p460, %p461
      %p463 = scmp.ne.s32.totalorder %s455, %s458
      %p464 = scmp.eq.s32.totalorder %s28, 0
      %p465 = por %p463, %p464
      %p466 = scmp.ne.s32.totalorder %s455, %s458
      %p467 = scmp.eq.s32.totalorder %s33, 1
      %p468 = por %p466, %p467
      %p469 = scmp.ne.s32.totalorder %s458, %s459
      %p470 = scmp.eq.s32.totalorder %s33, 0
      %p471 = por %p469, %p470
      %p472 = scmp.ne.s32.totalorder %s458, %s459
      %p473 = scmp.eq.s32.totalorder %s34, 1
      %p474 = por %p472, %p473
      %p476 = scmp.ne.s32.totalorder %s459, %s475
      %p477 = scmp.eq.s32.totalorder %s34, 0
      %p478 = por %p476, %p477
      %s479 = ssub.s32 %s28, %s35
      %p480 = scmp.eq.s32.totalorder %s479, 0
      %s482 = sadd.s32 %s481, 1
      %s483 = scalar_select %p480, %s481, %s482
      %p486 = pneg %p480
      %p487 = scmp.eq.s32.totalorder %s28, 1
      %p488 = por %p486, %p487
      %p489 = scmp.ne.s32.totalorder %s481, %s484
      %p490 = scmp.eq.s32.totalorder %s28, 0
      %p491 = por %p489, %p490
      %p492 = scmp.ne.s32.totalorder %s481, %s484
      %p493 = scmp.eq.s32.totalorder %s33, 1
      %p494 = por %p492, %p493
      %p495 = scmp.ne.s32.totalorder %s484, %s485
      %p496 = scmp.eq.s32.totalorder %s33, 0
      %p497 = por %p495, %p496
      %p498 = scmp.ne.s32.totalorder %s484, %s485
      %p499 = scmp.eq.s32.totalorder %s34, 1
      %p500 = por %p498, %p499
      %p502 = scmp.ne.s32.totalorder %s485, %s501
      %p503 = scmp.eq.s32.totalorder %s34, 0
      %p504 = por %p502, %p503
      %s505 = ssub.s32 %s28, %s35
      %p506 = scmp.eq.s32.totalorder %s505, 0
      %s508 = sadd.s32 %s507, 1
      %s509 = scalar_select %p506, %s507, %s508
      %p512 = pneg %p506
      %p513 = scmp.eq.s32.totalorder %s28, 1
      %p514 = por %p512, %p513
      %p515 = scmp.ne.s32.totalorder %s507, %s510
      %p516 = scmp.eq.s32.totalorder %s28, 0
      %p517 = por %p515, %p516
      %p518 = scmp.ne.s32.totalorder %s507, %s510
      %p519 = scmp.eq.s32.totalorder %s33, 1
      %p520 = por %p518, %p519
      %p521 = scmp.ne.s32.totalorder %s510, %s511
      %p522 = scmp.eq.s32.totalorder %s33, 0
      %p523 = por %p521, %p522
      %p524 = scmp.ne.s32.totalorder %s510, %s511
      %p525 = scmp.eq.s32.totalorder %s34, 1
      %p526 = por %p524, %p525
      %p528 = scmp.ne.s32.totalorder %s511, %s527
      %p529 = scmp.eq.s32.totalorder %s34, 0
      %p530 = por %p528, %p529
      %s531 = ssub.s32 %s28, %s35
      %p532 = scmp.eq.s32.totalorder %s531, 0
      %s534 = sadd.s32 %s533, 1
      %s535 = scalar_select %p532, %s533, %s534
      %p538 = pneg %p532
      %p539 = scmp.eq.s32.totalorder %s28, 1
      %p540 = por %p538, %p539
      %p541 = scmp.ne.s32.totalorder %s533, %s536
      %p542 = scmp.eq.s32.totalorder %s28, 0
      %p543 = por %p541, %p542
      %p544 = scmp.ne.s32.totalorder %s533, %s536
      %p545 = scmp.eq.s32.totalorder %s33, 1
      %p546 = por %p544, %p545
      %p547 = scmp.ne.s32.totalorder %s536, %s537
      %p548 = scmp.eq.s32.totalorder %s33, 0
      %p549 = por %p547, %p548
      %p550 = scmp.ne.s32.totalorder %s536, %s537
      %p551 = scmp.eq.s32.totalorder %s34, 1
      %p552 = por %p550, %p551
      %p554 = scmp.ne.s32.totalorder %s537, %s553
      %p555 = scmp.eq.s32.totalorder %s34, 0
      %p556 = por %p554, %p555
      %s558 = sadd.s32 %s557, 1
      %p561 = scmp.eq.s32.totalorder %s28, 1
      %p562 = scmp.ne.s32.totalorder %s557, %s559
      %p563 = scmp.eq.s32.totalorder %s28, 0
      %p564 = por %p562, %p563
      %p565 = scmp.ne.s32.totalorder %s557, %s559
      %p566 = scmp.eq.s32.totalorder %s33, 1
      %p567 = por %p565, %p566
      %p568 = scmp.ne.s32.totalorder %s559, %s560
      %p569 = scmp.eq.s32.totalorder %s33, 0
      %p570 = por %p568, %p569
      %p571 = scmp.ne.s32.totalorder %s559, %s560
      %p572 = scmp.eq.s32.totalorder %s34, 1
      %p573 = por %p571, %p572
      %p575 = scmp.ne.s32.totalorder %s560, %s574
      %p576 = scmp.eq.s32.totalorder %s34, 0
      %p577 = por %p575, %p576
      %p578 = scmp.le.s32.totalorder 1, %s28
      %p579 = scmp.lt.s32.totalorder %s28, 3
      %p580 = pnand %p578, %p579
      %p581 = pneg %p580
      // Predicated region
      $region9: #{tpu_custom_call.1} parent=5 // pred_check
        _
      $region10: #{tpu_custom_call.1} parent=5 // pred_check_branch
        %583 = sbr.rel (%p580) target = $region12
      $region11: #{tpu_custom_call.1} parent=5 // pred_region
        %s584 = ssub.s32 %s28, 1
        // Predicated region
        $region13: #{tpu_custom_call.1} parent=11 // pred_check
          %p585 = pneg %p49
        $region14: #{tpu_custom_call.1} parent=11 // pred_check_branch
          %587 = sbr.rel (%p585) target = $region16
        $region15: #{tpu_custom_call.1} parent=11 // pred_region
          _
        $region16: #{tpu_custom_call.1} parent=11 // pred_fallthru
          _
        // Predicated region
        $region17: #{tpu_custom_call.1} parent=11 // pred_check
          %p588 = pneg %p70
        $region18: #{tpu_custom_call.1} parent=11 // pred_check_branch
          %590 = sbr.rel (%p588) target = $region20
        $region19: #{tpu_custom_call.1} parent=11 // pred_region
          _
        $region20: #{tpu_custom_call.1} parent=11 // pred_fallthru
          _
        // Predicated region
        $region21: #{tpu_custom_call.1} parent=11 // pred_check
          %p591 = pneg %p91
        $region22: #{tpu_custom_call.1} parent=11 // pred_check_branch
          %593 = sbr.rel (%p591) target = $region24
        $region23: #{tpu_custom_call.1} parent=11 // pred_region
          _
        $region24: #{tpu_custom_call.1} parent=11 // pred_fallthru
          _
        // Predicated region
        $region25: #{tpu_custom_call.1} parent=11 // pred_check
          %p594 = pneg %p112
        $region26: #{tpu_custom_call.1} parent=11 // pred_check_branch
          %596 = sbr.rel (%p594) target = $region28
        $region27: #{tpu_custom_call.1} parent=11 // pred_region
          _
        $region28: #{tpu_custom_call.1} parent=11 // pred_fallthru
          _
        // Predicated region
        $region29: #{tpu_custom_call.1} parent=11 // pred_check
          %p597 = pneg %p133
        $region30: #{tpu_custom_call.1} parent=11 // pred_check_branch
          %599 = sbr.rel (%p597) target = $region32
        $region31: #{tpu_custom_call.1} parent=11 // pred_region
          _
        $region32: #{tpu_custom_call.1} parent=11 // pred_fallthru
          _
      $region12: #{tpu_custom_call.1} parent=5 // pred_fallthru
        _
      %p600 = scmp.lt.s32.totalorder %s28, 2
      // Predicated region
      $region33: #{tpu_custom_call.1} parent=5 // pred_check
        %p601 = pneg %p600
      $region34: #{tpu_custom_call.1} parent=5 // pred_check_branch
        %603 = sbr.rel (%p601) target = $region36
      $region35: #{tpu_custom_call.1} parent=5 // pred_region
        // Predicated region
        $region37: #{tpu_custom_call.1} parent=35 // pred_check
          %p604 = pneg %p153
        $region38: #{tpu_custom_call.1} parent=35 // pred_check_branch
          %606 = sbr.rel (%p604) target = $region40
        $region39: #{tpu_custom_call.1} parent=35 // pred_region
          %p607 = scmp.lt.s32.totalorder %s28, 1
          %s608 = scalar_select %p607, %s28, 1
          %s609 = smul.addr %s608, 4
          %s610 = smul.addr %s609, 4
          %s611 = scalar_lea.vmem %s5, %s610
        $region40: #{tpu_custom_call.1} parent=35 // pred_fallthru
          _
        // Predicated region
        $region41: #{tpu_custom_call.1} parent=35 // pred_check
          %p612 = pneg %p179
        $region42: #{tpu_custom_call.1} parent=35 // pred_check_branch
          %614 = sbr.rel (%p612) target = $region44
        $region43: #{tpu_custom_call.1} parent=35 // pred_region
          %p615 = scmp.lt.s32.totalorder %s28, 1
          %s616 = scalar_select %p615, %s28, 1
          %s617 = scalar_lea.vmem %s6, %s616
        $region44: #{tpu_custom_call.1} parent=35 // pred_fallthru
          _
        // Predicated region
        $region45: #{tpu_custom_call.1} parent=35 // pred_check
          %p618 = pneg %p205
        $region46: #{tpu_custom_call.1} parent=35 // pred_check_branch
          %620 = sbr.rel (%p618) target = $region48
        $region47: #{tpu_custom_call.1} parent=35 // pred_region
          %p621 = scmp.lt.s32.totalorder %s28, 1
          %s622 = scalar_select %p621, %s28, 1
          %s623 = smul.addr %s622, 4
          %s624 = smul.addr %s623, 4
          %s625 = scalar_lea.vmem %s7, %s624
        $region48: #{tpu_custom_call.1} parent=35 // pred_fallthru
          _
        // Predicated region
        $region49: #{tpu_custom_call.1} parent=35 // pred_check
          %p626 = pneg %p231
        $region50: #{tpu_custom_call.1} parent=35 // pred_check_branch
          %628 = sbr.rel (%p626) target = $region52
        $region51: #{tpu_custom_call.1} parent=35 // pred_region
          %p629 = scmp.lt.s32.totalorder %s28, 1
          %s630 = scalar_select %p629, %s28, 1
          %s631 = scalar_lea.vmem %s8, %s630
        $region52: #{tpu_custom_call.1} parent=35 // pred_fallthru
          _
        // Predicated region
        $region53: #{tpu_custom_call.1} parent=35 // pred_check
          %p632 = pneg %p257
        $region54: #{tpu_custom_call.1} parent=35 // pred_check_branch
          %634 = sbr.rel (%p632) target = $region56
        $region55: #{tpu_custom_call.1} parent=35 // pred_region
          %p635 = scmp.lt.s32.totalorder %s28, 1
          %s636 = scalar_select %p635, %s28, 1
          %s637 = smul.addr %s636, 4
          %s638 = smul.addr %s637, 4
          %s639 = scalar_lea.vmem %s9, %s638
        $region56: #{tpu_custom_call.1} parent=35 // pred_fallthru
          _
        // Predicated region
        $region57: #{tpu_custom_call.1} parent=35 // pred_check
          %p640 = pneg %p283
        $region58: #{tpu_custom_call.1} parent=35 // pred_check_branch
          %642 = sbr.rel (%p640) target = $region60
        $region59: #{tpu_custom_call.1} parent=35 // pred_region
          %p643 = scmp.lt.s32.totalorder %s28, 1
          %s644 = scalar_select %p643, %s28, 1
          %s645 = scalar_lea.vmem %s10, %s644
        $region60: #{tpu_custom_call.1} parent=35 // pred_fallthru
          _
        // Predicated region
        $region61: #{tpu_custom_call.1} parent=35 // pred_check
          %p646 = pneg %p309
        $region62: #{tpu_custom_call.1} parent=35 // pred_check_branch
          %648 = sbr.rel (%p646) target = $region64
        $region63: #{tpu_custom_call.1} parent=35 // pred_region
          %p649 = scmp.lt.s32.totalorder %s28, 1
          %s650 = scalar_select %p649, %s28, 1
          %s651 = smul.addr %s650, 4
          %s652 = smul.addr %s651, 4
          %s653 = scalar_lea.vmem %s11, %s652
        $region64: #{tpu_custom_call.1} parent=35 // pred_fallthru
          _
        // Predicated region
        $region65: #{tpu_custom_call.1} parent=35 // pred_check
          %p654 = pneg %p335
        $region66: #{tpu_custom_call.1} parent=35 // pred_check_branch
          %656 = sbr.rel (%p654) target = $region68
        $region67: #{tpu_custom_call.1} parent=35 // pred_region
          %p657 = scmp.lt.s32.totalorder %s28, 1
          %s658 = scalar_select %p657, %s28, 1
          %s659 = scalar_lea.vmem %s12, %s658
        $region68: #{tpu_custom_call.1} parent=35 // pred_fallthru
          _
        // Predicated region
        $region69: #{tpu_custom_call.1} parent=35 // pred_check
          %p660 = pneg %p361
        $region70: #{tpu_custom_call.1} parent=35 // pred_check_branch
          %662 = sbr.rel (%p660) target = $region72
        $region71: #{tpu_custom_call.1} parent=35 // pred_region
          %p663 = scmp.lt.s32.totalorder %s28, 1
          %s664 = scalar_select %p663, %s28, 1
          %s665 = scalar_lea.vmem %s13, %s664
        $region72: #{tpu_custom_call.1} parent=35 // pred_fallthru
          _
        // Predicated region
        $region73: #{tpu_custom_call.1} parent=35 // pred_check
          %p666 = pneg %p387
        $region74: #{tpu_custom_call.1} parent=35 // pred_check_branch
          %668 = sbr.rel (%p666) target = $region76
        $region75: #{tpu_custom_call.1} parent=35 // pred_region
          %p669 = scmp.lt.s32.totalorder %s28, 1
          %s670 = scalar_select %p669, %s28, 1
          %s671 = scalar_lea.vmem %s14, %s670
        $region76: #{tpu_custom_call.1} parent=35 // pred_fallthru
          _
        // Predicated region
        $region77: #{tpu_custom_call.1} parent=35 // pred_check
          %p672 = pneg %p413
        $region78: #{tpu_custom_call.1} parent=35 // pred_check_branch
          %674 = sbr.rel (%p672) target = $region80
        $region79: #{tpu_custom_call.1} parent=35 // pred_region
          %p675 = scmp.lt.s32.totalorder %s28, 1
          %s676 = scalar_select %p675, %s28, 1
          %s677 = smul.addr %s676, 4
          %s678 = smul.addr %s677, 4
          %s679 = scalar_lea.vmem %s15, %s678
        $region80: #{tpu_custom_call.1} parent=35 // pred_fallthru
          _
        // Predicated region
        $region81: #{tpu_custom_call.1} parent=35 // pred_check
          %p680 = pneg %p439
        $region82: #{tpu_custom_call.1} parent=35 // pred_check_branch
          %682 = sbr.rel (%p680) target = $region84
        $region83: #{tpu_custom_call.1} parent=35 // pred_region
          %p683 = scmp.lt.s32.totalorder %s28, 1
          %s684 = scalar_select %p683, %s28, 1
          %s685 = scalar_lea.vmem %s16, %s684
        $region84: #{tpu_custom_call.1} parent=35 // pred_fallthru
          _
        // Predicated region
        $region85: #{tpu_custom_call.1} parent=35 // pred_check
          %p686 = pneg %p465
        $region86: #{tpu_custom_call.1} parent=35 // pred_check_branch
          %688 = sbr.rel (%p686) target = $region88
        $region87: #{tpu_custom_call.1} parent=35 // pred_region
          %p689 = scmp.lt.s32.totalorder %s28, 1
          %s690 = scalar_select %p689, %s28, 1
          %s691 = smul.addr %s690, 8
          %s692 = smul.addr %s691, 4
          %s693 = scalar_lea.vmem %s17, %s692
        $region88: #{tpu_custom_call.1} parent=35 // pred_fallthru
          _
        // Predicated region
        $region89: #{tpu_custom_call.1} parent=35 // pred_check
          %p694 = pneg %p491
        $region90: #{tpu_custom_call.1} parent=35 // pred_check_branch
          %696 = sbr.rel (%p694) target = $region92
        $region91: #{tpu_custom_call.1} parent=35 // pred_region
          %p697 = scmp.lt.s32.totalorder %s28, 1
          %s698 = scalar_select %p697, %s28, 1
          %s699 = scalar_lea.vmem %s18, %s698
        $region92: #{tpu_custom_call.1} parent=35 // pred_fallthru
          _
        // Predicated region
        $region93: #{tpu_custom_call.1} parent=35 // pred_check
          %p700 = pneg %p517
        $region94: #{tpu_custom_call.1} parent=35 // pred_check_branch
          %702 = sbr.rel (%p700) target = $region96
        $region95: #{tpu_custom_call.1} parent=35 // pred_region
          %p703 = scmp.lt.s32.totalorder %s28, 1
          %s704 = scalar_select %p703, %s28, 1
          %s705 = scalar_lea.vmem %s19, %s704
        $region96: #{tpu_custom_call.1} parent=35 // pred_fallthru
          _
        // Predicated region
        $region97: #{tpu_custom_call.1} parent=35 // pred_check
          %p706 = pneg %p543
        $region98: #{tpu_custom_call.1} parent=35 // pred_check_branch
          %708 = sbr.rel (%p706) target = $region100
        $region99: #{tpu_custom_call.1} parent=35 // pred_region
          %p709 = scmp.lt.s32.totalorder %s28, 1
          %s710 = scalar_select %p709, %s28, 1
          %s711 = scalar_lea.vmem %s20, %s710
        $region100: #{tpu_custom_call.1} parent=35 // pred_fallthru
          _
      $region36: #{tpu_custom_call.1} parent=5 // pred_fallthru
        _
      %p712 = scmp.le.s32.totalorder 1, %s28
      %p713 = scmp.lt.s32.totalorder %s28, 3
      %p714 = pnand %p712, %p713
      %p715 = pneg %p714
      // Predicated region
      $region101: #{tpu_custom_call.1} parent=5 // pred_check
        _
      $region102: #{tpu_custom_call.1} parent=5 // pred_check_branch
        %717 = sbr.rel (%p714) target = $region104
      $region103: #{tpu_custom_call.1} parent=5 // pred_region
        %s718 = ssub.s32 %s28, 1
        %p719 = pneg %p49
        %p720 = pneg %p46
        %p721 = pneg %p70
        %p722 = pneg %p67
        %p723 = pneg %p91
        %p724 = pneg %p88
        %p725 = pneg %p112
        %p726 = pneg %p109
        %p727 = pneg %p133
        %p728 = pneg %p130
        %p729 = scmp.lt.s32.totalorder %s33, 1
        %s730 = scalar_select %p729, %s33, 1
        %s731 = smul.addr %s730, 4
        %s732 = smul.addr %s731, 4
        %s733 = scalar_lea.vmem %s5, %s732
        %p734 = pneg %p159
        %p735 = pneg %p156
        %p736 = scmp.lt.s32.totalorder %s33, 1
        %s737 = scalar_select %p736, %s33, 1
        %s738 = scalar_lea.vmem %s6, %s737
        %p739 = pneg %p185
        %p740 = pneg %p182
        %p741 = scmp.lt.s32.totalorder %s33, 1
        %s742 = scalar_select %p741, %s33, 1
        %s743 = smul.addr %s742, 4
        %s744 = smul.addr %s743, 4
        %s745 = scalar_lea.vmem %s7, %s744
        %p746 = pneg %p211
        %p747 = pneg %p208
        %p748 = scmp.lt.s32.totalorder %s33, 1
        %s749 = scalar_select %p748, %s33, 1
        %s750 = scalar_lea.vmem %s8, %s749
        %p751 = pneg %p237
        %p752 = pneg %p234
        %p753 = scmp.lt.s32.totalorder %s33, 1
        %s754 = scalar_select %p753, %s33, 1
        %s755 = smul.addr %s754, 4
        %s756 = smul.addr %s755, 4
        %s757 = scalar_lea.vmem %s9, %s756
        %p758 = pneg %p263
        %p759 = pneg %p260
        %p760 = scmp.lt.s32.totalorder %s33, 1
        %s761 = scalar_select %p760, %s33, 1
        %s762 = scalar_lea.vmem %s10, %s761
        %p763 = pneg %p289
        %p764 = pneg %p286
        %p765 = scmp.lt.s32.totalorder %s33, 1
        %s766 = scalar_select %p765, %s33, 1
        %s767 = smul.addr %s766, 4
        %s768 = smul.addr %s767, 4
        %s769 = scalar_lea.vmem %s11, %s768
        %p770 = pneg %p315
        %p771 = pneg %p312
        %p772 = scmp.lt.s32.totalorder %s33, 1
        %s773 = scalar_select %p772, %s33, 1
        %s774 = scalar_lea.vmem %s12, %s773
        %p775 = pneg %p341
        %p776 = pneg %p338
        %p777 = scmp.lt.s32.totalorder %s33, 1
        %s778 = scalar_select %p777, %s33, 1
        %s779 = scalar_lea.vmem %s13, %s778
        %p780 = pneg %p367
        %p781 = pneg %p364
        %p782 = scmp.lt.s32.totalorder %s33, 1
        %s783 = scalar_select %p782, %s33, 1
        %s784 = scalar_lea.vmem %s14, %s783
        %p785 = pneg %p393
        %p786 = pneg %p390
        %p787 = scmp.lt.s32.totalorder %s33, 1
        %s788 = scalar_select %p787, %s33, 1
        %s789 = smul.addr %s788, 4
        %s790 = smul.addr %s789, 4
        %s791 = scalar_lea.vmem %s15, %s790
        %p792 = pneg %p419
        %p793 = pneg %p416
        %p794 = scmp.lt.s32.totalorder %s33, 1
        %s795 = scalar_select %p794, %s33, 1
        %s796 = scalar_lea.vmem %s16, %s795
        %p797 = pneg %p445
        %p798 = pneg %p442
        %p799 = scmp.lt.s32.totalorder %s33, 1
        %s800 = scalar_select %p799, %s33, 1
        %s801 = smul.addr %s800, 8
        %s802 = smul.addr %s801, 4
        %s803 = scalar_lea.vmem %s17, %s802
        %p804 = pneg %p471
        %p805 = pneg %p468
        %p806 = scmp.lt.s32.totalorder %s33, 1
        %s807 = scalar_select %p806, %s33, 1
        %s808 = scalar_lea.vmem %s18, %s807
        %p809 = pneg %p497
        %p810 = pneg %p494
        %p811 = scmp.lt.s32.totalorder %s33, 1
        %s812 = scalar_select %p811, %s33, 1
        %s813 = scalar_lea.vmem %s19, %s812
        %p814 = pneg %p523
        %p815 = pneg %p520
        %p816 = scmp.lt.s32.totalorder %s33, 1
        %s817 = scalar_select %p816, %s33, 1
        %s818 = scalar_lea.vmem %s20, %s817
        %p819 = pneg %p549
        %p820 = pneg %p546
        %p821 = pneg %p570
        %p822 = pneg %p567
        %p823 = scmp.lt.s32.totalorder %s33, 1
        %s824 = scalar_select %p823, %s33, 1
        %s825 = smul.addr %s824, 4
        %s826 = smul.addr %s825, 4
        %s827 = scalar_lea.vmem %s5, %s826
        %p828 = scmp.lt.s32.totalorder %s33, 1
        %s829 = scalar_select %p828, %s33, 1
        %s830 = scalar_lea.vmem %s6, %s829
        %p831 = scmp.lt.s32.totalorder %s33, 1
        %s832 = scalar_select %p831, %s33, 1
        %s833 = smul.addr %s832, 4
        %s834 = smul.addr %s833, 4
        %s835 = scalar_lea.vmem %s7, %s834
        %p836 = scmp.lt.s32.totalorder %s33, 1
        %s837 = scalar_select %p836, %s33, 1
        %s838 = scalar_lea.vmem %s8, %s837
        %p839 = scmp.lt.s32.totalorder %s33, 1
        %s840 = scalar_select %p839, %s33, 1
        %s841 = smul.addr %s840, 4
        %s842 = smul.addr %s841, 4
        %s843 = scalar_lea.vmem %s9, %s842
        %p844 = scmp.lt.s32.totalorder %s33, 1
        %s845 = scalar_select %p844, %s33, 1
        %s846 = scalar_lea.vmem %s10, %s845
        %p847 = scmp.lt.s32.totalorder %s33, 1
        %s848 = scalar_select %p847, %s33, 1
        %s849 = smul.addr %s848, 4
        %s850 = smul.addr %s849, 4
        %s851 = scalar_lea.vmem %s11, %s850
        %p852 = scmp.lt.s32.totalorder %s33, 1
        %s853 = scalar_select %p852, %s33, 1
        %s854 = scalar_lea.vmem %s12, %s853
        %p855 = scmp.lt.s32.totalorder %s33, 1
        %s856 = scalar_select %p855, %s33, 1
        %s857 = scalar_lea.vmem %s13, %s856
        %p858 = scmp.lt.s32.totalorder %s33, 1
        %s859 = scalar_select %p858, %s33, 1
        %s860 = scalar_lea.vmem %s14, %s859
        %p861 = scmp.lt.s32.totalorder %s33, 1
        %s862 = scalar_select %p861, %s33, 1
        %s863 = smul.addr %s862, 4
        %s864 = smul.addr %s863, 4
        %s865 = scalar_lea.vmem %s15, %s864
        %p866 = scmp.lt.s32.totalorder %s33, 1
        %s867 = scalar_select %p866, %s33, 1
        %s868 = scalar_lea.vmem %s16, %s867
        %p869 = scmp.lt.s32.totalorder %s33, 1
        %s870 = scalar_select %p869, %s33, 1
        %s871 = smul.addr %s870, 8
        %s872 = smul.addr %s871, 4
        %s873 = scalar_lea.vmem %s17, %s872
        %p874 = scmp.lt.s32.totalorder %s33, 1
        %s875 = scalar_select %p874, %s33, 1
        %s876 = scalar_lea.vmem %s18, %s875
        %p877 = scmp.lt.s32.totalorder %s33, 1
        %s878 = scalar_select %p877, %s33, 1
        %s879 = scalar_lea.vmem %s19, %s878
        %p880 = scmp.lt.s32.totalorder %s33, 1
        %s881 = scalar_select %p880, %s33, 1
        %s882 = scalar_lea.vmem %s20, %s881
        %p884 = scmp.eq.s32.totalorder %s33, 0
        // Predicated region
        $region105: #{tpu_custom_call.1} parent=103 // pred_check
          %p885 = pneg %p884
        $region106: #{tpu_custom_call.1} parent=103 // pred_check_branch
          %887 = sbr.rel (%p885) target = $region108
        $region107: #{tpu_custom_call.1} parent=103 // pred_region
          %v888 = vld [vmem:[%s0] sm:$0xff]
          %v889 = vld [vmem:[%s0 + $0x8] sm:$0xff]
          %vm890 = vcmask 261120
          %891 = vst.msk [vmem:[#allocation2] sm:$0xff] %vm890, %v888
          %892 = vst.msk [vmem:[#allocation2 + $0x8] sm:$0xff] %vm890, %v889
        $region108: #{tpu_custom_call.1} parent=103 // pred_fallthru
          _
        %v893 = vld [vmem:[#allocation2] sm:$0xff]
        %v894 = vld [vmem:[#allocation2 + $0x8] sm:$0xff]
        %v895 = vpack.c.bf16 %v894, %v893
        %v896 = vld [vmem:[%s827] sm:$0xf]
        %v897 = vld [vmem:[%s827 + $0x4] sm:$0xf]
        %v898 = vld [vmem:[%s827 + $0x8] sm:$0xf]
        %v899 = vld [vmem:[%s827 + $0xc] sm:$0xf]
        %v900 = vld [vmem:[%s830] sm:$0x1]
        %v902 = vlaneseq
        %v903 = vshrl.u32 %v902, 7
        %v904 = vsub.s32 0, %v903
        %v905 = vrot.slane %v900, %v904
        %v911 = vunpack.c.l.b16 %v896
        %v912 = vunpack.c.l.b16 %v897
        %v913 = vunpack.c.l.b16 %v898
        %v914 = vunpack.c.l.b16 %v899
        %v915 = vpack.c.b16 %v912, %v911
        %v916 = vpack.c.b16 %v914, %v913
        %vm919 = vcmask 261120
        %v921 = vsel %vm919, %v895, 0
        %923 = vmatprep.subr.bf16.mxu0 0
        %924 = vmatpush1.bf16.msra.mxu0 %v915
        %925 = vmatprep.subr.bf16.mxu0 0
        %926 = vmatpush1.bf16.msra.mxu0 %v916
        %927 = vmatprep.subr.bf16.mxu0 0
        %928 = vmatpush1.bf16.msra.mxu0 0
        %929 = vmatprep.subr.bf16.mxu0 0
        %930 = vmatpush1.bf16.msra.mxu0 0
        %931 = vmatprep.subr.bf16.mxu0 0
        %932 = vmatpush1.bf16.msra.mxu0 0
        %933 = vmatprep.subr.bf16.mxu0 0
        %934 = vmatpush1.bf16.msra.mxu0 0
        %935 = vmatprep.subr.bf16.mxu0 0
        %936 = vmatpush1.bf16.msra.mxu0 0
        %937 = vmatprep.subr.bf16.mxu0 0
        %938 = vmatpush1.bf16.msra.mxu0 0
        %939 = vmatprep.subr.bf16.mxu0 0
        %940 = vmatpush1.bf16.msra.mxu0 0
        %941 = vmatprep.subr.bf16.mxu0 0
        %942 = vmatpush1.bf16.msra.mxu0 0
        %943 = vmatprep.subr.bf16.mxu0 0
        %944 = vmatpush1.bf16.msra.mxu0 0
        %945 = vmatprep.subr.bf16.mxu0 0
        %946 = vmatpush1.bf16.msra.mxu0 0
        %947 = vmatprep.subr.bf16.mxu0 0
        %948 = vmatpush1.bf16.msra.mxu0 0
        %949 = vmatprep.subr.bf16.mxu0 0
        %950 = vmatpush1.bf16.msra.mxu0 0
        %951 = vmatprep.subr.bf16.mxu0 0
        %952 = vmatpush1.bf16.msra.mxu0 0
        %953 = vmatprep.subr.bf16.mxu0 0
        %954 = vmatpush1.bf16.msra.mxu0 0
        %955 = vmatprep.mubr.bf16.mxu0 0
        %956 = vmatmul.mubr.bf16.gmra.mrb[0].mxu0 %v921
        %v957 = vpop.f32.mrb[0].mxu0
        %v958 = vadd.f32 %v905, %v957
        %v959 = vpop.f32.mrb[0].mxu0
        %v960 = vpop.f32.mrb[0].mxu0
        %v961 = vadd.f32 %v905, %v960
        %v962 = vpop.f32.mrb[0].mxu0
        %963 = vdwg.mxu0
        %v964 = vld [vmem:[%s835] sm:$0xf]
        %v965 = vld [vmem:[%s835 + $0x4] sm:$0xf]
        %v966 = vld [vmem:[%s835 + $0x8] sm:$0xf]
        %v967 = vld [vmem:[%s835 + $0xc] sm:$0xf]
        %v968 = vld [vmem:[%s838] sm:$0x1]
        %v970 = vlaneseq
        %v971 = vshrl.u32 %v970, 7
        %v972 = vsub.s32 0, %v971
        %v973 = vrot.slane %v968, %v972
        %v979 = vunpack.c.l.b16 %v964
        %v980 = vunpack.c.l.b16 %v965
        %v981 = vunpack.c.l.b16 %v966
        %v982 = vunpack.c.l.b16 %v967
        %v983 = vpack.c.b16 %v980, %v979
        %v984 = vpack.c.b16 %v982, %v981
        %987 = vmatprep.subr.bf16.mxu0 0
        %988 = vmatpush1.bf16.msra.mxu0 %v983
        %989 = vmatprep.subr.bf16.mxu0 0
        %990 = vmatpush1.bf16.msra.mxu0 %v984
        %991 = vmatprep.subr.bf16.mxu0 0
        %992 = vmatpush1.bf16.msra.mxu0 0
        %993 = vmatprep.subr.bf16.mxu0 0
        %994 = vmatpush1.bf16.msra.mxu0 0
        %995 = vmatprep.subr.bf16.mxu0 0
        %996 = vmatpush1.bf16.msra.mxu0 0
        %997 = vmatprep.subr.bf16.mxu0 0
        %998 = vmatpush1.bf16.msra.mxu0 0
        %999 = vmatprep.subr.bf16.mxu0 0
        %1000 = vmatpush1.bf16.msra.mxu0 0
        %1001 = vmatprep.subr.bf16.mxu0 0
        %1002 = vmatpush1.bf16.msra.mxu0 0
        %1003 = vmatprep.subr.bf16.mxu0 0
        %1004 = vmatpush1.bf16.msra.mxu0 0
        %1005 = vmatprep.subr.bf16.mxu0 0
        %1006 = vmatpush1.bf16.msra.mxu0 0
        %1007 = vmatprep.subr.bf16.mxu0 0
        %1008 = vmatpush1.bf16.msra.mxu0 0
        %1009 = vmatprep.subr.bf16.mxu0 0
        %1010 = vmatpush1.bf16.msra.mxu0 0
        %1011 = vmatprep.subr.bf16.mxu0 0
        %1012 = vmatpush1.bf16.msra.mxu0 0
        %1013 = vmatprep.subr.bf16.mxu0 0
        %1014 = vmatpush1.bf16.msra.mxu0 0
        %1015 = vmatprep.subr.bf16.mxu0 0
        %1016 = vmatpush1.bf16.msra.mxu0 0
        %1017 = vmatprep.subr.bf16.mxu0 0
        %1018 = vmatpush1.bf16.msra.mxu0 0
        %1019 = vmatprep.mubr.bf16.mxu0 0
        %1020 = vmatmul.mubr.bf16.gmra.mrb[0].mxu0 %v921
        %v1021 = vpop.f32.mrb[0].mxu0
        %v1022 = vadd.f32 %v973, %v1021
        %v1023 = vpop.f32.mrb[0].mxu0
        %v1024 = vpop.f32.mrb[0].mxu0
        %v1025 = vadd.f32 %v973, %v1024
        %v1026 = vpop.f32.mrb[0].mxu0
        %1027 = vdwg.mxu0
        %v1028 = vld [vmem:[%s843] sm:$0xf]
        %v1029 = vld [vmem:[%s843 + $0x4] sm:$0xf]
        %v1030 = vld [vmem:[%s843 + $0x8] sm:$0xf]
        %v1031 = vld [vmem:[%s843 + $0xc] sm:$0xf]
        %v1032 = vld [vmem:[%s846] sm:$0x1]
        %v1034 = vlaneseq
        %v1035 = vshrl.u32 %v1034, 7
        %v1036 = vsub.s32 0, %v1035
        %v1037 = vrot.slane %v1032, %v1036
        %v1043 = vunpack.c.l.b16 %v1028
        %v1044 = vunpack.c.l.b16 %v1029
        %v1045 = vunpack.c.l.b16 %v1030
        %v1046 = vunpack.c.l.b16 %v1031
        %v1047 = vpack.c.b16 %v1044, %v1043
        %v1048 = vpack.c.b16 %v1046, %v1045
        %1051 = vmatprep.subr.bf16.mxu0 0
        %1052 = vmatpush1.bf16.msra.mxu0 %v1047
        %1053 = vmatprep.subr.bf16.mxu0 0
        %1054 = vmatpush1.bf16.msra.mxu0 %v1048
        %1055 = vmatprep.subr.bf16.mxu0 0
        %1056 = vmatpush1.bf16.msra.mxu0 0
        %1057 = vmatprep.subr.bf16.mxu0 0
        %1058 = vmatpush1.bf16.msra.mxu0 0
        %1059 = vmatprep.subr.bf16.mxu0 0
        %1060 = vmatpush1.bf16.msra.mxu0 0
        %1061 = vmatprep.subr.bf16.mxu0 0
        %1062 = vmatpush1.bf16.msra.mxu0 0
        %1063 = vmatprep.subr.bf16.mxu0 0
        %1064 = vmatpush1.bf16.msra.mxu0 0
        %1065 = vmatprep.subr.bf16.mxu0 0
        %1066 = vmatpush1.bf16.msra.mxu0 0
        %1067 = vmatprep.subr.bf16.mxu0 0
        %1068 = vmatpush1.bf16.msra.mxu0 0
        %1069 = vmatprep.subr.bf16.mxu0 0
        %1070 = vmatpush1.bf16.msra.mxu0 0
        %1071 = vmatprep.subr.bf16.mxu0 0
        %1072 = vmatpush1.bf16.msra.mxu0 0
        %1073 = vmatprep.subr.bf16.mxu0 0
        %1074 = vmatpush1.bf16.msra.mxu0 0
        %1075 = vmatprep.subr.bf16.mxu0 0
        %1076 = vmatpush1.bf16.msra.mxu0 0
        %1077 = vmatprep.subr.bf16.mxu0 0
        %1078 = vmatpush1.bf16.msra.mxu0 0
        %1079 = vmatprep.subr.bf16.mxu0 0
        %1080 = vmatpush1.bf16.msra.mxu0 0
        %1081 = vmatprep.subr.bf16.mxu0 0
        %1082 = vmatpush1.bf16.msra.mxu0 0
        %1083 = vmatprep.mubr.bf16.mxu0 0
        %1084 = vmatmul.mubr.bf16.gmra.mrb[0].mxu0 %v921
        %v1085 = vpop.f32.mrb[0].mxu0
        %v1086 = vadd.f32 %v1037, %v1085
        %v1087 = vpop.f32.mrb[0].mxu0
        %v1088 = vpop.f32.mrb[0].mxu0
        %v1089 = vadd.f32 %v1037, %v1088
        %v1090 = vpop.f32.mrb[0].mxu0
        %1091 = vdwg.mxu0
        %v1092 = vld [vmem:[%s1] sm:$0xff]
        %v1093 = vld [vmem:[%s1 + $0x8] sm:$0xff]
        %v1094 = vmul.f32 %v1092, -1e+09
        %v1095 = vmul.f32 %v1093, -1e+09
        %v1096 = vld [vmem:[%s2] sm:$0xff]
        %v1097 = vld [vmem:[%s2 + $0x8] sm:$0xff]
        %v1098 = vld [vmem:[%s2 + $0x10] sm:$0xff]
        %v1099 = vld [vmem:[%s2 + $0x18] sm:$0xff]
        %v1100 = vld [vmem:[%s3] sm:$0xff]
        %v1101 = vld [vmem:[%s3 + $0x8] sm:$0xff]
        %v1102 = vld [vmem:[%s3 + $0x10] sm:$0xff]
        %v1103 = vld [vmem:[%s3 + $0x18] sm:$0xff]
        %v1104 = vld [vmem:[%s3 + $0x20] sm:$0xff]
        %v1105 = vld [vmem:[%s3 + $0x28] sm:$0xff]
        %v1106 = vld [vmem:[%s3 + $0x30] sm:$0xff]
        %v1107 = vld [vmem:[%s3 + $0x38] sm:$0xff]
        %v1108 = vld [vmem:[%s4] sm:$0xff]
        %v1109 = vld [vmem:[%s4 + $0x8] sm:$0xff]
        %v1110 = vld [vmem:[%s4 + $0x10] sm:$0xff]
        %v1111 = vld [vmem:[%s4 + $0x18] sm:$0xff]
        %v1112 = vld [vmem:[%s4 + $0x20] sm:$0xff]
        %v1113 = vld [vmem:[%s4 + $0x28] sm:$0xff]
        %v1114 = vld [vmem:[%s4 + $0x30] sm:$0xff]
        %v1115 = vld [vmem:[%s4 + $0x38] sm:$0xff]
        %vm1116 = vcmask 64512
        %v1118 = vsel %vm1116, %v1100, 0
        %v1121 = vsel %vm1116, %v1101, 0
        %v1124 = vsel %vm1116, %v1102, 0
        %v1127 = vsel %vm1116, %v1103, 0
        %v1130 = vsel %vm1116, %v1104, 0
        %v1133 = vsel %vm1116, %v1105, 0
        %v1136 = vsel %vm1116, %v1106, 0
        %v1139 = vsel %vm1116, %v1107, 0
        %1141 = vmatprep.subr.mxu0 0.0
        %1142 = vmatpush1.msra.mxu0 %v958
        %1143 = vmatprep.subr.mxu0 0.0
        %1144 = vmatpush1.msra.mxu0 0.0
        %1145 = vmatprep.subr.mxu0 0.0
        %1146 = vmatpush1.msra.mxu0 0.0
        %1147 = vmatprep.subr.mxu0 0.0
        %1148 = vmatpush1.msra.mxu0 0.0
        %1149 = vmatprep.subr.mxu0 0.0
        %1150 = vmatpush1.msra.mxu0 0.0
        %1151 = vmatprep.subr.mxu0 0.0
        %1152 = vmatpush1.msra.mxu0 0.0
        %1153 = vmatprep.subr.mxu0 0.0
        %1154 = vmatpush1.msra.mxu0 0.0
        %1155 = vmatprep.subr.mxu0 0.0
        %1156 = vmatpush1.msra.mxu0 0.0
        %1157 = vmatprep.subr.mxu0 0.0
        %1158 = vmatpush1.msra.mxu0 0.0
        %1159 = vmatprep.subr.mxu0 0.0
        %1160 = vmatpush1.msra.mxu0 0.0
        %1161 = vmatprep.subr.mxu0 0.0
        %1162 = vmatpush1.msra.mxu0 0.0
        %1163 = vmatprep.subr.mxu0 0.0
        %1164 = vmatpush1.msra.mxu0 0.0
        %1165 = vmatprep.subr.mxu0 0.0
        %1166 = vmatpush1.msra.mxu0 0.0
        %1167 = vmatprep.subr.mxu0 0.0
        %1168 = vmatpush1.msra.mxu0 0.0
        %1169 = vmatprep.subr.mxu0 0.0
        %1170 = vmatpush1.msra.mxu0 0.0
        %1171 = vmatprep.subr.mxu0 0.0
        %1172 = vmatpush1.msra.mxu0 0.0
        %1173 = vmatprep.subr.mxu0 0.0
        %1174 = vmatpush1.msra.mxu0 0.0
        %1175 = vmatprep.subr.mxu0 0.0
        %1176 = vmatpush1.msra.mxu0 0.0
        %1177 = vmatprep.subr.mxu0 0.0
        %1178 = vmatpush1.msra.mxu0 0.0
        %1179 = vmatprep.subr.mxu0 0.0
        %1180 = vmatpush1.msra.mxu0 0.0
        %1181 = vmatprep.subr.mxu0 0.0
        %1182 = vmatpush1.msra.mxu0 0.0
        %1183 = vmatprep.subr.mxu0 0.0
        %1184 = vmatpush1.msra.mxu0 0.0
        %1185 = vmatprep.subr.mxu0 0.0
        %1186 = vmatpush1.msra.mxu0 0.0
        %1187 = vmatprep.subr.mxu0 0.0
        %1188 = vmatpush1.msra.mxu0 0.0
        %1189 = vmatprep.subr.mxu0 0.0
        %1190 = vmatpush1.msra.mxu0 0.0
        %1191 = vmatprep.subr.mxu0 0.0
        %1192 = vmatpush1.msra.mxu0 0.0
        %1193 = vmatprep.subr.mxu0 0.0
        %1194 = vmatpush1.msra.mxu0 0.0
        %1195 = vmatprep.subr.mxu0 0.0
        %1196 = vmatpush1.msra.mxu0 0.0
        %1197 = vmatprep.subr.mxu0 0.0
        %1198 = vmatpush1.msra.mxu0 0.0
        %1199 = vmatprep.subr.mxu0 0.0
        %1200 = vmatpush1.msra.mxu0 0.0
        %1201 = vmatprep.subr.mxu0 0.0
        %1202 = vmatpush1.msra.mxu0 0.0
        %1203 = vmatprep.subr.mxu0 0.0
        %1204 = vmatpush1.msra.mxu0 0.0
        %1205 = vmatprep.mubr.f32.mxu0 0.0
        %1206 = vmatmul.mubr.f32.gmra.mrb[0].mxu0 %v1118
        %v1207 = vpop.f32.mrb[0].mxu0
        %v1208 = vadd.f32 0.0, %v1207
        %v1209 = vpop.f32.mrb[0].mxu0
        %1210 = vmatprep.mubr.f32.mxu0 0.0
        %1211 = vmatmul.mubr.f32.gmra.mrb[0].mxu0 %v1121
        %v1212 = vpop.f32.mrb[0].mxu0
        %v1213 = vadd.f32 0.0, %v1212
        %v1214 = vpop.f32.mrb[0].mxu0
        %1215 = vmatprep.mubr.f32.mxu0 0.0
        %1216 = vmatmul.mubr.f32.gmra.mrb[0].mxu0 %v1124
        %v1217 = vpop.f32.mrb[0].mxu0
        %v1218 = vadd.f32 0.0, %v1217
        %v1219 = vpop.f32.mrb[0].mxu0
        %1220 = vmatprep.mubr.f32.mxu0 0.0
        %1221 = vmatmul.mubr.f32.gmra.mrb[0].mxu0 %v1127
        %v1222 = vpop.f32.mrb[0].mxu0
        %v1223 = vadd.f32 0.0, %v1222
        %v1224 = vpop.f32.mrb[0].mxu0
        %1225 = vmatprep.mubr.f32.mxu0 0.0
        %1226 = vmatmul.mubr.f32.gmra.mrb[0].mxu0 %v1130
        %v1227 = vpop.f32.mrb[0].mxu0
        %v1228 = vadd.f32 0.0, %v1227
        %v1229 = vpop.f32.mrb[0].mxu0
        %1230 = vmatprep.mubr.f32.mxu0 0.0
        %1231 = vmatmul.mubr.f32.gmra.mrb[0].mxu0 %v1133
        %v1232 = vpop.f32.mrb[0].mxu0
        %v1233 = vadd.f32 0.0, %v1232
        %v1234 = vpop.f32.mrb[0].mxu0
        %1235 = vmatprep.mubr.f32.mxu0 0.0
        %1236 = vmatmul.mubr.f32.gmra.mrb[0].mxu0 %v1136
        %v1237 = vpop.f32.mrb[0].mxu0
        %v1238 = vadd.f32 0.0, %v1237
        %v1239 = vpop.f32.mrb[0].mxu0
        %1240 = vmatprep.mubr.f32.mxu0 0.0
        %1241 = vmatmul.mubr.f32.gmra.mrb[0].mxu0 %v1139
        %v1242 = vpop.f32.mrb[0].mxu0
        %v1243 = vadd.f32 0.0, %v1242
        %v1244 = vpop.f32.mrb[0].mxu0
        %1245 = vdwg.mxu0
        %v1247 = vsel %vm1116, %v1108, 0
        %v1250 = vsel %vm1116, %v1109, 0
        %v1253 = vsel %vm1116, %v1110, 0
        %v1256 = vsel %vm1116, %v1111, 0
        %v1259 = vsel %vm1116, %v1112, 0
        %v1262 = vsel %vm1116, %v1113, 0
        %v1265 = vsel %vm1116, %v1114, 0
        %v1268 = vsel %vm1116, %v1115, 0
        %1270 = vmatprep.subr.mxu0 0.0
        %1271 = vmatpush1.msra.mxu0 %v1022
        %1272 = vmatprep.subr.mxu0 0.0
        %1273 = vmatpush1.msra.mxu0 0.0
        %1274 = vmatprep.subr.mxu0 0.0
        %1275 = vmatpush1.msra.mxu0 0.0
        %1276 = vmatprep.subr.mxu0 0.0
        %1277 = vmatpush1.msra.mxu0 0.0
        %1278 = vmatprep.subr.mxu0 0.0
        %1279 = vmatpush1.msra.mxu0 0.0
        %1280 = vmatprep.subr.mxu0 0.0
        %1281 = vmatpush1.msra.mxu0 0.0
        %1282 = vmatprep.subr.mxu0 0.0
        %1283 = vmatpush1.msra.mxu0 0.0
        %1284 = vmatprep.subr.mxu0 0.0
        %1285 = vmatpush1.msra.mxu0 0.0
        %1286 = vmatprep.subr.mxu0 0.0
        %1287 = vmatpush1.msra.mxu0 0.0
        %1288 = vmatprep.subr.mxu0 0.0
        %1289 = vmatpush1.msra.mxu0 0.0
        %1290 = vmatprep.subr.mxu0 0.0
        %1291 = vmatpush1.msra.mxu0 0.0
        %1292 = vmatprep.subr.mxu0 0.0
        %1293 = vmatpush1.msra.mxu0 0.0
        %1294 = vmatprep.subr.mxu0 0.0
        %1295 = vmatpush1.msra.mxu0 0.0
        %1296 = vmatprep.subr.mxu0 0.0
        %1297 = vmatpush1.msra.mxu0 0.0
        %1298 = vmatprep.subr.mxu0 0.0
        %1299 = vmatpush1.msra.mxu0 0.0
        %1300 = vmatprep.subr.mxu0 0.0
        %1301 = vmatpush1.msra.mxu0 0.0
        %1302 = vmatprep.subr.mxu0 0.0
        %1303 = vmatpush1.msra.mxu0 0.0
        %1304 = vmatprep.subr.mxu0 0.0
        %1305 = vmatpush1.msra.mxu0 0.0
        %1306 = vmatprep.subr.mxu0 0.0
        %1307 = vmatpush1.msra.mxu0 0.0
        %1308 = vmatprep.subr.mxu0 0.0
        %1309 = vmatpush1.msra.mxu0 0.0
        %1310 = vmatprep.subr.mxu0 0.0
        %1311 = vmatpush1.msra.mxu0 0.0
        %1312 = vmatprep.subr.mxu0 0.0
        %1313 = vmatpush1.msra.mxu0 0.0
        %1314 = vmatprep.subr.mxu0 0.0
        %1315 = vmatpush1.msra.mxu0 0.0
        %1316 = vmatprep.subr.mxu0 0.0
        %1317 = vmatpush1.msra.mxu0 0.0
        %1318 = vmatprep.subr.mxu0 0.0
        %1319 = vmatpush1.msra.mxu0 0.0
        %1320 = vmatprep.subr.mxu0 0.0
        %1321 = vmatpush1.msra.mxu0 0.0
        %1322 = vmatprep.subr.mxu0 0.0
        %1323 = vmatpush1.msra.mxu0 0.0
        %1324 = vmatprep.subr.mxu0 0.0
        %1325 = vmatpush1.msra.mxu0 0.0
        %1326 = vmatprep.subr.mxu0 0.0
        %1327 = vmatpush1.msra.mxu0 0.0
        %1328 = vmatprep.subr.mxu0 0.0
        %1329 = vmatpush1.msra.mxu0 0.0
        %1330 = vmatprep.subr.mxu0 0.0
        %1331 = vmatpush1.msra.mxu0 0.0
        %1332 = vmatprep.subr.mxu0 0.0
        %1333 = vmatpush1.msra.mxu0 0.0
        %1334 = vmatprep.mubr.f32.mxu0 0.0
        %1335 = vmatmul.mubr.f32.gmra.mrb[0].mxu0 %v1247
        %v1336 = vpop.f32.mrb[0].mxu0
        %v1337 = vadd.f32 0.0, %v1336
        %v1338 = vpop.f32.mrb[0].mxu0
        %1339 = vmatprep.mubr.f32.mxu0 0.0
        %1340 = vmatmul.mubr.f32.gmra.mrb[0].mxu0 %v1250
        %v1341 = vpop.f32.mrb[0].mxu0
        %v1342 = vadd.f32 0.0, %v1341
        %v1343 = vpop.f32.mrb[0].mxu0
        %1344 = vmatprep.mubr.f32.mxu0 0.0
        %1345 = vmatmul.mubr.f32.gmra.mrb[0].mxu0 %v1253
        %v1346 = vpop.f32.mrb[0].mxu0
        %v1347 = vadd.f32 0.0, %v1346
        %v1348 = vpop.f32.mrb[0].mxu0
        %1349 = vmatprep.mubr.f32.mxu0 0.0
        %1350 = vmatmul.mubr.f32.gmra.mrb[0].mxu0 %v1256
        %v1351 = vpop.f32.mrb[0].mxu0
        %v1352 = vadd.f32 0.0, %v1351
        %v1353 = vpop.f32.mrb[0].mxu0
        %1354 = vmatprep.mubr.f32.mxu0 0.0
        %1355 = vmatmul.mubr.f32.gmra.mrb[0].mxu0 %v1259
        %v1356 = vpop.f32.mrb[0].mxu0
        %v1357 = vadd.f32 0.0, %v1356
        %v1358 = vpop.f32.mrb[0].mxu0
        %1359 = vmatprep.mubr.f32.mxu0 0.0
        %1360 = vmatmul.mubr.f32.gmra.mrb[0].mxu0 %v1262
        %v1361 = vpop.f32.mrb[0].mxu0
        %v1362 = vadd.f32 0.0, %v1361
        %v1363 = vpop.f32.mrb[0].mxu0
        %1364 = vmatprep.mubr.f32.mxu0 0.0
        %1365 = vmatmul.mubr.f32.gmra.mrb[0].mxu0 %v1265
        %v1366 = vpop.f32.mrb[0].mxu0
        %v1367 = vadd.f32 0.0, %v1366
        %v1368 = vpop.f32.mrb[0].mxu0
        %1369 = vmatprep.mubr.f32.mxu0 0.0
        %1370 = vmatmul.mubr.f32.gmra.mrb[0].mxu0 %v1268
        %v1371 = vpop.f32.mrb[0].mxu0
        %v1372 = vadd.f32 0.0, %v1371
        %v1373 = vpop.f32.mrb[0].mxu0
        %1374 = vdwg.mxu0
        %v1375 = vmul.f32 %v1208, %v1337
        %v1376 = vmul.f32 %v1213, %v1342
        %v1377 = vmul.f32 %v1218, %v1347
        %v1378 = vmul.f32 %v1223, %v1352
        %v1379 = vmul.f32 %v1228, %v1357
        %v1380 = vmul.f32 %v1233, %v1362
        %v1381 = vmul.f32 %v1238, %v1367
        %v1382 = vmul.f32 %v1243, %v1372
        %v1384 = vsel %vm919, %v1375, 0
        %v1387 = vsel %vm919, %v1376, 0
        %v1390 = vsel %vm919, %v1377, 0
        %v1393 = vsel %vm919, %v1378, 0
        %v1396 = vsel %vm919, %v1379, 0
        %v1399 = vsel %vm919, %v1380, 0
        %v1402 = vsel %vm919, %v1381, 0
        %v1405 = vsel %vm919, %v1382, 0
        %1407 = vmatprep.subr.mxu0 0.0
        %1408 = vmatpush1.msra.mxu0 %v1096
        %1409 = vmatprep.subr.mxu0 0.0
        %1410 = vmatpush1.msra.mxu0 %v1097
        %1411 = vmatprep.subr.mxu0 0.0
        %1412 = vmatpush1.msra.mxu0 %v1098
        %1413 = vmatprep.subr.mxu0 0.0
        %1414 = vmatpush1.msra.mxu0 %v1099
        %1415 = vmatprep.subr.mxu0 0.0
        %1416 = vmatpush1.msra.mxu0 0.0
        %1417 = vmatprep.subr.mxu0 0.0
        %1418 = vmatpush1.msra.mxu0 0.0
        %1419 = vmatprep.subr.mxu0 0.0
        %1420 = vmatpush1.msra.mxu0 0.0
        %1421 = vmatprep.subr.mxu0 0.0
        %1422 = vmatpush1.msra.mxu0 0.0
        %1423 = vmatprep.subr.mxu0 0.0
        %1424 = vmatpush1.msra.mxu0 0.0
        %1425 = vmatprep.subr.mxu0 0.0
        %1426 = vmatpush1.msra.mxu0 0.0
        %1427 = vmatprep.subr.mxu0 0.0
        %1428 = vmatpush1.msra.mxu0 0.0
        %1429 = vmatprep.subr.mxu0 0.0
        %1430 = vmatpush1.msra.mxu0 0.0
        %1431 = vmatprep.subr.mxu0 0.0
        %1432 = vmatpush1.msra.mxu0 0.0
        %1433 = vmatprep.subr.mxu0 0.0
        %1434 = vmatpush1.msra.mxu0 0.0
        %1435 = vmatprep.subr.mxu0 0.0
        %1436 = vmatpush1.msra.mxu0 0.0
        %1437 = vmatprep.subr.mxu0 0.0
        %1438 = vmatpush1.msra.mxu0 0.0
        %1439 = vmatprep.subr.mxu0 0.0
        %1440 = vmatpush1.msra.mxu0 0.0
        %1441 = vmatprep.subr.mxu0 0.0
        %1442 = vmatpush1.msra.mxu0 0.0
        %1443 = vmatprep.subr.mxu0 0.0
        %1444 = vmatpush1.msra.mxu0 0.0
        %1445 = vmatprep.subr.mxu0 0.0
        %1446 = vmatpush1.msra.mxu0 0.0
        %1447 = vmatprep.subr.mxu0 0.0
        %1448 = vmatpush1.msra.mxu0 0.0
        %1449 = vmatprep.subr.mxu0 0.0
        %1450 = vmatpush1.msra.mxu0 0.0
        %1451 = vmatprep.subr.mxu0 0.0
        %1452 = vmatpush1.msra.mxu0 0.0
        %1453 = vmatprep.subr.mxu0 0.0
        %1454 = vmatpush1.msra.mxu0 0.0
        %1455 = vmatprep.subr.mxu0 0.0
        %1456 = vmatpush1.msra.mxu0 0.0
        %1457 = vmatprep.subr.mxu0 0.0
        %1458 = vmatpush1.msra.mxu0 0.0
        %1459 = vmatprep.subr.mxu0 0.0
        %1460 = vmatpush1.msra.mxu0 0.0
        %1461 = vmatprep.subr.mxu0 0.0
        %1462 = vmatpush1.msra.mxu0 0.0
        %1463 = vmatprep.subr.mxu0 0.0
        %1464 = vmatpush1.msra.mxu0 0.0
        %1465 = vmatprep.subr.mxu0 0.0
        %1466 = vmatpush1.msra.mxu0 0.0
        %1467 = vmatprep.subr.mxu0 0.0
        %1468 = vmatpush1.msra.mxu0 0.0
        %1469 = vmatprep.subr.mxu0 0.0
        %1470 = vmatpush1.msra.mxu0 0.0
        %1471 = vmatprep.mubr.f32.mxu0 0.0
        %1472 = vmatmul.mubr.f32.gmra.mrb[0].mxu0 %v1384
        %v1473 = vpop.f32.mrb[0].mxu0
        %v1474 = vadd.f32 0.0, %v1473
        %v1475 = vpop.f32.mrb[0].mxu0
        %1476 = vmatprep.mubr.f32.mxu0 0.0
        %1477 = vmatmul.mubr.f32.gmra.mrb[0].mxu0 %v1387
        %v1478 = vpop.f32.mrb[0].mxu0
        %v1479 = vadd.f32 0.0, %v1478
        %v1480 = vpop.f32.mrb[0].mxu0
        %1481 = vmatprep.mubr.f32.mxu0 0.0
        %1482 = vmatmul.mubr.f32.gmra.mrb[0].mxu0 %v1390
        %v1483 = vpop.f32.mrb[0].mxu0
        %v1484 = vadd.f32 0.0, %v1483
        %v1485 = vpop.f32.mrb[0].mxu0
        %1486 = vmatprep.mubr.f32.mxu0 0.0
        %1487 = vmatmul.mubr.f32.gmra.mrb[0].mxu0 %v1393
        %v1488 = vpop.f32.mrb[0].mxu0
        %v1489 = vadd.f32 0.0, %v1488
        %v1490 = vpop.f32.mrb[0].mxu0
        %1491 = vmatprep.mubr.f32.mxu0 0.0
        %1492 = vmatmul.mubr.f32.gmra.mrb[0].mxu0 %v1396
        %v1493 = vpop.f32.mrb[0].mxu0
        %v1494 = vadd.f32 0.0, %v1493
        %v1495 = vpop.f32.mrb[0].mxu0
        %1496 = vmatprep.mubr.f32.mxu0 0.0
        %1497 = vmatmul.mubr.f32.gmra.mrb[0].mxu0 %v1399
        %v1498 = vpop.f32.mrb[0].mxu0
        %v1499 = vadd.f32 0.0, %v1498
        %v1500 = vpop.f32.mrb[0].mxu0
        %1501 = vmatprep.mubr.f32.mxu0 0.0
        %1502 = vmatmul.mubr.f32.gmra.mrb[0].mxu0 %v1402
        %v1503 = vpop.f32.mrb[0].mxu0
        %v1504 = vadd.f32 0.0, %v1503
        %v1505 = vpop.f32.mrb[0].mxu0
        %1506 = vmatprep.mubr.f32.mxu0 0.0
        %1507 = vmatmul.mubr.f32.gmra.mrb[0].mxu0 %v1405
        %v1508 = vpop.f32.mrb[0].mxu0
        %v1509 = vadd.f32 0.0, %v1508
        %v1510 = vpop.f32.mrb[0].mxu0
        %1511 = vdwg.mxu0
        %1513 = vset.pattern.permute.xlu0 0
        %1514 = vperm.xlu0 %1513, %v1094
        %v1515 = vpop.permute.xlu0 %1514
        %v1517 = vadd.f32 %v1474, %v1515
        %v1518 = vadd.f32 %v1479, %v1515
        %v1519 = vadd.f32 %v1484, %v1515
        %v1520 = vadd.f32 %v1489, %v1515
        %v1521 = vadd.f32 %v1494, %v1515
        %v1522 = vadd.f32 %v1499, %v1515
        %v1523 = vadd.f32 %v1504, %v1515
        %v1524 = vadd.f32 %v1509, %v1515
        %v1525 = vsel %vm919, %v1517, -inf
        %v1526 = vrot.slane %v1525, 4
        %v1527 = vmax.f32 %v1525, %v1526
        %v1528 = vrot.slane %v1527, 2
        %v1529 = vmax.f32 %v1527, %v1528
        %v1530 = vrot.slane %v1529, 1
        %v1531 = vmax.f32 %v1529, %v1530
        %v1532 = vsel %vm919, %v1518, -inf
        %v1533 = vrot.slane %v1532, 4
        %v1534 = vmax.f32 %v1532, %v1533
        %v1535 = vrot.slane %v1534, 2
        %v1536 = vmax.f32 %v1534, %v1535
        %v1537 = vrot.slane %v1536, 1
        %v1538 = vmax.f32 %v1536, %v1537
        %v1539 = vsel %vm919, %v1519, -inf
        %v1540 = vrot.slane %v1539, 4
        %v1541 = vmax.f32 %v1539, %v1540
        %v1542 = vrot.slane %v1541, 2
        %v1543 = vmax.f32 %v1541, %v1542
        %v1544 = vrot.slane %v1543, 1
        %v1545 = vmax.f32 %v1543, %v1544
        %v1546 = vsel %vm919, %v1520, -inf
        %v1547 = vrot.slane %v1546, 4
        %v1548 = vmax.f32 %v1546, %v1547
        %v1549 = vrot.slane %v1548, 2
        %v1550 = vmax.f32 %v1548, %v1549
        %v1551 = vrot.slane %v1550, 1
        %v1552 = vmax.f32 %v1550, %v1551
        %v1553 = vsel %vm919, %v1521, -inf
        %v1554 = vrot.slane %v1553, 4
        %v1555 = vmax.f32 %v1553, %v1554
        %v1556 = vrot.slane %v1555, 2
        %v1557 = vmax.f32 %v1555, %v1556
        %v1558 = vrot.slane %v1557, 1
        %v1559 = vmax.f32 %v1557, %v1558
        %v1560 = vsel %vm919, %v1522, -inf
        %v1561 = vrot.slane %v1560, 4
        %v1562 = vmax.f32 %v1560, %v1561
        %v1563 = vrot.slane %v1562, 2
        %v1564 = vmax.f32 %v1562, %v1563
        %v1565 = vrot.slane %v1564, 1
        %v1566 = vmax.f32 %v1564, %v1565
        %v1567 = vsel %vm919, %v1523, -inf
        %v1568 = vrot.slane %v1567, 4
        %v1569 = vmax.f32 %v1567, %v1568
        %v1570 = vrot.slane %v1569, 2
        %v1571 = vmax.f32 %v1569, %v1570
        %v1572 = vrot.slane %v1571, 1
        %v1573 = vmax.f32 %v1571, %v1572
        %v1574 = vsel %vm919, %v1524, -inf
        %v1575 = vrot.slane %v1574, 4
        %v1576 = vmax.f32 %v1574, %v1575
        %v1577 = vrot.slane %v1576, 2
        %v1578 = vmax.f32 %v1576, %v1577
        %v1579 = vrot.slane %v1578, 1
        %v1580 = vmax.f32 %v1578, %v1579
        %v1581 = vsub.f32 %v1517, %v1531
        %v1582 = vsub.f32 %v1518, %v1538
        %v1583 = vsub.f32 %v1519, %v1545
        %v1584 = vsub.f32 %v1520, %v1552
        %v1585 = vsub.f32 %v1521, %v1559
        %v1586 = vsub.f32 %v1522, %v1566
        %v1587 = vsub.f32 %v1523, %v1573
        %v1588 = vsub.f32 %v1524, %v1580
        %v1589 = vmul.f32 %v1581, 1.442695
        %v1590 = vpow.pop %v1589
        %v1591 = vmul.f32 %v1582, 1.442695
        %v1592 = vpow.pop %v1591
        %v1593 = vmul.f32 %v1583, 1.442695
        %v1594 = vpow.pop %v1593
        %v1595 = vmul.f32 %v1584, 1.442695
        %v1596 = vpow.pop %v1595
        %v1597 = vmul.f32 %v1585, 1.442695
        %v1598 = vpow.pop %v1597
        %v1599 = vmul.f32 %v1586, 1.442695
        %v1600 = vpow.pop %v1599
        %v1601 = vmul.f32 %v1587, 1.442695
        %v1602 = vpow.pop %v1601
        %v1603 = vmul.f32 %v1588, 1.442695
        %v1604 = vpow.pop %v1603
        %v1605 = vsel %vm919, %v1590, 0.0
        %v1606 = vrot.slane %v1605, 4
        %v1607 = vadd.f32 %v1605, %v1606
        %v1608 = vrot.slane %v1607, 2
        %v1609 = vadd.f32 %v1607, %v1608
        %v1610 = vrot.slane %v1609, 1
        %v1611 = vadd.f32 %v1609, %v1610
        %v1612 = vsel %vm919, %v1592, 0.0
        %v1613 = vrot.slane %v1612, 4
        %v1614 = vadd.f32 %v1612, %v1613
        %v1615 = vrot.slane %v1614, 2
        %v1616 = vadd.f32 %v1614, %v1615
        %v1617 = vrot.slane %v1616, 1
        %v1618 = vadd.f32 %v1616, %v1617
        %v1619 = vsel %vm919, %v1594, 0.0
        %v1620 = vrot.slane %v1619, 4
        %v1621 = vadd.f32 %v1619, %v1620
        %v1622 = vrot.slane %v1621, 2
        %v1623 = vadd.f32 %v1621, %v1622
        %v1624 = vrot.slane %v1623, 1
        %v1625 = vadd.f32 %v1623, %v1624
        %v1626 = vsel %vm919, %v1596, 0.0
        %v1627 = vrot.slane %v1626, 4
        %v1628 = vadd.f32 %v1626, %v1627
        %v1629 = vrot.slane %v1628, 2
        %v1630 = vadd.f32 %v1628, %v1629
        %v1631 = vrot.slane %v1630, 1
        %v1632 = vadd.f32 %v1630, %v1631
        %v1633 = vsel %vm919, %v1598, 0.0
        %v1634 = vrot.slane %v1633, 4
        %v1635 = vadd.f32 %v1633, %v1634
        %v1636 = vrot.slane %v1635, 2
        %v1637 = vadd.f32 %v1635, %v1636
        %v1638 = vrot.slane %v1637, 1
        %v1639 = vadd.f32 %v1637, %v1638
        %v1640 = vsel %vm919, %v1600, 0.0
        %v1641 = vrot.slane %v1640, 4
        %v1642 = vadd.f32 %v1640, %v1641
        %v1643 = vrot.slane %v1642, 2
        %v1644 = vadd.f32 %v1642, %v1643
        %v1645 = vrot.slane %v1644, 1
        %v1646 = vadd.f32 %v1644, %v1645
        %v1647 = vsel %vm919, %v1602, 0.0
        %v1648 = vrot.slane %v1647, 4
        %v1649 = vadd.f32 %v1647, %v1648
        %v1650 = vrot.slane %v1649, 2
        %v1651 = vadd.f32 %v1649, %v1650
        %v1652 = vrot.slane %v1651, 1
        %v1653 = vadd.f32 %v1651, %v1652
        %v1654 = vsel %vm919, %v1604, 0.0
        %v1655 = vrot.slane %v1654, 4
        %v1656 = vadd.f32 %v1654, %v1655
        %v1657 = vrot.slane %v1656, 2
        %v1658 = vadd.f32 %v1656, %v1657
        %v1659 = vrot.slane %v1658, 1
        %v1660 = vadd.f32 %v1658, %v1659
        %v1661 = vrcp.pop %v1611
        %v1662 = vrcp.pop %v1618
        %v1663 = vrcp.pop %v1625
        %v1664 = vrcp.pop %v1632
        %v1665 = vrcp.pop %v1639
        %v1666 = vrcp.pop %v1646
        %v1667 = vrcp.pop %v1653
        %v1668 = vrcp.pop %v1660
        %v1669 = vmul.f32 %v1590, %v1661
        %v1670 = vmul.f32 %v1592, %v1662
        %v1671 = vmul.f32 %v1594, %v1663
        %v1672 = vmul.f32 %v1596, %v1664
        %v1673 = vmul.f32 %v1598, %v1665
        %v1674 = vmul.f32 %v1600, %v1666
        %v1675 = vmul.f32 %v1602, %v1667
        %v1676 = vmul.f32 %v1604, %v1668
        %v1677 = vmul.f32 %v1669, %v1086
        %v1678 = vmul.f32 %v1670, %v1086
        %v1679 = vmul.f32 %v1671, %v1086
        %v1680 = vmul.f32 %v1672, %v1086
        %v1681 = vmul.f32 %v1673, %v1086
        %v1682 = vmul.f32 %v1674, %v1086
        %v1683 = vmul.f32 %v1675, %v1086
        %v1684 = vmul.f32 %v1676, %v1086
        %v1685 = vsel %vm919, %v1677, 0.0
        %v1686 = vrot.slane %v1685, 4
        %v1687 = vadd.f32 %v1685, %v1686
        %v1688 = vrot.slane %v1687, 2
        %v1689 = vadd.f32 %v1687, %v1688
        %v1690 = vrot.slane %v1689, 1
        %v1691 = vadd.f32 %v1689, %v1690
        %v1692 = vsel %vm919, %v1678, 0.0
        %v1693 = vrot.slane %v1692, 4
        %v1694 = vadd.f32 %v1692, %v1693
        %v1695 = vrot.slane %v1694, 2
        %v1696 = vadd.f32 %v1694, %v1695
        %v1697 = vrot.slane %v1696, 1
        %v1698 = vadd.f32 %v1696, %v1697
        %v1699 = vsel %vm919, %v1679, 0.0
        %v1700 = vrot.slane %v1699, 4
        %v1701 = vadd.f32 %v1699, %v1700
        %v1702 = vrot.slane %v1701, 2
        %v1703 = vadd.f32 %v1701, %v1702
        %v1704 = vrot.slane %v1703, 1
        %v1705 = vadd.f32 %v1703, %v1704
        %v1706 = vsel %vm919, %v1680, 0.0
        %v1707 = vrot.slane %v1706, 4
        %v1708 = vadd.f32 %v1706, %v1707
        %v1709 = vrot.slane %v1708, 2
        %v1710 = vadd.f32 %v1708, %v1709
        %v1711 = vrot.slane %v1710, 1
        %v1712 = vadd.f32 %v1710, %v1711
        %v1713 = vsel %vm919, %v1681, 0.0
        %v1714 = vrot.slane %v1713, 4
        %v1715 = vadd.f32 %v1713, %v1714
        %v1716 = vrot.slane %v1715, 2
        %v1717 = vadd.f32 %v1715, %v1716
        %v1718 = vrot.slane %v1717, 1
        %v1719 = vadd.f32 %v1717, %v1718
        %v1720 = vsel %vm919, %v1682, 0.0
        %v1721 = vrot.slane %v1720, 4
        %v1722 = vadd.f32 %v1720, %v1721
        %v1723 = vrot.slane %v1722, 2
        %v1724 = vadd.f32 %v1722, %v1723
        %v1725 = vrot.slane %v1724, 1
        %v1726 = vadd.f32 %v1724, %v1725
        %v1727 = vsel %vm919, %v1683, 0.0
        %v1728 = vrot.slane %v1727, 4
        %v1729 = vadd.f32 %v1727, %v1728
        %v1730 = vrot.slane %v1729, 2
        %v1731 = vadd.f32 %v1729, %v1730
        %v1732 = vrot.slane %v1731, 1
        %v1733 = vadd.f32 %v1731, %v1732
        %v1734 = vsel %vm919, %v1684, 0.0
        %v1735 = vrot.slane %v1734, 4
        %v1736 = vadd.f32 %v1734, %v1735
        %v1737 = vrot.slane %v1736, 2
        %v1738 = vadd.f32 %v1736, %v1737
        %v1739 = vrot.slane %v1738, 1
        %v1740 = vadd.f32 %v1738, %v1739
        %1741 = vmatprep.subr.mxu0 0.0
        %1742 = vmatpush1.msra.mxu0 %v961
        %1743 = vmatprep.subr.mxu0 0.0
        %1744 = vmatpush1.msra.mxu0 0.0
        %1745 = vmatprep.subr.mxu0 0.0
        %1746 = vmatpush1.msra.mxu0 0.0
        %1747 = vmatprep.subr.mxu0 0.0
        %1748 = vmatpush1.msra.mxu0 0.0
        %1749 = vmatprep.subr.mxu0 0.0
        %1750 = vmatpush1.msra.mxu0 0.0
        %1751 = vmatprep.subr.mxu0 0.0
        %1752 = vmatpush1.msra.mxu0 0.0
        %1753 = vmatprep.subr.mxu0 0.0
        %1754 = vmatpush1.msra.mxu0 0.0
        %1755 = vmatprep.subr.mxu0 0.0
        %1756 = vmatpush1.msra.mxu0 0.0
        %1757 = vmatprep.subr.mxu0 0.0
        %1758 = vmatpush1.msra.mxu0 0.0
        %1759 = vmatprep.subr.mxu0 0.0
        %1760 = vmatpush1.msra.mxu0 0.0
        %1761 = vmatprep.subr.mxu0 0.0
        %1762 = vmatpush1.msra.mxu0 0.0
        %1763 = vmatprep.subr.mxu0 0.0
        %1764 = vmatpush1.msra.mxu0 0.0
        %1765 = vmatprep.subr.mxu0 0.0
        %1766 = vmatpush1.msra.mxu0 0.0
        %1767 = vmatprep.subr.mxu0 0.0
        %1768 = vmatpush1.msra.mxu0 0.0
        %1769 = vmatprep.subr.mxu0 0.0
        %1770 = vmatpush1.msra.mxu0 0.0
        %1771 = vmatprep.subr.mxu0 0.0
        %1772 = vmatpush1.msra.mxu0 0.0
        %1773 = vmatprep.subr.mxu0 0.0
        %1774 = vmatpush1.msra.mxu0 0.0
        %1775 = vmatprep.subr.mxu0 0.0
        %1776 = vmatpush1.msra.mxu0 0.0
        %1777 = vmatprep.subr.mxu0 0.0
        %1778 = vmatpush1.msra.mxu0 0.0
        %1779 = vmatprep.subr.mxu0 0.0
        %1780 = vmatpush1.msra.mxu0 0.0
        %1781 = vmatprep.subr.mxu0 0.0
        %1782 = vmatpush1.msra.mxu0 0.0
        %1783 = vmatprep.subr.mxu0 0.0
        %1784 = vmatpush1.msra.mxu0 0.0
        %1785 = vmatprep.subr.mxu0 0.0
        %1786 = vmatpush1.msra.mxu0 0.0
        %1787 = vmatprep.subr.mxu0 0.0
        %1788 = vmatpush1.msra.mxu0 0.0
        %1789 = vmatprep.subr.mxu0 0.0
        %1790 = vmatpush1.msra.mxu0 0.0
        %1791 = vmatprep.subr.mxu0 0.0
        %1792 = vmatpush1.msra.mxu0 0.0
        %1793 = vmatprep.subr.mxu0 0.0
        %1794 = vmatpush1.msra.mxu0 0.0
        %1795 = vmatprep.subr.mxu0 0.0
        %1796 = vmatpush1.msra.mxu0 0.0
        %1797 = vmatprep.subr.mxu0 0.0
        %1798 = vmatpush1.msra.mxu0 0.0
        %1799 = vmatprep.subr.mxu0 0.0
        %1800 = vmatpush1.msra.mxu0 0.0
        %1801 = vmatprep.subr.mxu0 0.0
        %1802 = vmatpush1.msra.mxu0 0.0
        %1803 = vmatprep.subr.mxu0 0.0
        %1804 = vmatpush1.msra.mxu0 0.0
        %1805 = vmatprep.mubr.f32.mxu0 0.0
        %1806 = vmatmul.mubr.f32.gmra.mrb[0].mxu0 %v1118
        %v1807 = vpop.f32.mrb[0].mxu0
        %v1808 = vadd.f32 0.0, %v1807
        %v1809 = vpop.f32.mrb[0].mxu0
        %1810 = vmatprep.mubr.f32.mxu0 0.0
        %1811 = vmatmul.mubr.f32.gmra.mrb[0].mxu0 %v1121
        %v1812 = vpop.f32.mrb[0].mxu0
        %v1813 = vadd.f32 0.0, %v1812
        %v1814 = vpop.f32.mrb[0].mxu0
        %1815 = vmatprep.mubr.f32.mxu0 0.0
        %1816 = vmatmul.mubr.f32.gmra.mrb[0].mxu0 %v1124
        %v1817 = vpop.f32.mrb[0].mxu0
        %v1818 = vadd.f32 0.0, %v1817
        %v1819 = vpop.f32.mrb[0].mxu0
        %1820 = vmatprep.mubr.f32.mxu0 0.0
        %1821 = vmatmul.mubr.f32.gmra.mrb[0].mxu0 %v1127
        %v1822 = vpop.f32.mrb[0].mxu0
        %v1823 = vadd.f32 0.0, %v1822
        %v1824 = vpop.f32.mrb[0].mxu0
        %1825 = vmatprep.mubr.f32.mxu0 0.0
        %1826 = vmatmul.mubr.f32.gmra.mrb[0].mxu0 %v1130
        %v1827 = vpop.f32.mrb[0].mxu0
        %v1828 = vadd.f32 0.0, %v1827
        %v1829 = vpop.f32.mrb[0].mxu0
        %1830 = vmatprep.mubr.f32.mxu0 0.0
        %1831 = vmatmul.mubr.f32.gmra.mrb[0].mxu0 %v1133
        %v1832 = vpop.f32.mrb[0].mxu0
        %v1833 = vadd.f32 0.0, %v1832
        %v1834 = vpop.f32.mrb[0].mxu0
        %1835 = vmatprep.mubr.f32.mxu0 0.0
        %1836 = vmatmul.mubr.f32.gmra.mrb[0].mxu0 %v1136
        %v1837 = vpop.f32.mrb[0].mxu0
        %v1838 = vadd.f32 0.0, %v1837
        %v1839 = vpop.f32.mrb[0].mxu0
        %1840 = vmatprep.mubr.f32.mxu0 0.0
        %1841 = vmatmul.mubr.f32.gmra.mrb[0].mxu0 %v1139
        %v1842 = vpop.f32.mrb[0].mxu0
        %v1843 = vadd.f32 0.0, %v1842
        %v1844 = vpop.f32.mrb[0].mxu0
        %1845 = vdwg.mxu0
        %1846 = vmatprep.subr.mxu0 0.0
        %1847 = vmatpush1.msra.mxu0 %v1025
        %1848 = vmatprep.subr.mxu0 0.0
        %1849 = vmatpush1.msra.mxu0 0.0
        %1850 = vmatprep.subr.mxu0 0.0
        %1851 = vmatpush1.msra.mxu0 0.0
        %1852 = vmatprep.subr.mxu0 0.0
        %1853 = vmatpush1.msra.mxu0 0.0
        %1854 = vmatprep.subr.mxu0 0.0
        %1855 = vmatpush1.msra.mxu0 0.0
        %1856 = vmatprep.subr.mxu0 0.0
        %1857 = vmatpush1.msra.mxu0 0.0
        %1858 = vmatprep.subr.mxu0 0.0
        %1859 = vmatpush1.msra.mxu0 0.0
        %1860 = vmatprep.subr.mxu0 0.0
        %1861 = vmatpush1.msra.mxu0 0.0
        %1862 = vmatprep.subr.mxu0 0.0
        %1863 = vmatpush1.msra.mxu0 0.0
        %1864 = vmatprep.subr.mxu0 0.0
        %1865 = vmatpush1.msra.mxu0 0.0
        %1866 = vmatprep.subr.mxu0 0.0
        %1867 = vmatpush1.msra.mxu0 0.0
        %1868 = vmatprep.subr.mxu0 0.0
        %1869 = vmatpush1.msra.mxu0 0.0
        %1870 = vmatprep.subr.mxu0 0.0
        %1871 = vmatpush1.msra.mxu0 0.0
        %1872 = vmatprep.subr.mxu0 0.0
        %1873 = vmatpush1.msra.mxu0 0.0
        %1874 = vmatprep.subr.mxu0 0.0
        %1875 = vmatpush1.msra.mxu0 0.0
        %1876 = vmatprep.subr.mxu0 0.0
        %1877 = vmatpush1.msra.mxu0 0.0
        %1878 = vmatprep.subr.mxu0 0.0
        %1879 = vmatpush1.msra.mxu0 0.0
        %1880 = vmatprep.subr.mxu0 0.0
        %1881 = vmatpush1.msra.mxu0 0.0
        %1882 = vmatprep.subr.mxu0 0.0
        %1883 = vmatpush1.msra.mxu0 0.0
        %1884 = vmatprep.subr.mxu0 0.0
        %1885 = vmatpush1.msra.mxu0 0.0
        %1886 = vmatprep.subr.mxu0 0.0
        %1887 = vmatpush1.msra.mxu0 0.0
        %1888 = vmatprep.subr.mxu0 0.0
        %1889 = vmatpush1.msra.mxu0 0.0
        %1890 = vmatprep.subr.mxu0 0.0
        %1891 = vmatpush1.msra.mxu0 0.0
        %1892 = vmatprep.subr.mxu0 0.0
        %1893 = vmatpush1.msra.mxu0 0.0
        %1894 = vmatprep.subr.mxu0 0.0
        %1895 = vmatpush1.msra.mxu0 0.0
        %1896 = vmatprep.subr.mxu0 0.0
        %1897 = vmatpush1.msra.mxu0 0.0
        %1898 = vmatprep.subr.mxu0 0.0
        %1899 = vmatpush1.msra.mxu0 0.0
        %1900 = vmatprep.subr.mxu0 0.0
        %1901 = vmatpush1.msra.mxu0 0.0
        %1902 = vmatprep.subr.mxu0 0.0
        %1903 = vmatpush1.msra.mxu0 0.0
        %1904 = vmatprep.subr.mxu0 0.0
        %1905 = vmatpush1.msra.mxu0 0.0
        %1906 = vmatprep.subr.mxu0 0.0
        %1907 = vmatpush1.msra.mxu0 0.0
        %1908 = vmatprep.subr.mxu0 0.0
        %1909 = vmatpush1.msra.mxu0 0.0
        %1910 = vmatprep.mubr.f32.mxu0 0.0
        %1911 = vmatmul.mubr.f32.gmra.mrb[0].mxu0 %v1247
        %v1912 = vpop.f32.mrb[0].mxu0
        %v1913 = vadd.f32 0.0, %v1912
        %v1914 = vpop.f32.mrb[0].mxu0
        %1915 = vmatprep.mubr.f32.mxu0 0.0
        %1916 = vmatmul.mubr.f32.gmra.mrb[0].mxu0 %v1250
        %v1917 = vpop.f32.mrb[0].mxu0
        %v1918 = vadd.f32 0.0, %v1917
        %v1919 = vpop.f32.mrb[0].mxu0
        %1920 = vmatprep.mubr.f32.mxu0 0.0
        %1921 = vmatmul.mubr.f32.gmra.mrb[0].mxu0 %v1253
        %v1922 = vpop.f32.mrb[0].mxu0
        %v1923 = vadd.f32 0.0, %v1922
        %v1924 = vpop.f32.mrb[0].mxu0
        %1925 = vmatprep.mubr.f32.mxu0 0.0
        %1926 = vmatmul.mubr.f32.gmra.mrb[0].mxu0 %v1256
        %v1927 = vpop.f32.mrb[0].mxu0
        %v1928 = vadd.f32 0.0, %v1927
        %v1929 = vpop.f32.mrb[0].mxu0
        %1930 = vmatprep.mubr.f32.mxu0 0.0
        %1931 = vmatmul.mubr.f32.gmra.mrb[0].mxu0 %v1259
        %v1932 = vpop.f32.mrb[0].mxu0
        %v1933 = vadd.f32 0.0, %v1932
        %v1934 = vpop.f32.mrb[0].mxu0
        %1935 = vmatprep.mubr.f32.mxu0 0.0
        %1936 = vmatmul.mubr.f32.gmra.mrb[0].mxu0 %v1262
        %v1937 = vpop.f32.mrb[0].mxu0
        %v1938 = vadd.f32 0.0, %v1937
        %v1939 = vpop.f32.mrb[0].mxu0
        %1940 = vmatprep.mubr.f32.mxu0 0.0
        %1941 = vmatmul.mubr.f32.gmra.mrb[0].mxu0 %v1265
        %v1942 = vpop.f32.mrb[0].mxu0
        %v1943 = vadd.f32 0.0, %v1942
        %v1944 = vpop.f32.mrb[0].mxu0
        %1945 = vmatprep.mubr.f32.mxu0 0.0
        %1946 = vmatmul.mubr.f32.gmra.mrb[0].mxu0 %v1268
        %v1947 = vpop.f32.mrb[0].mxu0
        %v1948 = vadd.f32 0.0, %v1947
        %v1949 = vpop.f32.mrb[0].mxu0
        %1950 = vdwg.mxu0
        %v1951 = vmul.f32 %v1808, %v1913
        %v1952 = vmul.f32 %v1813, %v1918
        %v1953 = vmul.f32 %v1818, %v1923
        %v1954 = vmul.f32 %v1823, %v1928
        %v1955 = vmul.f32 %v1828, %v1933
        %v1956 = vmul.f32 %v1833, %v1938
        %v1957 = vmul.f32 %v1838, %v1943
        %v1958 = vmul.f32 %v1843, %v1948
        %v1960 = vsel %vm919, %v1951, 0
        %v1963 = vsel %vm919, %v1952, 0
        %v1966 = vsel %vm919, %v1953, 0
        %v1969 = vsel %vm919, %v1954, 0
        %v1972 = vsel %vm919, %v1955, 0
        %v1975 = vsel %vm919, %v1956, 0
        %v1978 = vsel %vm919, %v1957, 0
        %v1981 = vsel %vm919, %v1958, 0
        %1983 = vmatprep.subr.mxu0 0.0
        %1984 = vmatpush1.msra.mxu0 %v1096
        %1985 = vmatprep.subr.mxu0 0.0
        %1986 = vmatpush1.msra.mxu0 %v1097
        %1987 = vmatprep.subr.mxu0 0.0
        %1988 = vmatpush1.msra.mxu0 %v1098
        %1989 = vmatprep.subr.mxu0 0.0
        %1990 = vmatpush1.msra.mxu0 %v1099
        %1991 = vmatprep.subr.mxu0 0.0
        %1992 = vmatpush1.msra.mxu0 0.0
        %1993 = vmatprep.subr.mxu0 0.0
        %1994 = vmatpush1.msra.mxu0 0.0
        %1995 = vmatprep.subr.mxu0 0.0
        %1996 = vmatpush1.msra.mxu0 0.0
        %1997 = vmatprep.subr.mxu0 0.0
        %1998 = vmatpush1.msra.mxu0 0.0
        %1999 = vmatprep.subr.mxu0 0.0
        %2000 = vmatpush1.msra.mxu0 0.0
        %2001 = vmatprep.subr.mxu0 0.0
        %2002 = vmatpush1.msra.mxu0 0.0
        %2003 = vmatprep.subr.mxu0 0.0
        %2004 = vmatpush1.msra.mxu0 0.0
        %2005 = vmatprep.subr.mxu0 0.0
        %2006 = vmatpush1.msra.mxu0 0.0
        %2007 = vmatprep.subr.mxu0 0.0
        %2008 = vmatpush1.msra.mxu0 0.0
        %2009 = vmatprep.subr.mxu0 0.0
        %2010 = vmatpush1.msra.mxu0 0.0
        %2011 = vmatprep.subr.mxu0 0.0
        %2012 = vmatpush1.msra.mxu0 0.0
        %2013 = vmatprep.subr.mxu0 0.0
        %2014 = vmatpush1.msra.mxu0 0.0
        %2015 = vmatprep.subr.mxu0 0.0
        %2016 = vmatpush1.msra.mxu0 0.0
        %2017 = vmatprep.subr.mxu0 0.0
        %2018 = vmatpush1.msra.mxu0 0.0
        %2019 = vmatprep.subr.mxu0 0.0
        %2020 = vmatpush1.msra.mxu0 0.0
        %2021 = vmatprep.subr.mxu0 0.0
        %2022 = vmatpush1.msra.mxu0 0.0
        %2023 = vmatprep.subr.mxu0 0.0
        %2024 = vmatpush1.msra.mxu0 0.0
        %2025 = vmatprep.subr.mxu0 0.0
        %2026 = vmatpush1.msra.mxu0 0.0
        %2027 = vmatprep.subr.mxu0 0.0
        %2028 = vmatpush1.msra.mxu0 0.0
        %2029 = vmatprep.subr.mxu0 0.0
        %2030 = vmatpush1.msra.mxu0 0.0
        %2031 = vmatprep.subr.mxu0 0.0
        %2032 = vmatpush1.msra.mxu0 0.0
        %2033 = vmatprep.subr.mxu0 0.0
        %2034 = vmatpush1.msra.mxu0 0.0
        %2035 = vmatprep.subr.mxu0 0.0
        %2036 = vmatpush1.msra.mxu0 0.0
        %2037 = vmatprep.subr.mxu0 0.0
        %2038 = vmatpush1.msra.mxu0 0.0
        %2039 = vmatprep.subr.mxu0 0.0
        %2040 = vmatpush1.msra.mxu0 0.0
        %2041 = vmatprep.subr.mxu0 0.0
        %2042 = vmatpush1.msra.mxu0 0.0
        %2043 = vmatprep.subr.mxu0 0.0
        %2044 = vmatpush1.msra.mxu0 0.0
        %2045 = vmatprep.subr.mxu0 0.0
        %2046 = vmatpush1.msra.mxu0 0.0
        %2047 = vmatprep.mubr.f32.mxu0 0.0
        %2048 = vmatmul.mubr.f32.gmra.mrb[0].mxu0 %v1960
        %v2049 = vpop.f32.mrb[0].mxu0
        %v2050 = vadd.f32 0.0, %v2049
        %v2051 = vpop.f32.mrb[0].mxu0
        %2052 = vmatprep.mubr.f32.mxu0 0.0
        %2053 = vmatmul.mubr.f32.gmra.mrb[0].mxu0 %v1963
        %v2054 = vpop.f32.mrb[0].mxu0
        %v2055 = vadd.f32 0.0, %v2054
        %v2056 = vpop.f32.mrb[0].mxu0
        %2057 = vmatprep.mubr.f32.mxu0 0.0
        %2058 = vmatmul.mubr.f32.gmra.mrb[0].mxu0 %v1966
        %v2059 = vpop.f32.mrb[0].mxu0
        %v2060 = vadd.f32 0.0, %v2059
        %v2061 = vpop.f32.mrb[0].mxu0
        %2062 = vmatprep.mubr.f32.mxu0 0.0
        %2063 = vmatmul.mubr.f32.gmra.mrb[0].mxu0 %v1969
        %v2064 = vpop.f32.mrb[0].mxu0
        %v2065 = vadd.f32 0.0, %v2064
        %v2066 = vpop.f32.mrb[0].mxu0
        %2067 = vmatprep.mubr.f32.mxu0 0.0
        %2068 = vmatmul.mubr.f32.gmra.mrb[0].mxu0 %v1972
        %v2069 = vpop.f32.mrb[0].mxu0
        %v2070 = vadd.f32 0.0, %v2069
        %v2071 = vpop.f32.mrb[0].mxu0
        %2072 = vmatprep.mubr.f32.mxu0 0.0
        %2073 = vmatmul.mubr.f32.gmra.mrb[0].mxu0 %v1975
        %v2074 = vpop.f32.mrb[0].mxu0
        %v2075 = vadd.f32 0.0, %v2074
        %v2076 = vpop.f32.mrb[0].mxu0
        %2077 = vmatprep.mubr.f32.mxu0 0.0
        %2078 = vmatmul.mubr.f32.gmra.mrb[0].mxu0 %v1978
        %v2079 = vpop.f32.mrb[0].mxu0
        %v2080 = vadd.f32 0.0, %v2079
        %v2081 = vpop.f32.mrb[0].mxu0
        %2082 = vmatprep.mubr.f32.mxu0 0.0
        %2083 = vmatmul.mubr.f32.gmra.mrb[0].mxu0 %v1981
        %v2084 = vpop.f32.mrb[0].mxu0
        %v2085 = vadd.f32 0.0, %v2084
        %v2086 = vpop.f32.mrb[0].mxu0
        %2087 = vdwg.mxu0
        %2089 = vset.pattern.permute.xlu0 0
        %2090 = vperm.xlu0 %2089, %v1095
        %v2091 = vpop.permute.xlu0 %2090
        %v2093 = vadd.f32 %v2050, %v2091
        %v2094 = vadd.f32 %v2055, %v2091
        %v2095 = vadd.f32 %v2060, %v2091
        %v2096 = vadd.f32 %v2065, %v2091
        %v2097 = vadd.f32 %v2070, %v2091
        %v2098 = vadd.f32 %v2075, %v2091
        %v2099 = vadd.f32 %v2080, %v2091
        %v2100 = vadd.f32 %v2085, %v2091
        %v2101 = vsel %vm919, %v2093, -inf
        %v2102 = vrot.slane %v2101, 4
        %v2103 = vmax.f32 %v2101, %v2102
        %v2104 = vrot.slane %v2103, 2
        %v2105 = vmax.f32 %v2103, %v2104
        %v2106 = vrot.slane %v2105, 1
        %v2107 = vmax.f32 %v2105, %v2106
        %v2108 = vsel %vm919, %v2094, -inf
        %v2109 = vrot.slane %v2108, 4
        %v2110 = vmax.f32 %v2108, %v2109
        %v2111 = vrot.slane %v2110, 2
        %v2112 = vmax.f32 %v2110, %v2111
        %v2113 = vrot.slane %v2112, 1
        %v2114 = vmax.f32 %v2112, %v2113
        %v2115 = vsel %vm919, %v2095, -inf
        %v2116 = vrot.slane %v2115, 4
        %v2117 = vmax.f32 %v2115, %v2116
        %v2118 = vrot.slane %v2117, 2
        %v2119 = vmax.f32 %v2117, %v2118
        %v2120 = vrot.slane %v2119, 1
        %v2121 = vmax.f32 %v2119, %v2120
        %v2122 = vsel %vm919, %v2096, -inf
        %v2123 = vrot.slane %v2122, 4
        %v2124 = vmax.f32 %v2122, %v2123
        %v2125 = vrot.slane %v2124, 2
        %v2126 = vmax.f32 %v2124, %v2125
        %v2127 = vrot.slane %v2126, 1
        %v2128 = vmax.f32 %v2126, %v2127
        %v2129 = vsel %vm919, %v2097, -inf
        %v2130 = vrot.slane %v2129, 4
        %v2131 = vmax.f32 %v2129, %v2130
        %v2132 = vrot.slane %v2131, 2
        %v2133 = vmax.f32 %v2131, %v2132
        %v2134 = vrot.slane %v2133, 1
        %v2135 = vmax.f32 %v2133, %v2134
        %v2136 = vsel %vm919, %v2098, -inf
        %v2137 = vrot.slane %v2136, 4
        %v2138 = vmax.f32 %v2136, %v2137
        %v2139 = vrot.slane %v2138, 2
        %v2140 = vmax.f32 %v2138, %v2139
        %v2141 = vrot.slane %v2140, 1
        %v2142 = vmax.f32 %v2140, %v2141
        %v2143 = vsel %vm919, %v2099, -inf
        %v2144 = vrot.slane %v2143, 4
        %v2145 = vmax.f32 %v2143, %v2144
        %v2146 = vrot.slane %v2145, 2
        %v2147 = vmax.f32 %v2145, %v2146
        %v2148 = vrot.slane %v2147, 1
        %v2149 = vmax.f32 %v2147, %v2148
        %v2150 = vsel %vm919, %v2100, -inf
        %v2151 = vrot.slane %v2150, 4
        %v2152 = vmax.f32 %v2150, %v2151
        %v2153 = vrot.slane %v2152, 2
        %v2154 = vmax.f32 %v2152, %v2153
        %v2155 = vrot.slane %v2154, 1
        %v2156 = vmax.f32 %v2154, %v2155
        %v2157 = vsub.f32 %v2093, %v2107
        %v2158 = vsub.f32 %v2094, %v2114
        %v2159 = vsub.f32 %v2095, %v2121
        %v2160 = vsub.f32 %v2096, %v2128
        %v2161 = vsub.f32 %v2097, %v2135
        %v2162 = vsub.f32 %v2098, %v2142
        %v2163 = vsub.f32 %v2099, %v2149
        %v2164 = vsub.f32 %v2100, %v2156
        %v2165 = vmul.f32 %v2157, 1.442695
        %v2166 = vpow.pop %v2165
        %v2167 = vmul.f32 %v2158, 1.442695
        %v2168 = vpow.pop %v2167
        %v2169 = vmul.f32 %v2159, 1.442695
        %v2170 = vpow.pop %v2169
        %v2171 = vmul.f32 %v2160, 1.442695
        %v2172 = vpow.pop %v2171
        %v2173 = vmul.f32 %v2161, 1.442695
        %v2174 = vpow.pop %v2173
        %v2175 = vmul.f32 %v2162, 1.442695
        %v2176 = vpow.pop %v2175
        %v2177 = vmul.f32 %v2163, 1.442695
        %v2178 = vpow.pop %v2177
        %v2179 = vmul.f32 %v2164, 1.442695
        %v2180 = vpow.pop %v2179
        %v2181 = vsel %vm919, %v2166, 0.0
        %v2182 = vrot.slane %v2181, 4
        %v2183 = vadd.f32 %v2181, %v2182
        %v2184 = vrot.slane %v2183, 2
        %v2185 = vadd.f32 %v2183, %v2184
        %v2186 = vrot.slane %v2185, 1
        %v2187 = vadd.f32 %v2185, %v2186
        %v2188 = vsel %vm919, %v2168, 0.0
        %v2189 = vrot.slane %v2188, 4
        %v2190 = vadd.f32 %v2188, %v2189
        %v2191 = vrot.slane %v2190, 2
        %v2192 = vadd.f32 %v2190, %v2191
        %v2193 = vrot.slane %v2192, 1
        %v2194 = vadd.f32 %v2192, %v2193
        %v2195 = vsel %vm919, %v2170, 0.0
        %v2196 = vrot.slane %v2195, 4
        %v2197 = vadd.f32 %v2195, %v2196
        %v2198 = vrot.slane %v2197, 2
        %v2199 = vadd.f32 %v2197, %v2198
        %v2200 = vrot.slane %v2199, 1
        %v2201 = vadd.f32 %v2199, %v2200
        %v2202 = vsel %vm919, %v2172, 0.0
        %v2203 = vrot.slane %v2202, 4
        %v2204 = vadd.f32 %v2202, %v2203
        %v2205 = vrot.slane %v2204, 2
        %v2206 = vadd.f32 %v2204, %v2205
        %v2207 = vrot.slane %v2206, 1
        %v2208 = vadd.f32 %v2206, %v2207
        %v2209 = vsel %vm919, %v2174, 0.0
        %v2210 = vrot.slane %v2209, 4
        %v2211 = vadd.f32 %v2209, %v2210
        %v2212 = vrot.slane %v2211, 2
        %v2213 = vadd.f32 %v2211, %v2212
        %v2214 = vrot.slane %v2213, 1
        %v2215 = vadd.f32 %v2213, %v2214
        %v2216 = vsel %vm919, %v2176, 0.0
        %v2217 = vrot.slane %v2216, 4
        %v2218 = vadd.f32 %v2216, %v2217
        %v2219 = vrot.slane %v2218, 2
        %v2220 = vadd.f32 %v2218, %v2219
        %v2221 = vrot.slane %v2220, 1
        %v2222 = vadd.f32 %v2220, %v2221
        %v2223 = vsel %vm919, %v2178, 0.0
        %v2224 = vrot.slane %v2223, 4
        %v2225 = vadd.f32 %v2223, %v2224
        %v2226 = vrot.slane %v2225, 2
        %v2227 = vadd.f32 %v2225, %v2226
        %v2228 = vrot.slane %v2227, 1
        %v2229 = vadd.f32 %v2227, %v2228
        %v2230 = vsel %vm919, %v2180, 0.0
        %v2231 = vrot.slane %v2230, 4
        %v2232 = vadd.f32 %v2230, %v2231
        %v2233 = vrot.slane %v2232, 2
        %v2234 = vadd.f32 %v2232, %v2233
        %v2235 = vrot.slane %v2234, 1
        %v2236 = vadd.f32 %v2234, %v2235
        %v2237 = vrcp.pop %v2187
        %v2238 = vrcp.pop %v2194
        %v2239 = vrcp.pop %v2201
        %v2240 = vrcp.pop %v2208
        %v2241 = vrcp.pop %v2215
        %v2242 = vrcp.pop %v2222
        %v2243 = vrcp.pop %v2229
        %v2244 = vrcp.pop %v2236
        %v2245 = vmul.f32 %v2166, %v2237
        %v2246 = vmul.f32 %v2168, %v2238
        %v2247 = vmul.f32 %v2170, %v2239
        %v2248 = vmul.f32 %v2172, %v2240
        %v2249 = vmul.f32 %v2174, %v2241
        %v2250 = vmul.f32 %v2176, %v2242
        %v2251 = vmul.f32 %v2178, %v2243
        %v2252 = vmul.f32 %v2180, %v2244
        %v2253 = vmul.f32 %v2245, %v1089
        %v2254 = vmul.f32 %v2246, %v1089
        %v2255 = vmul.f32 %v2247, %v1089
        %v2256 = vmul.f32 %v2248, %v1089
        %v2257 = vmul.f32 %v2249, %v1089
        %v2258 = vmul.f32 %v2250, %v1089
        %v2259 = vmul.f32 %v2251, %v1089
        %v2260 = vmul.f32 %v2252, %v1089
        %v2261 = vsel %vm919, %v2253, 0.0
        %v2262 = vrot.slane %v2261, 4
        %v2263 = vadd.f32 %v2261, %v2262
        %v2264 = vrot.slane %v2263, 2
        %v2265 = vadd.f32 %v2263, %v2264
        %v2266 = vrot.slane %v2265, 1
        %v2267 = vadd.f32 %v2265, %v2266
        %v2268 = vsel %vm919, %v2254, 0.0
        %v2269 = vrot.slane %v2268, 4
        %v2270 = vadd.f32 %v2268, %v2269
        %v2271 = vrot.slane %v2270, 2
        %v2272 = vadd.f32 %v2270, %v2271
        %v2273 = vrot.slane %v2272, 1
        %v2274 = vadd.f32 %v2272, %v2273
        %v2275 = vsel %vm919, %v2255, 0.0
        %v2276 = vrot.slane %v2275, 4
        %v2277 = vadd.f32 %v2275, %v2276
        %v2278 = vrot.slane %v2277, 2
        %v2279 = vadd.f32 %v2277, %v2278
        %v2280 = vrot.slane %v2279, 1
        %v2281 = vadd.f32 %v2279, %v2280
        %v2282 = vsel %vm919, %v2256, 0.0
        %v2283 = vrot.slane %v2282, 4
        %v2284 = vadd.f32 %v2282, %v2283
        %v2285 = vrot.slane %v2284, 2
        %v2286 = vadd.f32 %v2284, %v2285
        %v2287 = vrot.slane %v2286, 1
        %v2288 = vadd.f32 %v2286, %v2287
        %v2289 = vsel %vm919, %v2257, 0.0
        %v2290 = vrot.slane %v2289, 4
        %v2291 = vadd.f32 %v2289, %v2290
        %v2292 = vrot.slane %v2291, 2
        %v2293 = vadd.f32 %v2291, %v2292
        %v2294 = vrot.slane %v2293, 1
        %v2295 = vadd.f32 %v2293, %v2294
        %v2296 = vsel %vm919, %v2258, 0.0
        %v2297 = vrot.slane %v2296, 4
        %v2298 = vadd.f32 %v2296, %v2297
        %v2299 = vrot.slane %v2298, 2
        %v2300 = vadd.f32 %v2298, %v2299
        %v2301 = vrot.slane %v2300, 1
        %v2302 = vadd.f32 %v2300, %v2301
        %v2303 = vsel %vm919, %v2259, 0.0
        %v2304 = vrot.slane %v2303, 4
        %v2305 = vadd.f32 %v2303, %v2304
        %v2306 = vrot.slane %v2305, 2
        %v2307 = vadd.f32 %v2305, %v2306
        %v2308 = vrot.slane %v2307, 1
        %v2309 = vadd.f32 %v2307, %v2308
        %v2310 = vsel %vm919, %v2260, 0.0
        %v2311 = vrot.slane %v2310, 4
        %v2312 = vadd.f32 %v2310, %v2311
        %v2313 = vrot.slane %v2312, 2
        %v2314 = vadd.f32 %v2312, %v2313
        %v2315 = vrot.slane %v2314, 1
        %v2316 = vadd.f32 %v2314, %v2315
        %vm2325 = vcmask 1041409
        %v2326 = vsel %vm2325, %v1698, %v1691
        %vm2327 = vcmask 1042434
        %v2328 = vsel %vm2327, %v1705, %v2326
        %vm2329 = vcmask 1043459
        %v2330 = vsel %vm2329, %v1712, %v2328
        %vm2331 = vcmask 1044484
        %v2332 = vsel %vm2331, %v1719, %v2330
        %vm2333 = vcmask 1045509
        %v2334 = vsel %vm2333, %v1726, %v2332
        %vm2335 = vcmask 1046534
        %v2336 = vsel %vm2335, %v1733, %v2334
        %vm2337 = vcmask 1047559
        %v2338 = vsel %vm2337, %v1740, %v2336
        %v2348 = vsel %vm2325, %v2274, %v2267
        %v2349 = vsel %vm2327, %v2281, %v2348
        %v2350 = vsel %vm2329, %v2288, %v2349
        %v2351 = vsel %vm2331, %v2295, %v2350
        %v2352 = vsel %vm2333, %v2302, %v2351
        %v2353 = vsel %vm2335, %v2309, %v2352
        %v2354 = vsel %vm2337, %v2316, %v2353
        %v2356 = vpack.c.bf16 %v2354, %v2338
        %v2357 = vld [vmem:[%s851] sm:$0xf]
        %v2358 = vld [vmem:[%s851 + $0x4] sm:$0xf]
        %v2359 = vld [vmem:[%s851 + $0x8] sm:$0xf]
        %v2360 = vld [vmem:[%s851 + $0xc] sm:$0xf]
        %v2361 = vld [vmem:[%s854] sm:$0x1]
        %v2363 = vlaneseq
        %v2364 = vshrl.u32 %v2363, 7
        %v2365 = vsub.s32 0, %v2364
        %v2366 = vrot.slane %v2361, %v2365
        %v2372 = vunpack.c.l.b16 %v2357
        %v2373 = vunpack.c.l.b16 %v2358
        %v2374 = vunpack.c.l.b16 %v2359
        %v2375 = vunpack.c.l.b16 %v2360
        %v2376 = vpack.c.b16 %v2373, %v2372
        %v2377 = vpack.c.b16 %v2375, %v2374
        %v2381 = vsel %vm919, %v2356, 0
        %2383 = vmatprep.subr.bf16.mxu0 0
        %2384 = vmatpush1.bf16.msra.mxu0 %v2376
        %2385 = vmatprep.subr.bf16.mxu0 0
        %2386 = vmatpush1.bf16.msra.mxu0 %v2377
        %2387 = vmatprep.subr.bf16.mxu0 0
        %2388 = vmatpush1.bf16.msra.mxu0 0
        %2389 = vmatprep.subr.bf16.mxu0 0
        %2390 = vmatpush1.bf16.msra.mxu0 0
        %2391 = vmatprep.subr.bf16.mxu0 0
        %2392 = vmatpush1.bf16.msra.mxu0 0
        %2393 = vmatprep.subr.bf16.mxu0 0
        %2394 = vmatpush1.bf16.msra.mxu0 0
        %2395 = vmatprep.subr.bf16.mxu0 0
        %2396 = vmatpush1.bf16.msra.mxu0 0
        %2397 = vmatprep.subr.bf16.mxu0 0
        %2398 = vmatpush1.bf16.msra.mxu0 0
        %2399 = vmatprep.subr.bf16.mxu0 0
        %2400 = vmatpush1.bf16.msra.mxu0 0
        %2401 = vmatprep.subr.bf16.mxu0 0
        %2402 = vmatpush1.bf16.msra.mxu0 0
        %2403 = vmatprep.subr.bf16.mxu0 0
        %2404 = vmatpush1.bf16.msra.mxu0 0
        %2405 = vmatprep.subr.bf16.mxu0 0
        %2406 = vmatpush1.bf16.msra.mxu0 0
        %2407 = vmatprep.subr.bf16.mxu0 0
        %2408 = vmatpush1.bf16.msra.mxu0 0
        %2409 = vmatprep.subr.bf16.mxu0 0
        %2410 = vmatpush1.bf16.msra.mxu0 0
        %2411 = vmatprep.subr.bf16.mxu0 0
        %2412 = vmatpush1.bf16.msra.mxu0 0
        %2413 = vmatprep.subr.bf16.mxu0 0
        %2414 = vmatpush1.bf16.msra.mxu0 0
        %2415 = vmatprep.mubr.bf16.mxu0 0
        %2416 = vmatmul.mubr.bf16.gmra.mrb[0].mxu0 %v2381
        %v2417 = vpop.f32.mrb[0].mxu0
        %v2418 = vadd.f32 %v2366, %v2417
        %v2419 = vpop.f32.mrb[0].mxu0
        %v2420 = vpop.f32.mrb[0].mxu0
        %v2421 = vadd.f32 %v2366, %v2420
        %v2422 = vpop.f32.mrb[0].mxu0
        %2423 = vdwg.mxu0
        %v2424 = vadd.f32 %v893, %v2418
        %v2425 = vadd.f32 %v894, %v2421
        %v2426 = vsel %vm919, %v2424, 0.0
        %2427 = vadd.xlane.f32.xlu0 %v2426
        %v2428 = vpop.xlane.xlu0 %2427
        %v2429 = vsel %vm919, %v2425, 0.0
        %2430 = vadd.xlane.f32.xlu0 %v2429
        %v2431 = vpop.xlane.xlu0 %2430
        %v2432 = vrcp.pop 32.0
        %v2433 = vmul.f32 %v2428, %v2432
        %v2434 = vmul.f32 %v2431, %v2432
        %v2435 = vsub.f32 %v2424, %v2433
        %v2436 = vsub.f32 %v2425, %v2434
        %v2437 = vmul.f32 %v2435, %v2435
        %v2438 = vmul.f32 %v2436, %v2436
        %v2439 = vsel %vm919, %v2437, 0.0
        %2440 = vadd.xlane.f32.xlu0 %v2439
        %v2441 = vpop.xlane.xlu0 %2440
        %v2442 = vsel %vm919, %v2438, 0.0
        %2443 = vadd.xlane.f32.xlu0 %v2442
        %v2444 = vpop.xlane.xlu0 %2443
        %v2445 = vmul.f32 %v2441, %v2432
        %v2446 = vmul.f32 %v2444, %v2432
        %v2447 = vadd.f32 %v2445, 1e-06
        %v2448 = vadd.f32 %v2446, 1e-06
        %v2449 = vrsqrt.pop %v2447
        %v2450 = vrsqrt.pop %v2448
        %v2451 = vmul.f32 %v2435, %v2449
        %v2452 = vmul.f32 %v2436, %v2450
        %v2453 = vld [vmem:[%s857] sm:$0x1]
        %v2455 = vlaneseq
        %v2456 = vshrl.u32 %v2455, 7
        %v2457 = vsub.s32 0, %v2456
        %v2458 = vrot.slane %v2453, %v2457
        %v2460 = vmul.f32 %v2451, %v2458
        %v2461 = vmul.f32 %v2452, %v2458
        %v2462 = vld [vmem:[%s860] sm:$0x1]
        %v2464 = vlaneseq
        %v2465 = vshrl.u32 %v2464, 7
        %v2466 = vsub.s32 0, %v2465
        %v2467 = vrot.slane %v2462, %v2466
        %v2469 = vadd.f32 %v2460, %v2467
        %v2470 = vadd.f32 %v2461, %v2467
        %v2471 = vpack.c.bf16 %v2470, %v2469
        %v2472 = vld [vmem:[%s865] sm:$0xf]
        %v2473 = vld [vmem:[%s865 + $0x4] sm:$0xf]
        %v2474 = vld [vmem:[%s865 + $0x8] sm:$0xf]
        %v2475 = vld [vmem:[%s865 + $0xc] sm:$0xf]
        %v2476 = vld [vmem:[%s868] sm:$0x1]
        %v2478 = vlaneseq
        %v2479 = vshrl.u32 %v2478, 7
        %v2480 = vsub.s32 0, %v2479
        %v2481 = vrot.slane %v2476, %v2480
        %v2487 = vunpack.c.l.b16 %v2472
        %v2488 = vunpack.c.l.b16 %v2473
        %v2489 = vunpack.c.l.b16 %v2474
        %v2490 = vunpack.c.l.b16 %v2475
        %v2491 = vpack.c.b16 %v2488, %v2487
        %v2492 = vpack.c.b16 %v2490, %v2489
        %v2496 = vsel %vm919, %v2471, 0
        %2498 = vmatprep.subr.bf16.mxu0 0
        %2499 = vmatpush1.bf16.msra.mxu0 %v2491
        %2500 = vmatprep.subr.bf16.mxu0 0
        %2501 = vmatpush1.bf16.msra.mxu0 %v2492
        %2502 = vmatprep.subr.bf16.mxu0 0
        %2503 = vmatpush1.bf16.msra.mxu0 0
        %2504 = vmatprep.subr.bf16.mxu0 0
        %2505 = vmatpush1.bf16.msra.mxu0 0
        %2506 = vmatprep.subr.bf16.mxu0 0
        %2507 = vmatpush1.bf16.msra.mxu0 0
        %2508 = vmatprep.subr.bf16.mxu0 0
        %2509 = vmatpush1.bf16.msra.mxu0 0
        %2510 = vmatprep.subr.bf16.mxu0 0
        %2511 = vmatpush1.bf16.msra.mxu0 0
        %2512 = vmatprep.subr.bf16.mxu0 0
        %2513 = vmatpush1.bf16.msra.mxu0 0
        %2514 = vmatprep.subr.bf16.mxu0 0
        %2515 = vmatpush1.bf16.msra.mxu0 0
        %2516 = vmatprep.subr.bf16.mxu0 0
        %2517 = vmatpush1.bf16.msra.mxu0 0
        %2518 = vmatprep.subr.bf16.mxu0 0
        %2519 = vmatpush1.bf16.msra.mxu0 0
        %2520 = vmatprep.subr.bf16.mxu0 0
        %2521 = vmatpush1.bf16.msra.mxu0 0
        %2522 = vmatprep.subr.bf16.mxu0 0
        %2523 = vmatpush1.bf16.msra.mxu0 0
        %2524 = vmatprep.subr.bf16.mxu0 0
        %2525 = vmatpush1.bf16.msra.mxu0 0
        %2526 = vmatprep.subr.bf16.mxu0 0
        %2527 = vmatpush1.bf16.msra.mxu0 0
        %2528 = vmatprep.subr.bf16.mxu0 0
        %2529 = vmatpush1.bf16.msra.mxu0 0
        %2530 = vmatprep.mubr.bf16.mxu0 0
        %2531 = vmatmul.mubr.bf16.gmra.mrb[0].mxu0 %v2496
        %v2532 = vpop.f32.mrb[0].mxu0
        %v2533 = vadd.f32 %v2481, %v2532
        %v2534 = vpop.f32.mrb[0].mxu0
        %v2535 = vpop.f32.mrb[0].mxu0
        %v2536 = vadd.f32 %v2481, %v2535
        %v2537 = vpop.f32.mrb[0].mxu0
        %2538 = vdwg.mxu0
        %v2539 = vmax.f32 %v2533, 0.0
        %v2540 = vmax.f32 %v2536, 0.0
        %v2541 = vpack.c.bf16 %v2540, %v2539
        %v2542 = vld [vmem:[%s873] sm:$0xf]
        %v2543 = vld [vmem:[%s873 + $0x4] sm:$0xf]
        %v2544 = vld [vmem:[%s873 + $0x8] sm:$0xf]
        %v2545 = vld [vmem:[%s873 + $0xc] sm:$0xf]
        %v2546 = vld [vmem:[%s873 + $0x10] sm:$0xf]
        %v2547 = vld [vmem:[%s873 + $0x14] sm:$0xf]
        %v2548 = vld [vmem:[%s873 + $0x18] sm:$0xf]
        %v2549 = vld [vmem:[%s873 + $0x1c] sm:$0xf]
        %v2550 = vld [vmem:[%s876] sm:$0x1]
        %v2552 = vlaneseq
        %v2553 = vshrl.u32 %v2552, 7
        %v2554 = vsub.s32 0, %v2553
        %v2555 = vrot.slane %v2550, %v2554
        %v2565 = vunpack.c.l.b16 %v2542
        %v2566 = vunpack.c.l.b16 %v2543
        %v2567 = vunpack.c.l.b16 %v2544
        %v2568 = vunpack.c.l.b16 %v2545
        %v2569 = vunpack.c.l.b16 %v2546
        %v2570 = vunpack.c.l.b16 %v2547
        %v2571 = vunpack.c.l.b16 %v2548
        %v2572 = vunpack.c.l.b16 %v2549
        %v2573 = vpack.c.b16 %v2566, %v2565
        %v2574 = vpack.c.b16 %v2568, %v2567
        %v2575 = vpack.c.b16 %v2570, %v2569
        %v2576 = vpack.c.b16 %v2572, %v2571
        %vm2581 = vcmask 523264
        %v2583 = vsel %vm2581, %v2541, 0
        %2585 = vmatprep.subr.bf16.mxu0 0
        %2586 = vmatpush1.bf16.msra.mxu0 %v2573
        %2587 = vmatprep.subr.bf16.mxu0 0
        %2588 = vmatpush1.bf16.msra.mxu0 %v2574
        %2589 = vmatprep.subr.bf16.mxu0 0
        %2590 = vmatpush1.bf16.msra.mxu0 %v2575
        %2591 = vmatprep.subr.bf16.mxu0 0
        %2592 = vmatpush1.bf16.msra.mxu0 %v2576
        %2593 = vmatprep.subr.bf16.mxu0 0
        %2594 = vmatpush1.bf16.msra.mxu0 0
        %2595 = vmatprep.subr.bf16.mxu0 0
        %2596 = vmatpush1.bf16.msra.mxu0 0
        %2597 = vmatprep.subr.bf16.mxu0 0
        %2598 = vmatpush1.bf16.msra.mxu0 0
        %2599 = vmatprep.subr.bf16.mxu0 0
        %2600 = vmatpush1.bf16.msra.mxu0 0
        %2601 = vmatprep.subr.bf16.mxu0 0
        %2602 = vmatpush1.bf16.msra.mxu0 0
        %2603 = vmatprep.subr.bf16.mxu0 0
        %2604 = vmatpush1.bf16.msra.mxu0 0
        %2605 = vmatprep.subr.bf16.mxu0 0
        %2606 = vmatpush1.bf16.msra.mxu0 0
        %2607 = vmatprep.subr.bf16.mxu0 0
        %2608 = vmatpush1.bf16.msra.mxu0 0
        %2609 = vmatprep.subr.bf16.mxu0 0
        %2610 = vmatpush1.bf16.msra.mxu0 0
        %2611 = vmatprep.subr.bf16.mxu0 0
        %2612 = vmatpush1.bf16.msra.mxu0 0
        %2613 = vmatprep.subr.bf16.mxu0 0
        %2614 = vmatpush1.bf16.msra.mxu0 0
        %2615 = vmatprep.subr.bf16.mxu0 0
        %2616 = vmatpush1.bf16.msra.mxu0 0
        %2617 = vmatprep.mubr.bf16.mxu0 0
        %2618 = vmatmul.mubr.bf16.gmra.mrb[0].mxu0 %v2583
        %v2619 = vpop.f32.mrb[0].mxu0
        %v2620 = vadd.f32 %v2555, %v2619
        %v2621 = vpop.f32.mrb[0].mxu0
        %v2622 = vpop.f32.mrb[0].mxu0
        %v2623 = vadd.f32 %v2555, %v2622
        %v2624 = vpop.f32.mrb[0].mxu0
        %2625 = vdwg.mxu0
        %v2626 = vadd.f32 %v2469, %v2620
        %v2627 = vadd.f32 %v2470, %v2623
        %v2628 = vsel %vm919, %v2626, 0.0
        %2629 = vadd.xlane.f32.xlu0 %v2628
        %v2630 = vpop.xlane.xlu0 %2629
        %v2631 = vsel %vm919, %v2627, 0.0
        %2632 = vadd.xlane.f32.xlu0 %v2631
        %v2633 = vpop.xlane.xlu0 %2632
        %v2634 = vmul.f32 %v2630, %v2432
        %v2635 = vmul.f32 %v2633, %v2432
        %v2636 = vsub.f32 %v2626, %v2634
        %v2637 = vsub.f32 %v2627, %v2635
        %v2638 = vmul.f32 %v2636, %v2636
        %v2639 = vmul.f32 %v2637, %v2637
        %v2640 = vsel %vm919, %v2638, 0.0
        %2641 = vadd.xlane.f32.xlu0 %v2640
        %v2642 = vpop.xlane.xlu0 %2641
        %v2643 = vsel %vm919, %v2639, 0.0
        %2644 = vadd.xlane.f32.xlu0 %v2643
        %v2645 = vpop.xlane.xlu0 %2644
        %v2646 = vmul.f32 %v2642, %v2432
        %v2647 = vmul.f32 %v2645, %v2432
        %v2648 = vadd.f32 %v2646, 1e-06
        %v2649 = vadd.f32 %v2647, 1e-06
        %v2650 = vrsqrt.pop %v2648
        %v2651 = vrsqrt.pop %v2649
        %v2652 = vmul.f32 %v2636, %v2650
        %v2653 = vmul.f32 %v2637, %v2651
        %v2654 = vld [vmem:[%s879] sm:$0x1]
        %v2656 = vlaneseq
        %v2657 = vshrl.u32 %v2656, 7
        %v2658 = vsub.s32 0, %v2657
        %v2659 = vrot.slane %v2654, %v2658
        %v2661 = vmul.f32 %v2652, %v2659
        %v2662 = vmul.f32 %v2653, %v2659
        %v2663 = vld [vmem:[%s882] sm:$0x1]
        %v2665 = vlaneseq
        %v2666 = vshrl.u32 %v2665, 7
        %v2667 = vsub.s32 0, %v2666
        %v2668 = vrot.slane %v2663, %v2667
        %v2670 = vadd.f32 %v2661, %v2668
        %v2671 = vadd.f32 %v2662, %v2668
        %2672 = vst.msk [vmem:[#allocation2] sm:$0xff] %vm919, %v2670
        %2673 = vst.msk [vmem:[#allocation2 + $0x8] sm:$0xff] %vm919, %v2671
        %p2674 = scmp.eq.s32.totalorder %s33, 1
        // Predicated region
        $region109: #{tpu_custom_call.1} parent=103 // pred_check
          %p2675 = pneg %p2674
        $region110: #{tpu_custom_call.1} parent=103 // pred_check_branch
          %2677 = sbr.rel (%p2675) target = $region112
        $region111: #{tpu_custom_call.1} parent=103 // pred_region
          %2678 = vst.msk [vmem:[#allocation3] sm:$0xff] %vm919, %v2670
          %2679 = vst.msk [vmem:[#allocation3 + $0x8] sm:$0xff] %vm919, %v2671
        $region112: #{tpu_custom_call.1} parent=103 // pred_fallthru
          _
        // Predicated region
        $region113: #{tpu_custom_call.1} parent=103 // pred_check
          %p2680 = pneg %p567
        $region114: #{tpu_custom_call.1} parent=103 // pred_check_branch
          %2682 = sbr.rel (%p2680) target = $region116
        $region115: #{tpu_custom_call.1} parent=103 // pred_region
          %s2684 = ssub.s32 256, 256
          %2685 = vsyncadd [#allocation4], %s2684
          %s2686 = sshll.u32 [#allocation3], 4
          %s2687 = int_to_ptr.vmem [resolvable:$true] %s2686
          %2692 = dma.vmem_to_hbm [thread:$0]  %s2687, 256, %s21, [#allocation4], 128, 128, 8
        $region116: #{tpu_custom_call.1} parent=103 // pred_fallthru
          _
        // Predicated region
        $region117: #{tpu_custom_call.1} parent=103 // pred_check
          %p2693 = pneg %p567
        $region118: #{tpu_custom_call.1} parent=103 // pred_check_branch
          %2695 = sbr.rel (%p2693) target = $region120
        $region119: #{tpu_custom_call.1} parent=103 // pred_region
          %2696 = dma.done [#allocation4], 256
        $region120: #{tpu_custom_call.1} parent=103 // pred_fallthru
          _
      $region104: #{tpu_custom_call.1} parent=5 // pred_fallthru
        _
      %p2697 = scmp.le.s32.totalorder 2, %s28
      // Predicated region
      $region121: #{tpu_custom_call.1} parent=5 // pred_check
        %p2698 = pneg %p2697
      $region122: #{tpu_custom_call.1} parent=5 // pred_check_branch
        %2700 = sbr.rel (%p2698) target = $region124
      $region123: #{tpu_custom_call.1} parent=5 // pred_region
        %s2701 = ssub.s32 %s28, 2
      $region124: #{tpu_custom_call.1} parent=5 // pred_fallthru
        _
    $region6: #{tpu_custom_call.1} parent=1 // loop_footer
      %s32 = sadd.s32 1, %s28
    $region7: #{tpu_custom_call.1} parent=1 // loop_footer_branch
      %27 = sbr.rel target = $region3
    $region8: #{tpu_custom_call.1} parent=1 // loop_exit
      _
    %2702 = vsyncpa [#allocation4], 1
    %s2703 = scalar_lea.sflag [#allocation4], 1
    %2704 = vsyncpa %s2703, 1

</llo_original>
